<compile_context>
chip_gen: v7x
topology: tpu7x:2x2x1
jax: 0.10.0
libtpu: 0.0.40
codegen_flags: <defaults>
</compile_context>

<pallas_src>
import numpy as np
import jax
import jax.numpy as jnp
from jax import lax
from jax.experimental import pallas as pl
from jax.experimental.pallas import tpu as pltpu


# ----------------------------------------------------------------------------
# Trace-time constant construction (mirrors DoGFilter.__init__).
# ----------------------------------------------------------------------------
def gaussian_1d(kernel_size: int, sigma: float) -> np.ndarray:
    """Normalized 1D Gaussian; outer(g, g) == DoGFilter.get_gaussian_kernel."""
    coords = np.arange(kernel_size, dtype=np.float64)
    mean = (kernel_size - 1) / 2.0
    g = np.exp(-((coords - mean) ** 2) / (2.0 * float(sigma) ** 2))
    g = g / g.sum()
    return g.astype(np.float32)


def gaussian_kernel_2d(kernel_size: int, sigma: float) -> np.ndarray:
    """Exact mirror of DoGFilter.get_gaussian_kernel (single channel, 2D)."""
    coords = np.arange(kernel_size, dtype=np.float32)
    x_grid = np.tile(coords, (kernel_size, 1))
    y_grid = x_grid.T
    mean = (kernel_size - 1) / 2.0
    variance = float(sigma) ** 2.0
    kernel = np.exp(-((x_grid - mean) ** 2 + (y_grid - mean) ** 2) / (2.0 * variance))
    kernel = kernel / kernel.sum()
    return kernel.astype(np.float32)


def banded_conv_matrix(n: int, g: np.ndarray) -> np.ndarray:
    """A (n, n) with A[i, j] = g[j - i + p]: 1D 'same' conv (zero pad) as matmul."""
    k = g.shape[0]
    p = (k - 1) // 2
    a = np.zeros((n, n), dtype=np.float32)
    for i in range(n):
        for t in range(k):
            j = i + t - p
            if 0 <= j < n:
                a[i, j] += g[t]
    return a


# ----------------------------------------------------------------------------
# Pallas kernel: one (batch, channel-tile) block per grid step.
# ----------------------------------------------------------------------------
def dog_kernel(x_ref, a1v_ref, a1ht_ref, a2v_ref, a2ht_ref, o_ref):
    """
    x_ref:   (1, tc, H, W)  unpadded input tile
    a1v_ref: (H, H)   vertical banded Gaussian (sigma1)
    a1ht_ref:(W, W)   horizontal banded Gaussian transposed (sigma1)
    a2v_ref: (H, H)   vertical banded Gaussian (sigma2)
    a2ht_ref:(W, W)   horizontal banded Gaussian transposed (sigma2)
    o_ref:   (1, tc, H, W)  gaussian1 - gaussian2
    """
    _, tc, H, W = x_ref.shape
    hp = lax.Precision.HIGHEST

    x = x_ref[0].astype(jnp.float32)            # (tc, H, W)
    x2d = x.reshape(tc * H, W)                  # layout-preserving merge

    # Horizontal (W-direction) Gaussian passes: one big MXU matmul each.
    y1 = jnp.dot(x2d, a1ht_ref[...], preferred_element_type=jnp.float32,
                 precision=hp).reshape(tc, H, W)
    y2 = jnp.dot(x2d, a2ht_ref[...], preferred_element_type=jnp.float32,
                 precision=hp).reshape(tc, H, W)

    a1v = a1v_ref[...]
    a2v = a2v_ref[...]

    # Vertical (H-direction) passes + DoG subtraction, per channel (unrolled,
    # tc is small by construction). Each dot is a plain 2D MXU matmul.
    for c in range(tc):
        g1 = jnp.dot(a1v, y1[c], preferred_element_type=jnp.float32, precision=hp)
        g2 = jnp.dot(a2v, y2[c], preferred_element_type=jnp.float32, precision=hp)
        o_ref[0, c] = (g1 - g2).astype(o_ref.dtype)


# ----------------------------------------------------------------------------
# Wrapper (DoGFilter.forward).
# ----------------------------------------------------------------------------
def dog_filter(x: jax.Array, sigma1: float,
               target_block_bytes: int = 2 * 1024 * 1024) -> jax.Array:
    """Pallas implementation of DoGFilter.forward.  x: (B, C, H, W)."""
    B, C, H, W = x.shape
    sigma2 = 2.0 * sigma1
    k1 = int(2 * round(3 * sigma1) + 1)
    k2 = int(2 * round(3 * sigma2) + 1)

    g1 = gaussian_1d(k1, sigma1)
    g2 = gaussian_1d(k2, sigma2)

    # Banded conv-as-matmul matrices (zero padding is baked into the bands).
    a1v = jnp.asarray(banded_conv_matrix(H, g1))        # (H, H)
    a1ht = jnp.asarray(banded_conv_matrix(W, g1).T)     # (W, W)
    a2v = jnp.asarray(banded_conv_matrix(H, g2))        # (H, H)
    a2ht = jnp.asarray(banded_conv_matrix(W, g2).T)     # (W, W)

    # Channel tile: largest divisor of C whose (tc, H, W) block stays in the
    # ~2 MiB pipelining sweet spot (fits every generation's VMEM budget).
    itemsize = jnp.dtype(x.dtype).itemsize
    tc = 1
    for d in range(1, C + 1):
        if C % d == 0 and d * H * W * itemsize <= target_block_bytes:
            tc = d
    grid = (B, C // tc)

    return pl.pallas_call(
        dog_kernel,
        out_shape=jax.ShapeDtypeStruct((B, C, H, W), x.dtype),
        grid=grid,
        in_specs=[
            pl.BlockSpec((1, tc, H, W), lambda b, c: (b, c, 0, 0)),
            pl.BlockSpec((H, H), lambda b, c: (0, 0)),
            pl.BlockSpec((W, W), lambda b, c: (0, 0)),
            pl.BlockSpec((H, H), lambda b, c: (0, 0)),
            pl.BlockSpec((W, W), lambda b, c: (0, 0)),
        ],
        out_specs=pl.BlockSpec((1, tc, H, W), lambda b, c: (b, c, 0, 0)),
        compiler_params=pltpu.CompilerParams(
            dimension_semantics=("parallel", "parallel"),
            vmem_limit_bytes=32 * 1024 * 1024,
        ),
    )(x, a1v, a1ht, a2v, a2ht)


# ----------------------------------------------------------------------------
# Pure-JAX reference matching F.conv2d(..., groups=C) semantics.
# ----------------------------------------------------------------------------
def dog_filter_reference(x: jax.Array, sigma1: float) -> jax.Array:
    B, C, H, W = x.shape
    sigma2 = 2.0 * sigma1
    k1 = int(2 * round(3 * sigma1) + 1)
    k2 = int(2 * round(3 * sigma2) + 1)
    p1 = (k1 - 1) // 2
    p2 = (k2 - 1) // 2
    w1 = jnp.asarray(gaussian_kernel_2d(k1, sigma1))[None, None].repeat(C, axis=0)
    w2 = jnp.asarray(gaussian_kernel_2d(k2, sigma2))[None, None].repeat(C, axis=0)
    dn = ("NCHW", "OIHW", "NCHW")
    hp = lax.Precision.HIGHEST
    gauss1 = lax.conv_general_dilated(x, w1, (1, 1), [(p1, p1), (p1, p1)],
                                      feature_group_count=C, dimension_numbers=dn,
                                      precision=hp)
    gauss2 = lax.conv_general_dilated(x, w2, (1, 1), [(p2, p2), (p2, p2)],
                                      feature_group_count=C, dimension_numbers=dn,
                                      precision=hp)
    return gauss1 - gauss2


if __name__ == "__main__":
    B, C, H, W = 2, 4, 16, 16
    sigma1 = 1.0

    key = jax.random.PRNGKey(0)
    x = jax.random.normal(key, (B, C, H, W), dtype=jnp.float32)

    out = jax.block_until_ready(dog_filter(x, sigma1))
    ref = jax.block_until_ready(dog_filter_reference(x, sigma1))

    assert out.shape == (B, C, H, W)
    np.testing.assert_allclose(np.asarray(out), np.asarray(ref),
                               atol=1e-4, rtol=1e-4)

    print("KERNEL_OK")
</pallas_src>

<mosaic_0001>
module attributes {stable_mosaic.version = 11 : i64} {
  func.func @dog_kernel(%arg0: i32, %arg1: i32, %arg2: memref<1x4x16x16xf32, #tpu.memory_space<vmem>>, %arg3: memref<16x16xf32, #tpu.memory_space<vmem>>, %arg4: memref<16x16xf32, #tpu.memory_space<vmem>>, %arg5: memref<16x16xf32, #tpu.memory_space<vmem>>, %arg6: memref<16x16xf32, #tpu.memory_space<vmem>>, %arg7: memref<1x4x16x16xf32, #tpu.memory_space<vmem>>) attributes {dimension_semantics = [#tpu.dimension_semantics<parallel>, #tpu.dimension_semantics<parallel>], iteration_bounds = array<i64: 2, 1>, scalar_prefetch = 0 : i64, scratch_operands = 0 : i64, tpu.core_type = #tpu.core_type<tc>, window_params = [{transform_indices = @transform_0, window_bounds = array<i64: 1, 4, 16, 16>}, {pipeline_mode = #tpu.pipeline_mode<synchronous>, transform_indices = @transform_1, window_bounds = array<i64: 16, 16>}, {pipeline_mode = #tpu.pipeline_mode<synchronous>, transform_indices = @transform_2, window_bounds = array<i64: 16, 16>}, {pipeline_mode = #tpu.pipeline_mode<synchronous>, transform_indices = @transform_3, window_bounds = array<i64: 16, 16>}, {pipeline_mode = #tpu.pipeline_mode<synchronous>, transform_indices = @transform_4, window_bounds = array<i64: 16, 16>}, {transform_indices = @transform_5, window_bounds = array<i64: 1, 4, 16, 16>}]} {
    %c0 = arith.constant 0 : index
    %c0_0 = arith.constant 0 : index
    %c0_1 = arith.constant 0 : index
    %c0_2 = arith.constant 0 : index
    %0 = vector.load %arg2[%c0, %c0_0, %c0_1, %c0_2] : memref<1x4x16x16xf32, #tpu.memory_space<vmem>>, vector<1x4x16x16xf32>
    %1 = vector.shape_cast %0 : vector<1x4x16x16xf32> to vector<4x16x16xf32>
    %2 = vector.shape_cast %1 : vector<4x16x16xf32> to vector<64x16xf32>
    %c0_3 = arith.constant 0 : index
    %c0_4 = arith.constant 0 : index
    %3 = vector.load %arg4[%c0_3, %c0_4] : memref<16x16xf32, #tpu.memory_space<vmem>>, vector<16x16xf32>
    %cst = arith.constant dense<0.000000e+00> : vector<64x16xf32>
    %4 = tpu.matmul %2, %3, %cst {dimension_numbers = #tpu.dot_dimension_numbers<[1], [0], [0], [1], [0, 0, 1, 1], [], []>, precision = #tpu.contract_precision<fp32>} : vector<64x16xf32>, vector<16x16xf32>, vector<64x16xf32> -> vector<64x16xf32>
    %5 = vector.shape_cast %4 : vector<64x16xf32> to vector<4x16x16xf32>
    %c0_5 = arith.constant 0 : index
    %c0_6 = arith.constant 0 : index
    %6 = vector.load %arg6[%c0_5, %c0_6] : memref<16x16xf32, #tpu.memory_space<vmem>>, vector<16x16xf32>
    %cst_7 = arith.constant dense<0.000000e+00> : vector<64x16xf32>
    %7 = tpu.matmul %2, %6, %cst_7 {dimension_numbers = #tpu.dot_dimension_numbers<[1], [0], [0], [1], [0, 0, 1, 1], [], []>, precision = #tpu.contract_precision<fp32>} : vector<64x16xf32>, vector<16x16xf32>, vector<64x16xf32> -> vector<64x16xf32>
    %8 = vector.shape_cast %7 : vector<64x16xf32> to vector<4x16x16xf32>
    %c0_8 = arith.constant 0 : index
    %c0_9 = arith.constant 0 : index
    %9 = vector.load %arg3[%c0_8, %c0_9] : memref<16x16xf32, #tpu.memory_space<vmem>>, vector<16x16xf32>
    %c0_10 = arith.constant 0 : index
    %c0_11 = arith.constant 0 : index
    %10 = vector.load %arg5[%c0_10, %c0_11] : memref<16x16xf32, #tpu.memory_space<vmem>>, vector<16x16xf32>
    %11 = vector.extract_strided_slice %5 {offsets = [0, 0, 0], sizes = [1, 16, 16], strides = [1, 1, 1]} : vector<4x16x16xf32> to vector<1x16x16xf32>
    %12 = vector.shape_cast %11 : vector<1x16x16xf32> to vector<16x16xf32>
    %cst_12 = arith.constant dense<0.000000e+00> : vector<16x16xf32>
    %13 = tpu.matmul %9, %12, %cst_12 {dimension_numbers = #tpu.dot_dimension_numbers<[1], [0], [0], [1], [0, 0, 1, 1], [], []>, precision = #tpu.contract_precision<fp32>} : vector<16x16xf32>, vector<16x16xf32>, vector<16x16xf32> -> vector<16x16xf32>
    %14 = vector.extract_strided_slice %8 {offsets = [0, 0, 0], sizes = [1, 16, 16], strides = [1, 1, 1]} : vector<4x16x16xf32> to vector<1x16x16xf32>
    %15 = vector.shape_cast %14 : vector<1x16x16xf32> to vector<16x16xf32>
    %cst_13 = arith.constant dense<0.000000e+00> : vector<16x16xf32>
    %16 = tpu.matmul %10, %15, %cst_13 {dimension_numbers = #tpu.dot_dimension_numbers<[1], [0], [0], [1], [0, 0, 1, 1], [], []>, precision = #tpu.contract_precision<fp32>} : vector<16x16xf32>, vector<16x16xf32>, vector<16x16xf32> -> vector<16x16xf32>
    %17 = arith.subf %13, %16 : vector<16x16xf32>
    %c0_14 = arith.constant 0 : index
    %c0_15 = arith.constant 0 : index
    %c0_16 = arith.constant 0 : index
    %c0_17 = arith.constant 0 : index
    %18 = vector.load %arg7[%c0_14, %c0_15, %c0_16, %c0_17] : memref<1x4x16x16xf32, #tpu.memory_space<vmem>>, vector<1x1x16x16xf32>
    %19 = vector.shape_cast %18 : vector<1x1x16x16xf32> to vector<16x16xf32>
    %20 = vector.shape_cast %17 : vector<16x16xf32> to vector<1x1x16x16xf32>
    tpu.vector_store %arg7[%c0_14, %c0_15, %c0_16, %c0_17], %20 {strides = array<i32>} : memref<1x4x16x16xf32, #tpu.memory_space<vmem>>, vector<1x1x16x16xf32>,
    %21 = vector.extract_strided_slice %5 {offsets = [1, 0, 0], sizes = [1, 16, 16], strides = [1, 1, 1]} : vector<4x16x16xf32> to vector<1x16x16xf32>
    %22 = vector.shape_cast %21 : vector<1x16x16xf32> to vector<16x16xf32>
    %cst_18 = arith.constant dense<0.000000e+00> : vector<16x16xf32>
    %23 = tpu.matmul %9, %22, %cst_18 {dimension_numbers = #tpu.dot_dimension_numbers<[1], [0], [0], [1], [0, 0, 1, 1], [], []>, precision = #tpu.contract_precision<fp32>} : vector<16x16xf32>, vector<16x16xf32>, vector<16x16xf32> -> vector<16x16xf32>
    %24 = vector.extract_strided_slice %8 {offsets = [1, 0, 0], sizes = [1, 16, 16], strides = [1, 1, 1]} : vector<4x16x16xf32> to vector<1x16x16xf32>
    %25 = vector.shape_cast %24 : vector<1x16x16xf32> to vector<16x16xf32>
    %cst_19 = arith.constant dense<0.000000e+00> : vector<16x16xf32>
    %26 = tpu.matmul %10, %25, %cst_19 {dimension_numbers = #tpu.dot_dimension_numbers<[1], [0], [0], [1], [0, 0, 1, 1], [], []>, precision = #tpu.contract_precision<fp32>} : vector<16x16xf32>, vector<16x16xf32>, vector<16x16xf32> -> vector<16x16xf32>
    %27 = arith.subf %23, %26 : vector<16x16xf32>
    %c0_20 = arith.constant 0 : index
    %c1 = arith.constant 1 : index
    %c0_21 = arith.constant 0 : index
    %c0_22 = arith.constant 0 : index
    %28 = vector.load %arg7[%c0_20, %c1, %c0_21, %c0_22] : memref<1x4x16x16xf32, #tpu.memory_space<vmem>>, vector<1x1x16x16xf32>
    %29 = vector.shape_cast %28 : vector<1x1x16x16xf32> to vector<16x16xf32>
    %30 = vector.shape_cast %27 : vector<16x16xf32> to vector<1x1x16x16xf32>
    tpu.vector_store %arg7[%c0_20, %c1, %c0_21, %c0_22], %30 {strides = array<i32>} : memref<1x4x16x16xf32, #tpu.memory_space<vmem>>, vector<1x1x16x16xf32>,
    %31 = vector.extract_strided_slice %5 {offsets = [2, 0, 0], sizes = [1, 16, 16], strides = [1, 1, 1]} : vector<4x16x16xf32> to vector<1x16x16xf32>
    %32 = vector.shape_cast %31 : vector<1x16x16xf32> to vector<16x16xf32>
    %cst_23 = arith.constant dense<0.000000e+00> : vector<16x16xf32>
    %33 = tpu.matmul %9, %32, %cst_23 {dimension_numbers = #tpu.dot_dimension_numbers<[1], [0], [0], [1], [0, 0, 1, 1], [], []>, precision = #tpu.contract_precision<fp32>} : vector<16x16xf32>, vector<16x16xf32>, vector<16x16xf32> -> vector<16x16xf32>
    %34 = vector.extract_strided_slice %8 {offsets = [2, 0, 0], sizes = [1, 16, 16], strides = [1, 1, 1]} : vector<4x16x16xf32> to vector<1x16x16xf32>
    %35 = vector.shape_cast %34 : vector<1x16x16xf32> to vector<16x16xf32>
    %cst_24 = arith.constant dense<0.000000e+00> : vector<16x16xf32>
    %36 = tpu.matmul %10, %35, %cst_24 {dimension_numbers = #tpu.dot_dimension_numbers<[1], [0], [0], [1], [0, 0, 1, 1], [], []>, precision = #tpu.contract_precision<fp32>} : vector<16x16xf32>, vector<16x16xf32>, vector<16x16xf32> -> vector<16x16xf32>
    %37 = arith.subf %33, %36 : vector<16x16xf32>
    %c0_25 = arith.constant 0 : index
    %c2 = arith.constant 2 : index
    %c0_26 = arith.constant 0 : index
    %c0_27 = arith.constant 0 : index
    %38 = vector.load %arg7[%c0_25, %c2, %c0_26, %c0_27] : memref<1x4x16x16xf32, #tpu.memory_space<vmem>>, vector<1x1x16x16xf32>
    %39 = vector.shape_cast %38 : vector<1x1x16x16xf32> to vector<16x16xf32>
    %40 = vector.shape_cast %37 : vector<16x16xf32> to vector<1x1x16x16xf32>
    tpu.vector_store %arg7[%c0_25, %c2, %c0_26, %c0_27], %40 {strides = array<i32>} : memref<1x4x16x16xf32, #tpu.memory_space<vmem>>, vector<1x1x16x16xf32>,
    %41 = vector.extract_strided_slice %5 {offsets = [3, 0, 0], sizes = [1, 16, 16], strides = [1, 1, 1]} : vector<4x16x16xf32> to vector<1x16x16xf32>
    %42 = vector.shape_cast %41 : vector<1x16x16xf32> to vector<16x16xf32>
    %cst_28 = arith.constant dense<0.000000e+00> : vector<16x16xf32>
    %43 = tpu.matmul %9, %42, %cst_28 {dimension_numbers = #tpu.dot_dimension_numbers<[1], [0], [0], [1], [0, 0, 1, 1], [], []>, precision = #tpu.contract_precision<fp32>} : vector<16x16xf32>, vector<16x16xf32>, vector<16x16xf32> -> vector<16x16xf32>
    %44 = vector.extract_strided_slice %8 {offsets = [3, 0, 0], sizes = [1, 16, 16], strides = [1, 1, 1]} : vector<4x16x16xf32> to vector<1x16x16xf32>
    %45 = vector.shape_cast %44 : vector<1x16x16xf32> to vector<16x16xf32>
    %cst_29 = arith.constant dense<0.000000e+00> : vector<16x16xf32>
    %46 = tpu.matmul %10, %45, %cst_29 {dimension_numbers = #tpu.dot_dimension_numbers<[1], [0], [0], [1], [0, 0, 1, 1], [], []>, precision = #tpu.contract_precision<fp32>} : vector<16x16xf32>, vector<16x16xf32>, vector<16x16xf32> -> vector<16x16xf32>
    %47 = arith.subf %43, %46 : vector<16x16xf32>
    %c0_30 = arith.constant 0 : index
    %c3 = arith.constant 3 : index
    %c0_31 = arith.constant 0 : index
    %c0_32 = arith.constant 0 : index
    %48 = vector.load %arg7[%c0_30, %c3, %c0_31, %c0_32] : memref<1x4x16x16xf32, #tpu.memory_space<vmem>>, vector<1x1x16x16xf32>
    %49 = vector.shape_cast %48 : vector<1x1x16x16xf32> to vector<16x16xf32>
    %50 = vector.shape_cast %47 : vector<16x16xf32> to vector<1x1x16x16xf32>
    tpu.vector_store %arg7[%c0_30, %c3, %c0_31, %c0_32], %50 {strides = array<i32>} : memref<1x4x16x16xf32, #tpu.memory_space<vmem>>, vector<1x1x16x16xf32>,
    return
  }
  func.func @transform_0(%arg0: i32, %arg1: i32) -> (i32, i32, i32, i32) {
    %c0_i32 = arith.constant 0 : i32
    %c0_i32_0 = arith.constant 0 : i32
    %c0_i32_1 = arith.constant 0 : i32
    return %arg0, %arg1, %c0_i32, %c0_i32_0 : i32, i32, i32, i32
  }
  func.func @transform_1(%arg0: i32, %arg1: i32) -> (i32, i32) {
    %c0_i32 = arith.constant 0 : i32
    %c0_i32_0 = arith.constant 0 : i32
    %c0_i32_1 = arith.constant 0 : i32
    return %c0_i32, %c0_i32_0 : i32, i32
  }
  func.func @transform_2(%arg0: i32, %arg1: i32) -> (i32, i32) {
    %c0_i32 = arith.constant 0 : i32
    %c0_i32_0 = arith.constant 0 : i32
    %c0_i32_1 = arith.constant 0 : i32
    return %c0_i32, %c0_i32_0 : i32, i32
  }
  func.func @transform_3(%arg0: i32, %arg1: i32) -> (i32, i32) {
    %c0_i32 = arith.constant 0 : i32
    %c0_i32_0 = arith.constant 0 : i32
    %c0_i32_1 = arith.constant 0 : i32
    return %c0_i32, %c0_i32_0 : i32, i32
  }
  func.func @transform_4(%arg0: i32, %arg1: i32) -> (i32, i32) {
    %c0_i32 = arith.constant 0 : i32
    %c0_i32_0 = arith.constant 0 : i32
    %c0_i32_1 = arith.constant 0 : i32
    return %c0_i32, %c0_i32_0 : i32, i32
  }
  func.func @transform_5(%arg0: i32, %arg1: i32) -> (i32, i32, i32, i32) {
    %c0_i32 = arith.constant 0 : i32
    %c0_i32_0 = arith.constant 0 : i32
    %c0_i32_1 = arith.constant 0 : i32
    return %arg0, %arg1, %c0_i32, %c0_i32_0 : i32, i32, i32, i32
  }
}

</mosaic_0001>

<llo_original>
// kernel: tpu_custom_call.1
$region0: #{tpu_custom_call.1}
  #allocation0 [shape = 'u32[]', space=smem, size = 0x4, offset = 0x4, fixed_abs, tag = 'smem constant byte address 0x4 - core index']
  #allocation1 [shape = 'u32[144,128]{1,0:T(1,128)}', space=vmem, size = 0x12000, scoped, tag = 'internal scratch']
  %s0 = inlined_call_operand.hbm [shape: f32[2,4,16,16], index: 0, kind: input, shape index: {}]
  %s1 = inlined_call_operand.hbm [shape: f32[16,16], index: 1, kind: input, shape index: {}]
  %s2 = inlined_call_operand.hbm [shape: f32[16,16], index: 2, kind: input, shape index: {}]
  %s3 = inlined_call_operand.hbm [shape: f32[16,16], index: 3, kind: input, shape index: {}]
  %s4 = inlined_call_operand.hbm [shape: f32[16,16], index: 4, kind: input, shape index: {}]
  %s5 = inlined_call_operand.hbm [shape: f32[2,4,16,16], index: 5, kind: output, shape index: {}]
  %s6 = sld [smem:[#allocation0]]
  $region73: #{tpu_custom_call.1} parent=0
    _
  %s8 = ssub.s32 1, %s6
  %s9 = scalar_select 0, %s8, %s6
  $region1: #{tpu_custom_call.1} parent=0
    #allocation2 [shape = 'u8[65536]{0}', space=vmem, size = 0x10000, scoped, tag = 'input window, operand 0']
    #allocation3 [shape = 's32[2]{0}', space=sflag, size = 0x8, scoped, tag = 'scoped memory for tpu_custom_call.1']
    #allocation4 [shape = 's32[2]{0}', space=sflag, size = 0x8, scoped, tag = 'scoped memory for tpu_custom_call.1']
    #allocation5 [shape = 'u8[8192]{0}', space=vmem, size = 0x2000, scoped, tag = 'input window, operand 1, single buffered']
    #allocation6 [shape = 's32[1]{0}', space=sflag, size = 0x4, scoped, tag = 'scoped memory for tpu_custom_call.1']
    #allocation7 [shape = 'u8[8192]{0}', space=vmem, size = 0x2000, scoped, tag = 'input window, operand 2, single buffered']
    #allocation8 [shape = 'u8[8192]{0}', space=vmem, size = 0x2000, scoped, tag = 'input window, operand 3, single buffered']
    #allocation9 [shape = 's32[1]{0}', space=sflag, size = 0x4, scoped, tag = 'scoped memory for tpu_custom_call.1']
    #allocation10 [shape = 'u8[8192]{0}', space=vmem, size = 0x2000, scoped, tag = 'input window, operand 4, single buffered']
    #allocation11 [shape = 'u8[65536]{0}', space=vmem, size = 0x10000, scoped, tag = 'output window, operand 0']
    %10 = vsyncpa [#allocation3], 0
    %s11 = scalar_lea.sflag [#allocation3], 1
    %12 = vsyncpa %s11, 0
    %13 = vsyncpa [#allocation6], 0
    %14 = vsyncpa [#allocation9], 0
    %15 = vsyncpa [#allocation4], 0
    %s16 = scalar_lea.sflag [#allocation4], 1
    %17 = vsyncpa %s16, 0
    loop: start=0, step=1, limit=4
    $region2: #{tpu_custom_call.1} parent=1 // loop_pre_header
      _
    $region3: #{tpu_custom_call.1} parent=1 // loop_header
      %s19 = sphi 0, %s23
      %p20 = scmp.ge.s32.totalorder %s19, 4
      %s26 = sphi 0, %s38
      %s27 = sphi 0, %s34
      %s28 = sphi 0, %s26
      %s29 = sphi 0, %s27
      %s30 = sphi 0, %s28
      %s31 = sphi 0, %s29
      %s43 = sphi 0, %s45
      %s46 = sphi 0, %s43
      %s47 = sphi 0, %s46
      %s63 = sphi 0, %s47
      %s67 = sphi 0, %s67
      %s69 = sphi 0, %s67
      %s70 = sphi 0, %s69
      %s84 = sphi 0, %s70
      %s88 = sphi 0, %s88
      %s90 = sphi 0, %s88
      %s91 = sphi 0, %s90
      %s105 = sphi 0, %s91
      %s109 = sphi 0, %s109
      %s111 = sphi 0, %s109
      %s112 = sphi 0, %s111
      %s126 = sphi 0, %s112
      %s130 = sphi 0, %s130
      %s132 = sphi 0, %s130
      %s133 = sphi 0, %s132
      %s147 = sphi 0, %s133
      %s155 = sphi 0, %s157
      %s158 = sphi 0, %s155
      %s159 = sphi 0, %s158
      %s175 = sphi 0, %s159
    $region4: #{tpu_custom_call.1} parent=1 // loop_header_branch
      %22 = sbr.rel (%p20) target = $region8
    $region5: #{tpu_custom_call.1} parent=1 // loop_body
      %s24 = ssub.s32 %s19, 1
      %s25 = ssub.s32 %s19, 2
      %s32 = sadd.s32 1, %s27
      %p33 = scmp.ge.s32.totalorder %s32, 1
      %s34 = scalar_select %p33, 0, %s32
      %s35 = sadd.s32 1, %s26
      %s36 = scalar_select %p33, %s35, %s26
      %p37 = scmp.ge.s32.totalorder %s36, 2
      %s38 = scalar_select %p37, 0, %s36
      %s39 = ssub.s32 %s26, %s38
      %s40 = ssub.s32 %s27, %s34
      %s41 = sor.u32 %s39, %s40
      %p42 = scmp.eq.s32.totalorder %s41, 0
      %s44 = sadd.s32 %s43, 1
      %s45 = scalar_select %p42, %s43, %s44
      %p48 = pneg %p42
      %p49 = scmp.eq.s32.totalorder %s19, 1
      %p50 = por %p48, %p49
      %p51 = scmp.ne.s32.totalorder %s43, %s46
      %p52 = scmp.eq.s32.totalorder %s19, 0
      %p53 = por %p51, %p52
      %p54 = scmp.ne.s32.totalorder %s43, %s46
      %p55 = scmp.eq.s32.totalorder %s24, 1
      %p56 = por %p54, %p55
      %p57 = scmp.ne.s32.totalorder %s46, %s47
      %p58 = scmp.eq.s32.totalorder %s24, 0
      %p59 = por %p57, %p58
      %p60 = scmp.ne.s32.totalorder %s46, %s47
      %p61 = scmp.eq.s32.totalorder %s25, 1
      %p62 = por %p60, %p61
      %p64 = scmp.ne.s32.totalorder %s47, %s63
      %p65 = scmp.eq.s32.totalorder %s25, 0
      %p66 = por %p64, %p65
      %s68 = sadd.s32 %s67, 1
      %p71 = scmp.eq.s32.totalorder %s19, 1
      %p72 = scmp.ne.s32.totalorder %s67, %s69
      %p73 = scmp.eq.s32.totalorder %s19, 0
      %p74 = por %p72, %p73
      %p75 = scmp.ne.s32.totalorder %s67, %s69
      %p76 = scmp.eq.s32.totalorder %s24, 1
      %p77 = por %p75, %p76
      %p78 = scmp.ne.s32.totalorder %s69, %s70
      %p79 = scmp.eq.s32.totalorder %s24, 0
      %p80 = por %p78, %p79
      %p81 = scmp.ne.s32.totalorder %s69, %s70
      %p82 = scmp.eq.s32.totalorder %s25, 1
      %p83 = por %p81, %p82
      %p85 = scmp.ne.s32.totalorder %s70, %s84
      %p86 = scmp.eq.s32.totalorder %s25, 0
      %p87 = por %p85, %p86
      %s89 = sadd.s32 %s88, 1
      %p92 = scmp.eq.s32.totalorder %s19, 1
      %p93 = scmp.ne.s32.totalorder %s88, %s90
      %p94 = scmp.eq.s32.totalorder %s19, 0
      %p95 = por %p93, %p94
      %p96 = scmp.ne.s32.totalorder %s88, %s90
      %p97 = scmp.eq.s32.totalorder %s24, 1
      %p98 = por %p96, %p97
      %p99 = scmp.ne.s32.totalorder %s90, %s91
      %p100 = scmp.eq.s32.totalorder %s24, 0
      %p101 = por %p99, %p100
      %p102 = scmp.ne.s32.totalorder %s90, %s91
      %p103 = scmp.eq.s32.totalorder %s25, 1
      %p104 = por %p102, %p103
      %p106 = scmp.ne.s32.totalorder %s91, %s105
      %p107 = scmp.eq.s32.totalorder %s25, 0
      %p108 = por %p106, %p107
      %s110 = sadd.s32 %s109, 1
      %p113 = scmp.eq.s32.totalorder %s19, 1
      %p114 = scmp.ne.s32.totalorder %s109, %s111
      %p115 = scmp.eq.s32.totalorder %s19, 0
      %p116 = por %p114, %p115
      %p117 = scmp.ne.s32.totalorder %s109, %s111
      %p118 = scmp.eq.s32.totalorder %s24, 1
      %p119 = por %p117, %p118
      %p120 = scmp.ne.s32.totalorder %s111, %s112
      %p121 = scmp.eq.s32.totalorder %s24, 0
      %p122 = por %p120, %p121
      %p123 = scmp.ne.s32.totalorder %s111, %s112
      %p124 = scmp.eq.s32.totalorder %s25, 1
      %p125 = por %p123, %p124
      %p127 = scmp.ne.s32.totalorder %s112, %s126
      %p128 = scmp.eq.s32.totalorder %s25, 0
      %p129 = por %p127, %p128
      %s131 = sadd.s32 %s130, 1
      %p134 = scmp.eq.s32.totalorder %s19, 1
      %p135 = scmp.ne.s32.totalorder %s130, %s132
      %p136 = scmp.eq.s32.totalorder %s19, 0
      %p137 = por %p135, %p136
      %p138 = scmp.ne.s32.totalorder %s130, %s132
      %p139 = scmp.eq.s32.totalorder %s24, 1
      %p140 = por %p138, %p139
      %p141 = scmp.ne.s32.totalorder %s132, %s133
      %p142 = scmp.eq.s32.totalorder %s24, 0
      %p143 = por %p141, %p142
      %p144 = scmp.ne.s32.totalorder %s132, %s133
      %p145 = scmp.eq.s32.totalorder %s25, 1
      %p146 = por %p144, %p145
      %p148 = scmp.ne.s32.totalorder %s133, %s147
      %p149 = scmp.eq.s32.totalorder %s25, 0
      %p150 = por %p148, %p149
      %s151 = ssub.s32 %s26, %s38
      %s152 = ssub.s32 %s27, %s34
      %s153 = sor.u32 %s151, %s152
      %p154 = scmp.eq.s32.totalorder %s153, 0
      %s156 = sadd.s32 %s155, 1
      %s157 = scalar_select %p154, %s155, %s156
      %p160 = pneg %p154
      %p161 = scmp.eq.s32.totalorder %s19, 1
      %p162 = por %p160, %p161
      %p163 = scmp.ne.s32.totalorder %s155, %s158
      %p164 = scmp.eq.s32.totalorder %s19, 0
      %p165 = por %p163, %p164
      %p166 = scmp.ne.s32.totalorder %s155, %s158
      %p167 = scmp.eq.s32.totalorder %s24, 1
      %p168 = por %p166, %p167
      %p169 = scmp.ne.s32.totalorder %s158, %s159
      %p170 = scmp.eq.s32.totalorder %s24, 0
      %p171 = por %p169, %p170
      %p172 = scmp.ne.s32.totalorder %s158, %s159
      %p173 = scmp.eq.s32.totalorder %s25, 1
      %p174 = por %p172, %p173
      %p176 = scmp.ne.s32.totalorder %s159, %s175
      %p177 = scmp.eq.s32.totalorder %s25, 0
      %p178 = por %p176, %p177
      %p179 = scmp.le.s32.totalorder 1, %s19
      %p180 = scmp.lt.s32.totalorder %s19, 3
      %p181 = pnand %p179, %p180
      %p182 = pneg %p181
      // Predicated region
      $region9: #{tpu_custom_call.1} parent=5 // pred_check
        _
      $region10: #{tpu_custom_call.1} parent=5 // pred_check_branch
        %184 = sbr.rel (%p181) target = $region12
      $region11: #{tpu_custom_call.1} parent=5 // pred_region
        %s185 = ssub.s32 %s19, 1
        // Predicated region
        $region13: #{tpu_custom_call.1} parent=11 // pred_check
          %p186 = pneg %p80
        $region14: #{tpu_custom_call.1} parent=11 // pred_check_branch
          %188 = sbr.rel (%p186) target = $region16
        $region15: #{tpu_custom_call.1} parent=11 // pred_region
          %s190 = ssub.s32 256, 256
          %191 = vsyncadd [#allocation6], %s190
          %s192 = sshll.u32 [#allocation5], 4
          %s193 = int_to_ptr.vmem [resolvable:$true] %s192
          %198 = dma.hbm_to_vmem [thread:$0]  %s1, 256, %s193, [#allocation6], 128, 128, 8
        $region16: #{tpu_custom_call.1} parent=11 // pred_fallthru
          _
        // Predicated region
        $region17: #{tpu_custom_call.1} parent=11 // pred_check
          %p199 = pneg %p101
        $region18: #{tpu_custom_call.1} parent=11 // pred_check_branch
          %201 = sbr.rel (%p199) target = $region20
        $region19: #{tpu_custom_call.1} parent=11 // pred_region
          %s203 = ssub.s32 256, 256
          %204 = vsyncadd [#allocation6], %s203
          %s205 = sshll.u32 [#allocation7], 4
          %s206 = int_to_ptr.vmem [resolvable:$true] %s205
          %211 = dma.hbm_to_vmem [thread:$0]  %s2, 256, %s206, [#allocation6], 128, 128, 8
        $region20: #{tpu_custom_call.1} parent=11 // pred_fallthru
          _
        // Predicated region
        $region21: #{tpu_custom_call.1} parent=11 // pred_check
          %p212 = pneg %p122
        $region22: #{tpu_custom_call.1} parent=11 // pred_check_branch
          %214 = sbr.rel (%p212) target = $region24
        $region23: #{tpu_custom_call.1} parent=11 // pred_region
          %s216 = ssub.s32 256, 256
          %217 = vsyncadd [#allocation9], %s216
          %s218 = sshll.u32 [#allocation8], 4
          %s219 = int_to_ptr.vmem [resolvable:$true] %s218
          %224 = dma.hbm_to_vmem [thread:$0]  %s3, 256, %s219, [#allocation9], 128, 128, 8
        $region24: #{tpu_custom_call.1} parent=11 // pred_fallthru
          _
        // Predicated region
        $region25: #{tpu_custom_call.1} parent=11 // pred_check
          %p225 = pneg %p143
        $region26: #{tpu_custom_call.1} parent=11 // pred_check_branch
          %227 = sbr.rel (%p225) target = $region28
        $region27: #{tpu_custom_call.1} parent=11 // pred_region
          %s229 = ssub.s32 256, 256
          %230 = vsyncadd [#allocation9], %s229
          %s231 = sshll.u32 [#allocation10], 4
          %s232 = int_to_ptr.vmem [resolvable:$true] %s231
          %237 = dma.hbm_to_vmem [thread:$0]  %s4, 256, %s232, [#allocation9], 128, 128, 8
        $region28: #{tpu_custom_call.1} parent=11 // pred_fallthru
          _
      $region12: #{tpu_custom_call.1} parent=5 // pred_fallthru
        _
      %p238 = scmp.lt.s32.totalorder %s19, 2
      // Predicated region
      $region29: #{tpu_custom_call.1} parent=5 // pred_check
        %p239 = pneg %p238
      $region30: #{tpu_custom_call.1} parent=5 // pred_check_branch
        %241 = sbr.rel (%p239) target = $region32
      $region31: #{tpu_custom_call.1} parent=5 // pred_region
        // Predicated region
        $region33: #{tpu_custom_call.1} parent=31 // pred_check
          %p242 = pneg %p53
        $region34: #{tpu_custom_call.1} parent=31 // pred_check_branch
          %244 = sbr.rel (%p242) target = $region36
        $region35: #{tpu_custom_call.1} parent=31 // pred_region
          %s245 = sand.u32 %s43, 1
          %s246 = scalar_lea.sflag [#allocation3], %s245
          %s247 = sand.u32 %s43, 1
          %s248 = smul.addr %s247, 64
          %s249 = scalar_lea.vmem [#allocation2], %s248
          %s250 = smul.u32 4, %s27
          %s252 = ssub.s32 1024, 1024
          %253 = vsyncadd %s246, %s252
          %s254 = smul.addr %s250, 2
          %s255 = smul.addr %s26, 8
          %s256 = sadd.s32 %s254, %s255
          %s257 = smul.addr %s256, 128
          %s258 = scalar_lea.hbm %s0, %s257
          %s259 = sshll.u32 %s249, 4
          %s260 = int_to_ptr.vmem [resolvable:$true] %s259
          %265 = dma.hbm_to_vmem [thread:$0]  %s258, 1024, %s260, %s246, 128, 128, 8
        $region36: #{tpu_custom_call.1} parent=31 // pred_fallthru
          _
      $region32: #{tpu_custom_call.1} parent=5 // pred_fallthru
        _
      %p266 = scmp.le.s32.totalorder 1, %s19
      %p267 = scmp.lt.s32.totalorder %s19, 3
      %p268 = pnand %p266, %p267
      %p269 = pneg %p268
      // Predicated region
      $region37: #{tpu_custom_call.1} parent=5 // pred_check
        _
      $region38: #{tpu_custom_call.1} parent=5 // pred_check_branch
        %271 = sbr.rel (%p268) target = $region40
      $region39: #{tpu_custom_call.1} parent=5 // pred_region
        %s272 = ssub.s32 %s19, 1
        %s273 = sand.u32 %s46, 1
        %s274 = scalar_lea.sflag [#allocation3], %s273
        %s275 = sand.u32 %s46, 1
        %s276 = smul.addr %s275, 64
        %s277 = scalar_lea.vmem [#allocation2], %s276
        // Predicated region
        $region41: #{tpu_custom_call.1} parent=39 // pred_check
          %p278 = pneg %p59
        $region42: #{tpu_custom_call.1} parent=39 // pred_check_branch
          %280 = sbr.rel (%p278) target = $region44
        $region43: #{tpu_custom_call.1} parent=39 // pred_region
          %281 = dma.done %s274, 1024
        $region44: #{tpu_custom_call.1} parent=39 // pred_fallthru
          _
        // Predicated region
        $region45: #{tpu_custom_call.1} parent=39 // pred_check
          %p282 = pneg %p80
        $region46: #{tpu_custom_call.1} parent=39 // pred_check_branch
          %284 = sbr.rel (%p282) target = $region48
        $region47: #{tpu_custom_call.1} parent=39 // pred_region
          %285 = dma.done [#allocation6], 256
        $region48: #{tpu_custom_call.1} parent=39 // pred_fallthru
          _
        // Predicated region
        $region49: #{tpu_custom_call.1} parent=39 // pred_check
          %p286 = pneg %p101
        $region50: #{tpu_custom_call.1} parent=39 // pred_check_branch
          %288 = sbr.rel (%p286) target = $region52
        $region51: #{tpu_custom_call.1} parent=39 // pred_region
          %289 = dma.done [#allocation6], 256
        $region52: #{tpu_custom_call.1} parent=39 // pred_fallthru
          _
        // Predicated region
        $region53: #{tpu_custom_call.1} parent=39 // pred_check
          %p290 = pneg %p122
        $region54: #{tpu_custom_call.1} parent=39 // pred_check_branch
          %292 = sbr.rel (%p290) target = $region56
        $region55: #{tpu_custom_call.1} parent=39 // pred_region
          %293 = dma.done [#allocation9], 256
        $region56: #{tpu_custom_call.1} parent=39 // pred_fallthru
          _
        // Predicated region
        $region57: #{tpu_custom_call.1} parent=39 // pred_check
          %p294 = pneg %p143
        $region58: #{tpu_custom_call.1} parent=39 // pred_check_branch
          %296 = sbr.rel (%p294) target = $region60
        $region59: #{tpu_custom_call.1} parent=39 // pred_region
          %297 = dma.done [#allocation9], 256
        $region60: #{tpu_custom_call.1} parent=39 // pred_fallthru
          _
        %s298 = sand.u32 %s46, 1
        %s299 = scalar_lea.sflag [#allocation3], %s298
        %s300 = sand.u32 %s46, 1
        %s301 = smul.addr %s300, 64
        %s302 = scalar_lea.vmem [#allocation2], %s301
        %p303 = pneg %p59
        %p304 = pneg %p56
        %p305 = pneg %p80
        %p306 = pneg %p77
        %p307 = pneg %p101
        %p308 = pneg %p98
        %p309 = pneg %p122
        %p310 = pneg %p119
        %p311 = pneg %p143
        %p312 = pneg %p140
        %p313 = pneg %p171
        %p314 = pneg %p168
        %s315 = sand.u32 %s158, 1
        %s316 = scalar_lea.sflag [#allocation4], %s315
        %s317 = sand.u32 %s158, 1
        %s318 = smul.addr %s317, 64
        %s319 = scalar_lea.vmem [#allocation11], %s318
        %s320 = smul.u32 4, %s29
        %s321 = smul.u32 4, %s29
        %v322 = vld [vmem:[%s277] sm:$0xff]
        %v323 = vld [vmem:[%s277 + $0x8] sm:$0xff]
        %v324 = vld [vmem:[%s277 + $0x10] sm:$0xff]
        %v325 = vld [vmem:[%s277 + $0x18] sm:$0xff]
        %v326 = vld [vmem:[%s277 + $0x20] sm:$0xff]
        %v327 = vld [vmem:[%s277 + $0x28] sm:$0xff]
        %v328 = vld [vmem:[%s277 + $0x30] sm:$0xff]
        %v329 = vld [vmem:[%s277 + $0x38] sm:$0xff]
        %v330 = vld [vmem:[#allocation7] sm:$0xff]
        %v331 = vld [vmem:[#allocation7 + $0x8] sm:$0xff]
        %vm332 = vcmask 130048
        %v334 = vsel %vm332, %v322, 0
        %v337 = vsel %vm332, %v323, 0
        %v340 = vsel %vm332, %v324, 0
        %v343 = vsel %vm332, %v325, 0
        %v346 = vsel %vm332, %v326, 0
        %v349 = vsel %vm332, %v327, 0
        %v352 = vsel %vm332, %v328, 0
        %v355 = vsel %vm332, %v329, 0
        %357 = vmatprep.subr.mxu0 0.0
        %v358 = vand.u32 %v330, 4294901760
        %359 = vmatpush1.msra.mxu0 %v358
        %360 = vmatprep.subr.mxu0 0.0
        %v361 = vand.u32 %v331, 4294901760
        %362 = vmatpush1.msra.mxu0 %v361
        %363 = vmatprep.subr.mxu0 0.0
        %364 = vmatpush1.msra.mxu0 0.0
        %365 = vmatprep.subr.mxu0 0.0
        %366 = vmatpush1.msra.mxu0 0.0
        %367 = vmatprep.subr.mxu0 0.0
        %368 = vmatpush1.msra.mxu0 0.0
        %369 = vmatprep.subr.mxu0 0.0
        %370 = vmatpush1.msra.mxu0 0.0
        %371 = vmatprep.subr.mxu0 0.0
        %372 = vmatpush1.msra.mxu0 0.0
        %373 = vmatprep.subr.mxu0 0.0
        %374 = vmatpush1.msra.mxu0 0.0
        %375 = vmatprep.subr.mxu0 0.0
        %376 = vmatpush1.msra.mxu0 0.0
        %377 = vmatprep.subr.mxu0 0.0
        %378 = vmatpush1.msra.mxu0 0.0
        %379 = vmatprep.subr.mxu0 0.0
        %380 = vmatpush1.msra.mxu0 0.0
        %381 = vmatprep.subr.mxu0 0.0
        %382 = vmatpush1.msra.mxu0 0.0
        %383 = vmatprep.subr.mxu0 0.0
        %384 = vmatpush1.msra.mxu0 0.0
        %385 = vmatprep.subr.mxu0 0.0
        %386 = vmatpush1.msra.mxu0 0.0
        %387 = vmatprep.subr.mxu0 0.0
        %388 = vmatpush1.msra.mxu0 0.0
        %389 = vmatprep.subr.mxu0 0.0
        %390 = vmatpush1.msra.mxu0 0.0
        %391 = vmatprep.subr.mxu0 0.0
        %392 = vmatpush1.msra.mxu0 0.0
        %393 = vmatprep.subr.mxu0 0.0
        %394 = vmatpush1.msra.mxu0 0.0
        %395 = vmatprep.subr.mxu0 0.0
        %396 = vmatpush1.msra.mxu0 0.0
        %397 = vmatprep.subr.mxu0 0.0
        %398 = vmatpush1.msra.mxu0 0.0
        %399 = vmatprep.subr.mxu0 0.0
        %400 = vmatpush1.msra.mxu0 0.0
        %401 = vmatprep.subr.mxu0 0.0
        %402 = vmatpush1.msra.mxu0 0.0
        %403 = vmatprep.subr.mxu0 0.0
        %404 = vmatpush1.msra.mxu0 0.0
        %405 = vmatprep.subr.mxu0 0.0
        %406 = vmatpush1.msra.mxu0 0.0
        %407 = vmatprep.subr.mxu0 0.0
        %408 = vmatpush1.msra.mxu0 0.0
        %409 = vmatprep.subr.mxu0 0.0
        %410 = vmatpush1.msra.mxu0 0.0
        %411 = vmatprep.subr.mxu0 0.0
        %412 = vmatpush1.msra.mxu0 0.0
        %413 = vmatprep.subr.mxu0 0.0
        %414 = vmatpush1.msra.mxu0 0.0
        %415 = vmatprep.subr.mxu0 0.0
        %416 = vmatpush1.msra.mxu0 0.0
        %417 = vmatprep.subr.mxu0 0.0
        %418 = vmatpush1.msra.mxu0 0.0
        %419 = vmatprep.subr.mxu0 0.0
        %420 = vmatpush1.msra.mxu0 0.0
        %421 = vmatprep.subr.mxu0 0.0
        %422 = vmatpush1.msra.mxu0 0.0
        %423 = vmatprep.mubr.f32.mxu0 0.0
        %v424 = vand.u32 %v334, 4294901760
        %v425 = vsub.f32 %v334, %v424
        %v426 = vand.u32 %v425, 4294901760
        %v427 = vsub.f32 %v425, %v426
        %v428 = vand.u32 %v427, 4294901760
        %429 = vmatmul.mubr.f32.gmra.mrb[0].mxu0 %v428
        %v430 = vpop.f32.mrb[0].mxu0
        %v431 = vadd.f32 0.0, %v430
        %v432 = vpop.f32.mrb[0].mxu0
        %433 = vmatprep.mubr.f32.mxu0 0.0
        %v434 = vand.u32 %v337, 4294901760
        %v435 = vsub.f32 %v337, %v434
        %v436 = vand.u32 %v435, 4294901760
        %v437 = vsub.f32 %v435, %v436
        %v438 = vand.u32 %v437, 4294901760
        %439 = vmatmul.mubr.f32.gmra.mrb[0].mxu0 %v438
        %v440 = vpop.f32.mrb[0].mxu0
        %v441 = vadd.f32 0.0, %v440
        %v442 = vpop.f32.mrb[0].mxu0
        %443 = vmatprep.mubr.f32.mxu0 0.0
        %v444 = vand.u32 %v340, 4294901760
        %v445 = vsub.f32 %v340, %v444
        %v446 = vand.u32 %v445, 4294901760
        %v447 = vsub.f32 %v445, %v446
        %v448 = vand.u32 %v447, 4294901760
        %449 = vmatmul.mubr.f32.gmra.mrb[0].mxu0 %v448
        %v450 = vpop.f32.mrb[0].mxu0
        %v451 = vadd.f32 0.0, %v450
        %v452 = vpop.f32.mrb[0].mxu0
        %453 = vmatprep.mubr.f32.mxu0 0.0
        %v454 = vand.u32 %v343, 4294901760
        %v455 = vsub.f32 %v343, %v454
        %v456 = vand.u32 %v455, 4294901760
        %v457 = vsub.f32 %v455, %v456
        %v458 = vand.u32 %v457, 4294901760
        %459 = vmatmul.mubr.f32.gmra.mrb[0].mxu0 %v458
        %v460 = vpop.f32.mrb[0].mxu0
        %v461 = vadd.f32 0.0, %v460
        %v462 = vpop.f32.mrb[0].mxu0
        %463 = vmatprep.mubr.f32.mxu0 0.0
        %v464 = vand.u32 %v346, 4294901760
        %v465 = vsub.f32 %v346, %v464
        %v466 = vand.u32 %v465, 4294901760
        %v467 = vsub.f32 %v465, %v466
        %v468 = vand.u32 %v467, 4294901760
        %469 = vmatmul.mubr.f32.gmra.mrb[0].mxu0 %v468
        %v470 = vpop.f32.mrb[0].mxu0
        %v471 = vadd.f32 0.0, %v470
        %v472 = vpop.f32.mrb[0].mxu0
        %473 = vmatprep.mubr.f32.mxu0 0.0
        %v474 = vand.u32 %v349, 4294901760
        %v475 = vsub.f32 %v349, %v474
        %v476 = vand.u32 %v475, 4294901760
        %v477 = vsub.f32 %v475, %v476
        %v478 = vand.u32 %v477, 4294901760
        %479 = vmatmul.mubr.f32.gmra.mrb[0].mxu0 %v478
        %v480 = vpop.f32.mrb[0].mxu0
        %v481 = vadd.f32 0.0, %v480
        %v482 = vpop.f32.mrb[0].mxu0
        %483 = vmatprep.mubr.f32.mxu0 0.0
        %v484 = vand.u32 %v352, 4294901760
        %v485 = vsub.f32 %v352, %v484
        %v486 = vand.u32 %v485, 4294901760
        %v487 = vsub.f32 %v485, %v486
        %v488 = vand.u32 %v487, 4294901760
        %489 = vmatmul.mubr.f32.gmra.mrb[0].mxu0 %v488
        %v490 = vpop.f32.mrb[0].mxu0
        %v491 = vadd.f32 0.0, %v490
        %v492 = vpop.f32.mrb[0].mxu0
        %493 = vmatprep.mubr.f32.mxu0 0.0
        %v494 = vand.u32 %v355, 4294901760
        %v495 = vsub.f32 %v355, %v494
        %v496 = vand.u32 %v495, 4294901760
        %v497 = vsub.f32 %v495, %v496
        %v498 = vand.u32 %v497, 4294901760
        %499 = vmatmul.mubr.f32.gmra.mrb[0].mxu0 %v498
        %v500 = vpop.f32.mrb[0].mxu0
        %v501 = vadd.f32 0.0, %v500
        %v502 = vpop.f32.mrb[0].mxu0
        %503 = vdwg.mxu0
        %504 = vmatprep.subr.mxu0 0.0
        %v505 = vand.u32 %v330, 4294901760
        %v506 = vsub.f32 %v330, %v505
        %v507 = vand.u32 %v506, 4294901760
        %v508 = vsub.f32 %v506, %v507
        %v509 = vand.u32 %v508, 4294901760
        %510 = vmatpush1.msra.mxu0 %v509
        %511 = vmatprep.subr.mxu0 0.0
        %v512 = vand.u32 %v331, 4294901760
        %v513 = vsub.f32 %v331, %v512
        %v514 = vand.u32 %v513, 4294901760
        %v515 = vsub.f32 %v513, %v514
        %v516 = vand.u32 %v515, 4294901760
        %517 = vmatpush1.msra.mxu0 %v516
        %518 = vmatprep.subr.mxu0 0.0
        %519 = vmatpush1.msra.mxu0 0.0
        %520 = vmatprep.subr.mxu0 0.0
        %521 = vmatpush1.msra.mxu0 0.0
        %522 = vmatprep.subr.mxu0 0.0
        %523 = vmatpush1.msra.mxu0 0.0
        %524 = vmatprep.subr.mxu0 0.0
        %525 = vmatpush1.msra.mxu0 0.0
        %526 = vmatprep.subr.mxu0 0.0
        %527 = vmatpush1.msra.mxu0 0.0
        %528 = vmatprep.subr.mxu0 0.0
        %529 = vmatpush1.msra.mxu0 0.0
        %530 = vmatprep.subr.mxu0 0.0
        %531 = vmatpush1.msra.mxu0 0.0
        %532 = vmatprep.subr.mxu0 0.0
        %533 = vmatpush1.msra.mxu0 0.0
        %534 = vmatprep.subr.mxu0 0.0
        %535 = vmatpush1.msra.mxu0 0.0
        %536 = vmatprep.subr.mxu0 0.0
        %537 = vmatpush1.msra.mxu0 0.0
        %538 = vmatprep.subr.mxu0 0.0
        %539 = vmatpush1.msra.mxu0 0.0
        %540 = vmatprep.subr.mxu0 0.0
        %541 = vmatpush1.msra.mxu0 0.0
        %542 = vmatprep.subr.mxu0 0.0
        %543 = vmatpush1.msra.mxu0 0.0
        %544 = vmatprep.subr.mxu0 0.0
        %545 = vmatpush1.msra.mxu0 0.0
        %546 = vmatprep.subr.mxu0 0.0
        %547 = vmatpush1.msra.mxu0 0.0
        %548 = vmatprep.subr.mxu0 0.0
        %549 = vmatpush1.msra.mxu0 0.0
        %550 = vmatprep.subr.mxu0 0.0
        %551 = vmatpush1.msra.mxu0 0.0
        %552 = vmatprep.subr.mxu0 0.0
        %553 = vmatpush1.msra.mxu0 0.0
        %554 = vmatprep.subr.mxu0 0.0
        %555 = vmatpush1.msra.mxu0 0.0
        %556 = vmatprep.subr.mxu0 0.0
        %557 = vmatpush1.msra.mxu0 0.0
        %558 = vmatprep.subr.mxu0 0.0
        %559 = vmatpush1.msra.mxu0 0.0
        %560 = vmatprep.subr.mxu0 0.0
        %561 = vmatpush1.msra.mxu0 0.0
        %562 = vmatprep.subr.mxu0 0.0
        %563 = vmatpush1.msra.mxu0 0.0
        %564 = vmatprep.subr.mxu0 0.0
        %565 = vmatpush1.msra.mxu0 0.0
        %566 = vmatprep.subr.mxu0 0.0
        %567 = vmatpush1.msra.mxu0 0.0
        %568 = vmatprep.subr.mxu0 0.0
        %569 = vmatpush1.msra.mxu0 0.0
        %570 = vmatprep.subr.mxu0 0.0
        %571 = vmatpush1.msra.mxu0 0.0
        %572 = vmatprep.subr.mxu0 0.0
        %573 = vmatpush1.msra.mxu0 0.0
        %574 = vmatprep.subr.mxu0 0.0
        %575 = vmatpush1.msra.mxu0 0.0
        %576 = vmatprep.subr.mxu0 0.0
        %577 = vmatpush1.msra.mxu0 0.0
        %578 = vmatprep.mubr.f32.mxu0 0.0
        %v579 = vand.u32 %v334, 4294901760
        %580 = vmatmul.mubr.f32.gmra.mrb[0].mxu0 %v579
        %v581 = vpop.f32.mrb[0].mxu0
        %v582 = vadd.f32 %v431, %v581
        %v583 = vpop.f32.mrb[0].mxu0
        %584 = vmatprep.mubr.f32.mxu0 0.0
        %v585 = vand.u32 %v337, 4294901760
        %586 = vmatmul.mubr.f32.gmra.mrb[0].mxu0 %v585
        %v587 = vpop.f32.mrb[0].mxu0
        %v588 = vadd.f32 %v441, %v587
        %v589 = vpop.f32.mrb[0].mxu0
        %590 = vmatprep.mubr.f32.mxu0 0.0
        %v591 = vand.u32 %v340, 4294901760
        %592 = vmatmul.mubr.f32.gmra.mrb[0].mxu0 %v591
        %v593 = vpop.f32.mrb[0].mxu0
        %v594 = vadd.f32 %v451, %v593
        %v595 = vpop.f32.mrb[0].mxu0
        %596 = vmatprep.mubr.f32.mxu0 0.0
        %v597 = vand.u32 %v343, 4294901760
        %598 = vmatmul.mubr.f32.gmra.mrb[0].mxu0 %v597
        %v599 = vpop.f32.mrb[0].mxu0
        %v600 = vadd.f32 %v461, %v599
        %v601 = vpop.f32.mrb[0].mxu0
        %602 = vmatprep.mubr.f32.mxu0 0.0
        %v603 = vand.u32 %v346, 4294901760
        %604 = vmatmul.mubr.f32.gmra.mrb[0].mxu0 %v603
        %v605 = vpop.f32.mrb[0].mxu0
        %v606 = vadd.f32 %v471, %v605
        %v607 = vpop.f32.mrb[0].mxu0
        %608 = vmatprep.mubr.f32.mxu0 0.0
        %v609 = vand.u32 %v349, 4294901760
        %610 = vmatmul.mubr.f32.gmra.mrb[0].mxu0 %v609
        %v611 = vpop.f32.mrb[0].mxu0
        %v612 = vadd.f32 %v481, %v611
        %v613 = vpop.f32.mrb[0].mxu0
        %614 = vmatprep.mubr.f32.mxu0 0.0
        %v615 = vand.u32 %v352, 4294901760
        %616 = vmatmul.mubr.f32.gmra.mrb[0].mxu0 %v615
        %v617 = vpop.f32.mrb[0].mxu0
        %v618 = vadd.f32 %v491, %v617
        %v619 = vpop.f32.mrb[0].mxu0
        %620 = vmatprep.mubr.f32.mxu0 0.0
        %v621 = vand.u32 %v355, 4294901760
        %622 = vmatmul.mubr.f32.gmra.mrb[0].mxu0 %v621
        %v623 = vpop.f32.mrb[0].mxu0
        %v624 = vadd.f32 %v501, %v623
        %v625 = vpop.f32.mrb[0].mxu0
        %626 = vdwg.mxu0
        %627 = vmatprep.subr.mxu0 0.0
        %v628 = vand.u32 %v330, 4294901760
        %v629 = vsub.f32 %v330, %v628
        %630 = vmatpush1.msra.mxu0 %v629
        %631 = vmatprep.subr.mxu0 0.0
        %v632 = vand.u32 %v331, 4294901760
        %v633 = vsub.f32 %v331, %v632
        %634 = vmatpush1.msra.mxu0 %v633
        %635 = vmatprep.subr.mxu0 0.0
        %636 = vmatpush1.msra.mxu0 0.0
        %637 = vmatprep.subr.mxu0 0.0
        %638 = vmatpush1.msra.mxu0 0.0
        %639 = vmatprep.subr.mxu0 0.0
        %640 = vmatpush1.msra.mxu0 0.0
        %641 = vmatprep.subr.mxu0 0.0
        %642 = vmatpush1.msra.mxu0 0.0
        %643 = vmatprep.subr.mxu0 0.0
        %644 = vmatpush1.msra.mxu0 0.0
        %645 = vmatprep.subr.mxu0 0.0
        %646 = vmatpush1.msra.mxu0 0.0
        %647 = vmatprep.subr.mxu0 0.0
        %648 = vmatpush1.msra.mxu0 0.0
        %649 = vmatprep.subr.mxu0 0.0
        %650 = vmatpush1.msra.mxu0 0.0
        %651 = vmatprep.subr.mxu0 0.0
        %652 = vmatpush1.msra.mxu0 0.0
        %653 = vmatprep.subr.mxu0 0.0
        %654 = vmatpush1.msra.mxu0 0.0
        %655 = vmatprep.subr.mxu0 0.0
        %656 = vmatpush1.msra.mxu0 0.0
        %657 = vmatprep.subr.mxu0 0.0
        %658 = vmatpush1.msra.mxu0 0.0
        %659 = vmatprep.subr.mxu0 0.0
        %660 = vmatpush1.msra.mxu0 0.0
        %661 = vmatprep.subr.mxu0 0.0
        %662 = vmatpush1.msra.mxu0 0.0
        %663 = vmatprep.subr.mxu0 0.0
        %664 = vmatpush1.msra.mxu0 0.0
        %665 = vmatprep.subr.mxu0 0.0
        %666 = vmatpush1.msra.mxu0 0.0
        %667 = vmatprep.subr.mxu0 0.0
        %668 = vmatpush1.msra.mxu0 0.0
        %669 = vmatprep.subr.mxu0 0.0
        %670 = vmatpush1.msra.mxu0 0.0
        %671 = vmatprep.subr.mxu0 0.0
        %672 = vmatpush1.msra.mxu0 0.0
        %673 = vmatprep.subr.mxu0 0.0
        %674 = vmatpush1.msra.mxu0 0.0
        %675 = vmatprep.subr.mxu0 0.0
        %676 = vmatpush1.msra.mxu0 0.0
        %677 = vmatprep.subr.mxu0 0.0
        %678 = vmatpush1.msra.mxu0 0.0
        %679 = vmatprep.subr.mxu0 0.0
        %680 = vmatpush1.msra.mxu0 0.0
        %681 = vmatprep.subr.mxu0 0.0
        %682 = vmatpush1.msra.mxu0 0.0
        %683 = vmatprep.subr.mxu0 0.0
        %684 = vmatpush1.msra.mxu0 0.0
        %685 = vmatprep.subr.mxu0 0.0
        %686 = vmatpush1.msra.mxu0 0.0
        %687 = vmatprep.subr.mxu0 0.0
        %688 = vmatpush1.msra.mxu0 0.0
        %689 = vmatprep.subr.mxu0 0.0
        %690 = vmatpush1.msra.mxu0 0.0
        %691 = vmatprep.subr.mxu0 0.0
        %692 = vmatpush1.msra.mxu0 0.0
        %693 = vmatprep.subr.mxu0 0.0
        %694 = vmatpush1.msra.mxu0 0.0
        %695 = vmatprep.mubr.f32.mxu0 0.0
        %v696 = vand.u32 %v334, 4294901760
        %v697 = vsub.f32 %v334, %v696
        %698 = vmatmul.mubr.f32.gmra.mrb[0].mxu0 %v697
        %v699 = vpop.f32.mrb[0].mxu0
        %v700 = vadd.f32 %v582, %v699
        %v701 = vpop.f32.mrb[0].mxu0
        %702 = vmatprep.mubr.f32.mxu0 0.0
        %v703 = vand.u32 %v337, 4294901760
        %v704 = vsub.f32 %v337, %v703
        %705 = vmatmul.mubr.f32.gmra.mrb[0].mxu0 %v704
        %v706 = vpop.f32.mrb[0].mxu0
        %v707 = vadd.f32 %v588, %v706
        %v708 = vpop.f32.mrb[0].mxu0
        %709 = vmatprep.mubr.f32.mxu0 0.0
        %v710 = vand.u32 %v340, 4294901760
        %v711 = vsub.f32 %v340, %v710
        %712 = vmatmul.mubr.f32.gmra.mrb[0].mxu0 %v711
        %v713 = vpop.f32.mrb[0].mxu0
        %v714 = vadd.f32 %v594, %v713
        %v715 = vpop.f32.mrb[0].mxu0
        %716 = vmatprep.mubr.f32.mxu0 0.0
        %v717 = vand.u32 %v343, 4294901760
        %v718 = vsub.f32 %v343, %v717
        %719 = vmatmul.mubr.f32.gmra.mrb[0].mxu0 %v718
        %v720 = vpop.f32.mrb[0].mxu0
        %v721 = vadd.f32 %v600, %v720
        %v722 = vpop.f32.mrb[0].mxu0
        %723 = vmatprep.mubr.f32.mxu0 0.0
        %v724 = vand.u32 %v346, 4294901760
        %v725 = vsub.f32 %v346, %v724
        %726 = vmatmul.mubr.f32.gmra.mrb[0].mxu0 %v725
        %v727 = vpop.f32.mrb[0].mxu0
        %v728 = vadd.f32 %v606, %v727
        %v729 = vpop.f32.mrb[0].mxu0
        %730 = vmatprep.mubr.f32.mxu0 0.0
        %v731 = vand.u32 %v349, 4294901760
        %v732 = vsub.f32 %v349, %v731
        %733 = vmatmul.mubr.f32.gmra.mrb[0].mxu0 %v732
        %v734 = vpop.f32.mrb[0].mxu0
        %v735 = vadd.f32 %v612, %v734
        %v736 = vpop.f32.mrb[0].mxu0
        %737 = vmatprep.mubr.f32.mxu0 0.0
        %v738 = vand.u32 %v352, 4294901760
        %v739 = vsub.f32 %v352, %v738
        %740 = vmatmul.mubr.f32.gmra.mrb[0].mxu0 %v739
        %v741 = vpop.f32.mrb[0].mxu0
        %v742 = vadd.f32 %v618, %v741
        %v743 = vpop.f32.mrb[0].mxu0
        %744 = vmatprep.mubr.f32.mxu0 0.0
        %v745 = vand.u32 %v355, 4294901760
        %v746 = vsub.f32 %v355, %v745
        %747 = vmatmul.mubr.f32.gmra.mrb[0].mxu0 %v746
        %v748 = vpop.f32.mrb[0].mxu0
        %v749 = vadd.f32 %v624, %v748
        %v750 = vpop.f32.mrb[0].mxu0
        %751 = vdwg.mxu0
        %752 = vmatprep.subr.mxu0 0.0
        %v753 = vand.u32 %v330, 4294901760
        %754 = vmatpush1.msra.mxu0 %v753
        %755 = vmatprep.subr.mxu0 0.0
        %v756 = vand.u32 %v331, 4294901760
        %757 = vmatpush1.msra.mxu0 %v756
        %758 = vmatprep.subr.mxu0 0.0
        %759 = vmatpush1.msra.mxu0 0.0
        %760 = vmatprep.subr.mxu0 0.0
        %761 = vmatpush1.msra.mxu0 0.0
        %762 = vmatprep.subr.mxu0 0.0
        %763 = vmatpush1.msra.mxu0 0.0
        %764 = vmatprep.subr.mxu0 0.0
        %765 = vmatpush1.msra.mxu0 0.0
        %766 = vmatprep.subr.mxu0 0.0
        %767 = vmatpush1.msra.mxu0 0.0
        %768 = vmatprep.subr.mxu0 0.0
        %769 = vmatpush1.msra.mxu0 0.0
        %770 = vmatprep.subr.mxu0 0.0
        %771 = vmatpush1.msra.mxu0 0.0
        %772 = vmatprep.subr.mxu0 0.0
        %773 = vmatpush1.msra.mxu0 0.0
        %774 = vmatprep.subr.mxu0 0.0
        %775 = vmatpush1.msra.mxu0 0.0
        %776 = vmatprep.subr.mxu0 0.0
        %777 = vmatpush1.msra.mxu0 0.0
        %778 = vmatprep.subr.mxu0 0.0
        %779 = vmatpush1.msra.mxu0 0.0
        %780 = vmatprep.subr.mxu0 0.0
        %781 = vmatpush1.msra.mxu0 0.0
        %782 = vmatprep.subr.mxu0 0.0
        %783 = vmatpush1.msra.mxu0 0.0
        %784 = vmatprep.subr.mxu0 0.0
        %785 = vmatpush1.msra.mxu0 0.0
        %786 = vmatprep.subr.mxu0 0.0
        %787 = vmatpush1.msra.mxu0 0.0
        %788 = vmatprep.subr.mxu0 0.0
        %789 = vmatpush1.msra.mxu0 0.0
        %790 = vmatprep.subr.mxu0 0.0
        %791 = vmatpush1.msra.mxu0 0.0
        %792 = vmatprep.subr.mxu0 0.0
        %793 = vmatpush1.msra.mxu0 0.0
        %794 = vmatprep.subr.mxu0 0.0
        %795 = vmatpush1.msra.mxu0 0.0
        %796 = vmatprep.subr.mxu0 0.0
        %797 = vmatpush1.msra.mxu0 0.0
        %798 = vmatprep.subr.mxu0 0.0
        %799 = vmatpush1.msra.mxu0 0.0
        %800 = vmatprep.subr.mxu0 0.0
        %801 = vmatpush1.msra.mxu0 0.0
        %802 = vmatprep.subr.mxu0 0.0
        %803 = vmatpush1.msra.mxu0 0.0
        %804 = vmatprep.subr.mxu0 0.0
        %805 = vmatpush1.msra.mxu0 0.0
        %806 = vmatprep.subr.mxu0 0.0
        %807 = vmatpush1.msra.mxu0 0.0
        %808 = vmatprep.subr.mxu0 0.0
        %809 = vmatpush1.msra.mxu0 0.0
        %810 = vmatprep.subr.mxu0 0.0
        %811 = vmatpush1.msra.mxu0 0.0
        %812 = vmatprep.subr.mxu0 0.0
        %813 = vmatpush1.msra.mxu0 0.0
        %814 = vmatprep.subr.mxu0 0.0
        %815 = vmatpush1.msra.mxu0 0.0
        %816 = vmatprep.subr.mxu0 0.0
        %817 = vmatpush1.msra.mxu0 0.0
        %818 = vmatprep.mubr.f32.mxu0 0.0
        %v819 = vand.u32 %v334, 4294901760
        %v820 = vsub.f32 %v334, %v819
        %v821 = vand.u32 %v820, 4294901760
        %822 = vmatmul.mubr.f32.gmra.mrb[0].mxu0 %v821
        %v823 = vpop.f32.mrb[0].mxu0
        %v824 = vadd.f32 %v700, %v823
        %v825 = vpop.f32.mrb[0].mxu0
        %826 = vmatprep.mubr.f32.mxu0 0.0
        %v827 = vand.u32 %v337, 4294901760
        %v828 = vsub.f32 %v337, %v827
        %v829 = vand.u32 %v828, 4294901760
        %830 = vmatmul.mubr.f32.gmra.mrb[0].mxu0 %v829
        %v831 = vpop.f32.mrb[0].mxu0
        %v832 = vadd.f32 %v707, %v831
        %v833 = vpop.f32.mrb[0].mxu0
        %834 = vmatprep.mubr.f32.mxu0 0.0
        %v835 = vand.u32 %v340, 4294901760
        %v836 = vsub.f32 %v340, %v835
        %v837 = vand.u32 %v836, 4294901760
        %838 = vmatmul.mubr.f32.gmra.mrb[0].mxu0 %v837
        %v839 = vpop.f32.mrb[0].mxu0
        %v840 = vadd.f32 %v714, %v839
        %v841 = vpop.f32.mrb[0].mxu0
        %842 = vmatprep.mubr.f32.mxu0 0.0
        %v843 = vand.u32 %v343, 4294901760
        %v844 = vsub.f32 %v343, %v843
        %v845 = vand.u32 %v844, 4294901760
        %846 = vmatmul.mubr.f32.gmra.mrb[0].mxu0 %v845
        %v847 = vpop.f32.mrb[0].mxu0
        %v848 = vadd.f32 %v721, %v847
        %v849 = vpop.f32.mrb[0].mxu0
        %850 = vmatprep.mubr.f32.mxu0 0.0
        %v851 = vand.u32 %v346, 4294901760
        %v852 = vsub.f32 %v346, %v851
        %v853 = vand.u32 %v852, 4294901760
        %854 = vmatmul.mubr.f32.gmra.mrb[0].mxu0 %v853
        %v855 = vpop.f32.mrb[0].mxu0
        %v856 = vadd.f32 %v728, %v855
        %v857 = vpop.f32.mrb[0].mxu0
        %858 = vmatprep.mubr.f32.mxu0 0.0
        %v859 = vand.u32 %v349, 4294901760
        %v860 = vsub.f32 %v349, %v859
        %v861 = vand.u32 %v860, 4294901760
        %862 = vmatmul.mubr.f32.gmra.mrb[0].mxu0 %v861
        %v863 = vpop.f32.mrb[0].mxu0
        %v864 = vadd.f32 %v735, %v863
        %v865 = vpop.f32.mrb[0].mxu0
        %866 = vmatprep.mubr.f32.mxu0 0.0
        %v867 = vand.u32 %v352, 4294901760
        %v868 = vsub.f32 %v352, %v867
        %v869 = vand.u32 %v868, 4294901760
        %870 = vmatmul.mubr.f32.gmra.mrb[0].mxu0 %v869
        %v871 = vpop.f32.mrb[0].mxu0
        %v872 = vadd.f32 %v742, %v871
        %v873 = vpop.f32.mrb[0].mxu0
        %874 = vmatprep.mubr.f32.mxu0 0.0
        %v875 = vand.u32 %v355, 4294901760
        %v876 = vsub.f32 %v355, %v875
        %v877 = vand.u32 %v876, 4294901760
        %878 = vmatmul.mubr.f32.gmra.mrb[0].mxu0 %v877
        %v879 = vpop.f32.mrb[0].mxu0
        %v880 = vadd.f32 %v749, %v879
        %v881 = vpop.f32.mrb[0].mxu0
        %882 = vdwg.mxu0
        %883 = vmatprep.subr.mxu0 0.0
        %v884 = vand.u32 %v330, 4294901760
        %v885 = vsub.f32 %v330, %v884
        %v886 = vand.u32 %v885, 4294901760
        %887 = vmatpush1.msra.mxu0 %v886
        %888 = vmatprep.subr.mxu0 0.0
        %v889 = vand.u32 %v331, 4294901760
        %v890 = vsub.f32 %v331, %v889
        %v891 = vand.u32 %v890, 4294901760
        %892 = vmatpush1.msra.mxu0 %v891
        %893 = vmatprep.subr.mxu0 0.0
        %894 = vmatpush1.msra.mxu0 0.0
        %895 = vmatprep.subr.mxu0 0.0
        %896 = vmatpush1.msra.mxu0 0.0
        %897 = vmatprep.subr.mxu0 0.0
        %898 = vmatpush1.msra.mxu0 0.0
        %899 = vmatprep.subr.mxu0 0.0
        %900 = vmatpush1.msra.mxu0 0.0
        %901 = vmatprep.subr.mxu0 0.0
        %902 = vmatpush1.msra.mxu0 0.0
        %903 = vmatprep.subr.mxu0 0.0
        %904 = vmatpush1.msra.mxu0 0.0
        %905 = vmatprep.subr.mxu0 0.0
        %906 = vmatpush1.msra.mxu0 0.0
        %907 = vmatprep.subr.mxu0 0.0
        %908 = vmatpush1.msra.mxu0 0.0
        %909 = vmatprep.subr.mxu0 0.0
        %910 = vmatpush1.msra.mxu0 0.0
        %911 = vmatprep.subr.mxu0 0.0
        %912 = vmatpush1.msra.mxu0 0.0
        %913 = vmatprep.subr.mxu0 0.0
        %914 = vmatpush1.msra.mxu0 0.0
        %915 = vmatprep.subr.mxu0 0.0
        %916 = vmatpush1.msra.mxu0 0.0
        %917 = vmatprep.subr.mxu0 0.0
        %918 = vmatpush1.msra.mxu0 0.0
        %919 = vmatprep.subr.mxu0 0.0
        %920 = vmatpush1.msra.mxu0 0.0
        %921 = vmatprep.subr.mxu0 0.0
        %922 = vmatpush1.msra.mxu0 0.0
        %923 = vmatprep.subr.mxu0 0.0
        %924 = vmatpush1.msra.mxu0 0.0
        %925 = vmatprep.subr.mxu0 0.0
        %926 = vmatpush1.msra.mxu0 0.0
        %927 = vmatprep.subr.mxu0 0.0
        %928 = vmatpush1.msra.mxu0 0.0
        %929 = vmatprep.subr.mxu0 0.0
        %930 = vmatpush1.msra.mxu0 0.0
        %931 = vmatprep.subr.mxu0 0.0
        %932 = vmatpush1.msra.mxu0 0.0
        %933 = vmatprep.subr.mxu0 0.0
        %934 = vmatpush1.msra.mxu0 0.0
        %935 = vmatprep.subr.mxu0 0.0
        %936 = vmatpush1.msra.mxu0 0.0
        %937 = vmatprep.subr.mxu0 0.0
        %938 = vmatpush1.msra.mxu0 0.0
        %939 = vmatprep.subr.mxu0 0.0
        %940 = vmatpush1.msra.mxu0 0.0
        %941 = vmatprep.subr.mxu0 0.0
        %942 = vmatpush1.msra.mxu0 0.0
        %943 = vmatprep.subr.mxu0 0.0
        %944 = vmatpush1.msra.mxu0 0.0
        %945 = vmatprep.subr.mxu0 0.0
        %946 = vmatpush1.msra.mxu0 0.0
        %947 = vmatprep.subr.mxu0 0.0
        %948 = vmatpush1.msra.mxu0 0.0
        %949 = vmatprep.subr.mxu0 0.0
        %950 = vmatpush1.msra.mxu0 0.0
        %951 = vmatprep.subr.mxu0 0.0
        %952 = vmatpush1.msra.mxu0 0.0
        %953 = vmatprep.mubr.f32.mxu0 0.0
        %v954 = vand.u32 %v334, 4294901760
        %955 = vmatmul.mubr.f32.gmra.mrb[0].mxu0 %v954
        %v956 = vpop.f32.mrb[0].mxu0
        %v957 = vadd.f32 %v824, %v956
        %v958 = vpop.f32.mrb[0].mxu0
        %959 = vmatprep.mubr.f32.mxu0 0.0
        %v960 = vand.u32 %v337, 4294901760
        %961 = vmatmul.mubr.f32.gmra.mrb[0].mxu0 %v960
        %v962 = vpop.f32.mrb[0].mxu0
        %v963 = vadd.f32 %v832, %v962
        %v964 = vpop.f32.mrb[0].mxu0
        %965 = vmatprep.mubr.f32.mxu0 0.0
        %v966 = vand.u32 %v340, 4294901760
        %967 = vmatmul.mubr.f32.gmra.mrb[0].mxu0 %v966
        %v968 = vpop.f32.mrb[0].mxu0
        %v969 = vadd.f32 %v840, %v968
        %v970 = vpop.f32.mrb[0].mxu0
        %971 = vmatprep.mubr.f32.mxu0 0.0
        %v972 = vand.u32 %v343, 4294901760
        %973 = vmatmul.mubr.f32.gmra.mrb[0].mxu0 %v972
        %v974 = vpop.f32.mrb[0].mxu0
        %v975 = vadd.f32 %v848, %v974
        %v976 = vpop.f32.mrb[0].mxu0
        %977 = vmatprep.mubr.f32.mxu0 0.0
        %v978 = vand.u32 %v346, 4294901760
        %979 = vmatmul.mubr.f32.gmra.mrb[0].mxu0 %v978
        %v980 = vpop.f32.mrb[0].mxu0
        %v981 = vadd.f32 %v856, %v980
        %v982 = vpop.f32.mrb[0].mxu0
        %983 = vmatprep.mubr.f32.mxu0 0.0
        %v984 = vand.u32 %v349, 4294901760
        %985 = vmatmul.mubr.f32.gmra.mrb[0].mxu0 %v984
        %v986 = vpop.f32.mrb[0].mxu0
        %v987 = vadd.f32 %v864, %v986
        %v988 = vpop.f32.mrb[0].mxu0
        %989 = vmatprep.mubr.f32.mxu0 0.0
        %v990 = vand.u32 %v352, 4294901760
        %991 = vmatmul.mubr.f32.gmra.mrb[0].mxu0 %v990
        %v992 = vpop.f32.mrb[0].mxu0
        %v993 = vadd.f32 %v872, %v992
        %v994 = vpop.f32.mrb[0].mxu0
        %995 = vmatprep.mubr.f32.mxu0 0.0
        %v996 = vand.u32 %v355, 4294901760
        %997 = vmatmul.mubr.f32.gmra.mrb[0].mxu0 %v996
        %v998 = vpop.f32.mrb[0].mxu0
        %v999 = vadd.f32 %v880, %v998
        %v1000 = vpop.f32.mrb[0].mxu0
        %1001 = vdwg.mxu0
        %1002 = vmatprep.subr.mxu0 0.0
        %v1003 = vand.u32 %v330, 4294901760
        %1004 = vmatpush1.msra.mxu0 %v1003
        %1005 = vmatprep.subr.mxu0 0.0
        %v1006 = vand.u32 %v331, 4294901760
        %1007 = vmatpush1.msra.mxu0 %v1006
        %1008 = vmatprep.subr.mxu0 0.0
        %1009 = vmatpush1.msra.mxu0 0.0
        %1010 = vmatprep.subr.mxu0 0.0
        %1011 = vmatpush1.msra.mxu0 0.0
        %1012 = vmatprep.subr.mxu0 0.0
        %1013 = vmatpush1.msra.mxu0 0.0
        %1014 = vmatprep.subr.mxu0 0.0
        %1015 = vmatpush1.msra.mxu0 0.0
        %1016 = vmatprep.subr.mxu0 0.0
        %1017 = vmatpush1.msra.mxu0 0.0
        %1018 = vmatprep.subr.mxu0 0.0
        %1019 = vmatpush1.msra.mxu0 0.0
        %1020 = vmatprep.subr.mxu0 0.0
        %1021 = vmatpush1.msra.mxu0 0.0
        %1022 = vmatprep.subr.mxu0 0.0
        %1023 = vmatpush1.msra.mxu0 0.0
        %1024 = vmatprep.subr.mxu0 0.0
        %1025 = vmatpush1.msra.mxu0 0.0
        %1026 = vmatprep.subr.mxu0 0.0
        %1027 = vmatpush1.msra.mxu0 0.0
        %1028 = vmatprep.subr.mxu0 0.0
        %1029 = vmatpush1.msra.mxu0 0.0
        %1030 = vmatprep.subr.mxu0 0.0
        %1031 = vmatpush1.msra.mxu0 0.0
        %1032 = vmatprep.subr.mxu0 0.0
        %1033 = vmatpush1.msra.mxu0 0.0
        %1034 = vmatprep.subr.mxu0 0.0
        %1035 = vmatpush1.msra.mxu0 0.0
        %1036 = vmatprep.subr.mxu0 0.0
        %1037 = vmatpush1.msra.mxu0 0.0
        %1038 = vmatprep.subr.mxu0 0.0
        %1039 = vmatpush1.msra.mxu0 0.0
        %1040 = vmatprep.subr.mxu0 0.0
        %1041 = vmatpush1.msra.mxu0 0.0
        %1042 = vmatprep.subr.mxu0 0.0
        %1043 = vmatpush1.msra.mxu0 0.0
        %1044 = vmatprep.subr.mxu0 0.0
        %1045 = vmatpush1.msra.mxu0 0.0
        %1046 = vmatprep.subr.mxu0 0.0
        %1047 = vmatpush1.msra.mxu0 0.0
        %1048 = vmatprep.subr.mxu0 0.0
        %1049 = vmatpush1.msra.mxu0 0.0
        %1050 = vmatprep.subr.mxu0 0.0
        %1051 = vmatpush1.msra.mxu0 0.0
        %1052 = vmatprep.subr.mxu0 0.0
        %1053 = vmatpush1.msra.mxu0 0.0
        %1054 = vmatprep.subr.mxu0 0.0
        %1055 = vmatpush1.msra.mxu0 0.0
        %1056 = vmatprep.subr.mxu0 0.0
        %1057 = vmatpush1.msra.mxu0 0.0
        %1058 = vmatprep.subr.mxu0 0.0
        %1059 = vmatpush1.msra.mxu0 0.0
        %1060 = vmatprep.subr.mxu0 0.0
        %1061 = vmatpush1.msra.mxu0 0.0
        %1062 = vmatprep.subr.mxu0 0.0
        %1063 = vmatpush1.msra.mxu0 0.0
        %1064 = vmatprep.subr.mxu0 0.0
        %1065 = vmatpush1.msra.mxu0 0.0
        %1066 = vmatprep.subr.mxu0 0.0
        %1067 = vmatpush1.msra.mxu0 0.0
        %1068 = vmatprep.mubr.f32.mxu0 0.0
        %v1069 = vand.u32 %v334, 4294901760
        %1070 = vmatmul.mubr.f32.gmra.mrb[0].mxu0 %v1069
        %v1071 = vpop.f32.mrb[0].mxu0
        %v1072 = vadd.f32 %v957, %v1071
        %v1073 = vpop.f32.mrb[0].mxu0
        %1074 = vmatprep.mubr.f32.mxu0 0.0
        %v1075 = vand.u32 %v337, 4294901760
        %1076 = vmatmul.mubr.f32.gmra.mrb[0].mxu0 %v1075
        %v1077 = vpop.f32.mrb[0].mxu0
        %v1078 = vadd.f32 %v963, %v1077
        %v1079 = vpop.f32.mrb[0].mxu0
        %1080 = vmatprep.mubr.f32.mxu0 0.0
        %v1081 = vand.u32 %v340, 4294901760
        %1082 = vmatmul.mubr.f32.gmra.mrb[0].mxu0 %v1081
        %v1083 = vpop.f32.mrb[0].mxu0
        %v1084 = vadd.f32 %v969, %v1083
        %v1085 = vpop.f32.mrb[0].mxu0
        %1086 = vmatprep.mubr.f32.mxu0 0.0
        %v1087 = vand.u32 %v343, 4294901760
        %1088 = vmatmul.mubr.f32.gmra.mrb[0].mxu0 %v1087
        %v1089 = vpop.f32.mrb[0].mxu0
        %v1090 = vadd.f32 %v975, %v1089
        %v1091 = vpop.f32.mrb[0].mxu0
        %1092 = vmatprep.mubr.f32.mxu0 0.0
        %v1093 = vand.u32 %v346, 4294901760
        %1094 = vmatmul.mubr.f32.gmra.mrb[0].mxu0 %v1093
        %v1095 = vpop.f32.mrb[0].mxu0
        %v1096 = vadd.f32 %v981, %v1095
        %v1097 = vpop.f32.mrb[0].mxu0
        %1098 = vmatprep.mubr.f32.mxu0 0.0
        %v1099 = vand.u32 %v349, 4294901760
        %1100 = vmatmul.mubr.f32.gmra.mrb[0].mxu0 %v1099
        %v1101 = vpop.f32.mrb[0].mxu0
        %v1102 = vadd.f32 %v987, %v1101
        %v1103 = vpop.f32.mrb[0].mxu0
        %1104 = vmatprep.mubr.f32.mxu0 0.0
        %v1105 = vand.u32 %v352, 4294901760
        %1106 = vmatmul.mubr.f32.gmra.mrb[0].mxu0 %v1105
        %v1107 = vpop.f32.mrb[0].mxu0
        %v1108 = vadd.f32 %v993, %v1107
        %v1109 = vpop.f32.mrb[0].mxu0
        %1110 = vmatprep.mubr.f32.mxu0 0.0
        %v1111 = vand.u32 %v355, 4294901760
        %1112 = vmatmul.mubr.f32.gmra.mrb[0].mxu0 %v1111
        %v1113 = vpop.f32.mrb[0].mxu0
        %v1114 = vadd.f32 %v999, %v1113
        %v1115 = vpop.f32.mrb[0].mxu0
        %1116 = vdwg.mxu0
        %v1117 = vld [vmem:[#allocation10] sm:$0xff]
        %v1118 = vld [vmem:[#allocation10 + $0x8] sm:$0xff]
        %1119 = vmatprep.subr.mxu0 0.0
        %v1120 = vand.u32 %v1117, 4294901760
        %1121 = vmatpush1.msra.mxu0 %v1120
        %1122 = vmatprep.subr.mxu0 0.0
        %v1123 = vand.u32 %v1118, 4294901760
        %1124 = vmatpush1.msra.mxu0 %v1123
        %1125 = vmatprep.subr.mxu0 0.0
        %1126 = vmatpush1.msra.mxu0 0.0
        %1127 = vmatprep.subr.mxu0 0.0
        %1128 = vmatpush1.msra.mxu0 0.0
        %1129 = vmatprep.subr.mxu0 0.0
        %1130 = vmatpush1.msra.mxu0 0.0
        %1131 = vmatprep.subr.mxu0 0.0
        %1132 = vmatpush1.msra.mxu0 0.0
        %1133 = vmatprep.subr.mxu0 0.0
        %1134 = vmatpush1.msra.mxu0 0.0
        %1135 = vmatprep.subr.mxu0 0.0
        %1136 = vmatpush1.msra.mxu0 0.0
        %1137 = vmatprep.subr.mxu0 0.0
        %1138 = vmatpush1.msra.mxu0 0.0
        %1139 = vmatprep.subr.mxu0 0.0
        %1140 = vmatpush1.msra.mxu0 0.0
        %1141 = vmatprep.subr.mxu0 0.0
        %1142 = vmatpush1.msra.mxu0 0.0
        %1143 = vmatprep.subr.mxu0 0.0
        %1144 = vmatpush1.msra.mxu0 0.0
        %1145 = vmatprep.subr.mxu0 0.0
        %1146 = vmatpush1.msra.mxu0 0.0
        %1147 = vmatprep.subr.mxu0 0.0
        %1148 = vmatpush1.msra.mxu0 0.0
        %1149 = vmatprep.subr.mxu0 0.0
        %1150 = vmatpush1.msra.mxu0 0.0
        %1151 = vmatprep.subr.mxu0 0.0
        %1152 = vmatpush1.msra.mxu0 0.0
        %1153 = vmatprep.subr.mxu0 0.0
        %1154 = vmatpush1.msra.mxu0 0.0
        %1155 = vmatprep.subr.mxu0 0.0
        %1156 = vmatpush1.msra.mxu0 0.0
        %1157 = vmatprep.subr.mxu0 0.0
        %1158 = vmatpush1.msra.mxu0 0.0
        %1159 = vmatprep.subr.mxu0 0.0
        %1160 = vmatpush1.msra.mxu0 0.0
        %1161 = vmatprep.subr.mxu0 0.0
        %1162 = vmatpush1.msra.mxu0 0.0
        %1163 = vmatprep.subr.mxu0 0.0
        %1164 = vmatpush1.msra.mxu0 0.0
        %1165 = vmatprep.subr.mxu0 0.0
        %1166 = vmatpush1.msra.mxu0 0.0
        %1167 = vmatprep.subr.mxu0 0.0
        %1168 = vmatpush1.msra.mxu0 0.0
        %1169 = vmatprep.subr.mxu0 0.0
        %1170 = vmatpush1.msra.mxu0 0.0
        %1171 = vmatprep.subr.mxu0 0.0
        %1172 = vmatpush1.msra.mxu0 0.0
        %1173 = vmatprep.subr.mxu0 0.0
        %1174 = vmatpush1.msra.mxu0 0.0
        %1175 = vmatprep.subr.mxu0 0.0
        %1176 = vmatpush1.msra.mxu0 0.0
        %1177 = vmatprep.subr.mxu0 0.0
        %1178 = vmatpush1.msra.mxu0 0.0
        %1179 = vmatprep.subr.mxu0 0.0
        %1180 = vmatpush1.msra.mxu0 0.0
        %1181 = vmatprep.subr.mxu0 0.0
        %1182 = vmatpush1.msra.mxu0 0.0
        %1183 = vmatprep.subr.mxu0 0.0
        %1184 = vmatpush1.msra.mxu0 0.0
        %1185 = vmatprep.mubr.f32.mxu0 0.0
        %v1186 = vand.u32 %v334, 4294901760
        %v1187 = vsub.f32 %v334, %v1186
        %v1188 = vand.u32 %v1187, 4294901760
        %v1189 = vsub.f32 %v1187, %v1188
        %v1190 = vand.u32 %v1189, 4294901760
        %1191 = vmatmul.mubr.f32.gmra.mrb[0].mxu0 %v1190
        %v1192 = vpop.f32.mrb[0].mxu0
        %v1193 = vadd.f32 0.0, %v1192
        %v1194 = vpop.f32.mrb[0].mxu0
        %1195 = vmatprep.mubr.f32.mxu0 0.0
        %v1196 = vand.u32 %v337, 4294901760
        %v1197 = vsub.f32 %v337, %v1196
        %v1198 = vand.u32 %v1197, 4294901760
        %v1199 = vsub.f32 %v1197, %v1198
        %v1200 = vand.u32 %v1199, 4294901760
        %1201 = vmatmul.mubr.f32.gmra.mrb[0].mxu0 %v1200
        %v1202 = vpop.f32.mrb[0].mxu0
        %v1203 = vadd.f32 0.0, %v1202
        %v1204 = vpop.f32.mrb[0].mxu0
        %1205 = vmatprep.mubr.f32.mxu0 0.0
        %v1206 = vand.u32 %v340, 4294901760
        %v1207 = vsub.f32 %v340, %v1206
        %v1208 = vand.u32 %v1207, 4294901760
        %v1209 = vsub.f32 %v1207, %v1208
        %v1210 = vand.u32 %v1209, 4294901760
        %1211 = vmatmul.mubr.f32.gmra.mrb[0].mxu0 %v1210
        %v1212 = vpop.f32.mrb[0].mxu0
        %v1213 = vadd.f32 0.0, %v1212
        %v1214 = vpop.f32.mrb[0].mxu0
        %1215 = vmatprep.mubr.f32.mxu0 0.0
        %v1216 = vand.u32 %v343, 4294901760
        %v1217 = vsub.f32 %v343, %v1216
        %v1218 = vand.u32 %v1217, 4294901760
        %v1219 = vsub.f32 %v1217, %v1218
        %v1220 = vand.u32 %v1219, 4294901760
        %1221 = vmatmul.mubr.f32.gmra.mrb[0].mxu0 %v1220
        %v1222 = vpop.f32.mrb[0].mxu0
        %v1223 = vadd.f32 0.0, %v1222
        %v1224 = vpop.f32.mrb[0].mxu0
        %1225 = vmatprep.mubr.f32.mxu0 0.0
        %v1226 = vand.u32 %v346, 4294901760
        %v1227 = vsub.f32 %v346, %v1226
        %v1228 = vand.u32 %v1227, 4294901760
        %v1229 = vsub.f32 %v1227, %v1228
        %v1230 = vand.u32 %v1229, 4294901760
        %1231 = vmatmul.mubr.f32.gmra.mrb[0].mxu0 %v1230
        %v1232 = vpop.f32.mrb[0].mxu0
        %v1233 = vadd.f32 0.0, %v1232
        %v1234 = vpop.f32.mrb[0].mxu0
        %1235 = vmatprep.mubr.f32.mxu0 0.0
        %v1236 = vand.u32 %v349, 4294901760
        %v1237 = vsub.f32 %v349, %v1236
        %v1238 = vand.u32 %v1237, 4294901760
        %v1239 = vsub.f32 %v1237, %v1238
        %v1240 = vand.u32 %v1239, 4294901760
        %1241 = vmatmul.mubr.f32.gmra.mrb[0].mxu0 %v1240
        %v1242 = vpop.f32.mrb[0].mxu0
        %v1243 = vadd.f32 0.0, %v1242
        %v1244 = vpop.f32.mrb[0].mxu0
        %1245 = vmatprep.mubr.f32.mxu0 0.0
        %v1246 = vand.u32 %v352, 4294901760
        %v1247 = vsub.f32 %v352, %v1246
        %v1248 = vand.u32 %v1247, 4294901760
        %v1249 = vsub.f32 %v1247, %v1248
        %v1250 = vand.u32 %v1249, 4294901760
        %1251 = vmatmul.mubr.f32.gmra.mrb[0].mxu0 %v1250
        %v1252 = vpop.f32.mrb[0].mxu0
        %v1253 = vadd.f32 0.0, %v1252
        %v1254 = vpop.f32.mrb[0].mxu0
        %1255 = vmatprep.mubr.f32.mxu0 0.0
        %v1256 = vand.u32 %v355, 4294901760
        %v1257 = vsub.f32 %v355, %v1256
        %v1258 = vand.u32 %v1257, 4294901760
        %v1259 = vsub.f32 %v1257, %v1258
        %v1260 = vand.u32 %v1259, 4294901760
        %1261 = vmatmul.mubr.f32.gmra.mrb[0].mxu0 %v1260
        %v1262 = vpop.f32.mrb[0].mxu0
        %v1263 = vadd.f32 0.0, %v1262
        %v1264 = vpop.f32.mrb[0].mxu0
        %1265 = vdwg.mxu0
        %1266 = vmatprep.subr.mxu0 0.0
        %v1267 = vand.u32 %v1117, 4294901760
        %v1268 = vsub.f32 %v1117, %v1267
        %v1269 = vand.u32 %v1268, 4294901760
        %v1270 = vsub.f32 %v1268, %v1269
        %v1271 = vand.u32 %v1270, 4294901760
        %1272 = vmatpush1.msra.mxu0 %v1271
        %1273 = vmatprep.subr.mxu0 0.0
        %v1274 = vand.u32 %v1118, 4294901760
        %v1275 = vsub.f32 %v1118, %v1274
        %v1276 = vand.u32 %v1275, 4294901760
        %v1277 = vsub.f32 %v1275, %v1276
        %v1278 = vand.u32 %v1277, 4294901760
        %1279 = vmatpush1.msra.mxu0 %v1278
        %1280 = vmatprep.subr.mxu0 0.0
        %1281 = vmatpush1.msra.mxu0 0.0
        %1282 = vmatprep.subr.mxu0 0.0
        %1283 = vmatpush1.msra.mxu0 0.0
        %1284 = vmatprep.subr.mxu0 0.0
        %1285 = vmatpush1.msra.mxu0 0.0
        %1286 = vmatprep.subr.mxu0 0.0
        %1287 = vmatpush1.msra.mxu0 0.0
        %1288 = vmatprep.subr.mxu0 0.0
        %1289 = vmatpush1.msra.mxu0 0.0
        %1290 = vmatprep.subr.mxu0 0.0
        %1291 = vmatpush1.msra.mxu0 0.0
        %1292 = vmatprep.subr.mxu0 0.0
        %1293 = vmatpush1.msra.mxu0 0.0
        %1294 = vmatprep.subr.mxu0 0.0
        %1295 = vmatpush1.msra.mxu0 0.0
        %1296 = vmatprep.subr.mxu0 0.0
        %1297 = vmatpush1.msra.mxu0 0.0
        %1298 = vmatprep.subr.mxu0 0.0
        %1299 = vmatpush1.msra.mxu0 0.0
        %1300 = vmatprep.subr.mxu0 0.0
        %1301 = vmatpush1.msra.mxu0 0.0
        %1302 = vmatprep.subr.mxu0 0.0
        %1303 = vmatpush1.msra.mxu0 0.0
        %1304 = vmatprep.subr.mxu0 0.0
        %1305 = vmatpush1.msra.mxu0 0.0
        %1306 = vmatprep.subr.mxu0 0.0
        %1307 = vmatpush1.msra.mxu0 0.0
        %1308 = vmatprep.subr.mxu0 0.0
        %1309 = vmatpush1.msra.mxu0 0.0
        %1310 = vmatprep.subr.mxu0 0.0
        %1311 = vmatpush1.msra.mxu0 0.0
        %1312 = vmatprep.subr.mxu0 0.0
        %1313 = vmatpush1.msra.mxu0 0.0
        %1314 = vmatprep.subr.mxu0 0.0
        %1315 = vmatpush1.msra.mxu0 0.0
        %1316 = vmatprep.subr.mxu0 0.0
        %1317 = vmatpush1.msra.mxu0 0.0
        %1318 = vmatprep.subr.mxu0 0.0
        %1319 = vmatpush1.msra.mxu0 0.0
        %1320 = vmatprep.subr.mxu0 0.0
        %1321 = vmatpush1.msra.mxu0 0.0
        %1322 = vmatprep.subr.mxu0 0.0
        %1323 = vmatpush1.msra.mxu0 0.0
        %1324 = vmatprep.subr.mxu0 0.0
        %1325 = vmatpush1.msra.mxu0 0.0
        %1326 = vmatprep.subr.mxu0 0.0
        %1327 = vmatpush1.msra.mxu0 0.0
        %1328 = vmatprep.subr.mxu0 0.0
        %1329 = vmatpush1.msra.mxu0 0.0
        %1330 = vmatprep.subr.mxu0 0.0
        %1331 = vmatpush1.msra.mxu0 0.0
        %1332 = vmatprep.subr.mxu0 0.0
        %1333 = vmatpush1.msra.mxu0 0.0
        %1334 = vmatprep.subr.mxu0 0.0
        %1335 = vmatpush1.msra.mxu0 0.0
        %1336 = vmatprep.subr.mxu0 0.0
        %1337 = vmatpush1.msra.mxu0 0.0
        %1338 = vmatprep.subr.mxu0 0.0
        %1339 = vmatpush1.msra.mxu0 0.0
        %1340 = vmatprep.mubr.f32.mxu0 0.0
        %v1341 = vand.u32 %v334, 4294901760
        %1342 = vmatmul.mubr.f32.gmra.mrb[0].mxu0 %v1341
        %v1343 = vpop.f32.mrb[0].mxu0
        %v1344 = vadd.f32 %v1193, %v1343
        %v1345 = vpop.f32.mrb[0].mxu0
        %1346 = vmatprep.mubr.f32.mxu0 0.0
        %v1347 = vand.u32 %v337, 4294901760
        %1348 = vmatmul.mubr.f32.gmra.mrb[0].mxu0 %v1347
        %v1349 = vpop.f32.mrb[0].mxu0
        %v1350 = vadd.f32 %v1203, %v1349
        %v1351 = vpop.f32.mrb[0].mxu0
        %1352 = vmatprep.mubr.f32.mxu0 0.0
        %v1353 = vand.u32 %v340, 4294901760
        %1354 = vmatmul.mubr.f32.gmra.mrb[0].mxu0 %v1353
        %v1355 = vpop.f32.mrb[0].mxu0
        %v1356 = vadd.f32 %v1213, %v1355
        %v1357 = vpop.f32.mrb[0].mxu0
        %1358 = vmatprep.mubr.f32.mxu0 0.0
        %v1359 = vand.u32 %v343, 4294901760
        %1360 = vmatmul.mubr.f32.gmra.mrb[0].mxu0 %v1359
        %v1361 = vpop.f32.mrb[0].mxu0
        %v1362 = vadd.f32 %v1223, %v1361
        %v1363 = vpop.f32.mrb[0].mxu0
        %1364 = vmatprep.mubr.f32.mxu0 0.0
        %v1365 = vand.u32 %v346, 4294901760
        %1366 = vmatmul.mubr.f32.gmra.mrb[0].mxu0 %v1365
        %v1367 = vpop.f32.mrb[0].mxu0
        %v1368 = vadd.f32 %v1233, %v1367
        %v1369 = vpop.f32.mrb[0].mxu0
        %1370 = vmatprep.mubr.f32.mxu0 0.0
        %v1371 = vand.u32 %v349, 4294901760
        %1372 = vmatmul.mubr.f32.gmra.mrb[0].mxu0 %v1371
        %v1373 = vpop.f32.mrb[0].mxu0
        %v1374 = vadd.f32 %v1243, %v1373
        %v1375 = vpop.f32.mrb[0].mxu0
        %1376 = vmatprep.mubr.f32.mxu0 0.0
        %v1377 = vand.u32 %v352, 4294901760
        %1378 = vmatmul.mubr.f32.gmra.mrb[0].mxu0 %v1377
        %v1379 = vpop.f32.mrb[0].mxu0
        %v1380 = vadd.f32 %v1253, %v1379
        %v1381 = vpop.f32.mrb[0].mxu0
        %1382 = vmatprep.mubr.f32.mxu0 0.0
        %v1383 = vand.u32 %v355, 4294901760
        %1384 = vmatmul.mubr.f32.gmra.mrb[0].mxu0 %v1383
        %v1385 = vpop.f32.mrb[0].mxu0
        %v1386 = vadd.f32 %v1263, %v1385
        %v1387 = vpop.f32.mrb[0].mxu0
        %1388 = vdwg.mxu0
        %1389 = vmatprep.subr.mxu0 0.0
        %v1390 = vand.u32 %v1117, 4294901760
        %v1391 = vsub.f32 %v1117, %v1390
        %1392 = vmatpush1.msra.mxu0 %v1391
        %1393 = vmatprep.subr.mxu0 0.0
        %v1394 = vand.u32 %v1118, 4294901760
        %v1395 = vsub.f32 %v1118, %v1394
        %1396 = vmatpush1.msra.mxu0 %v1395
        %1397 = vmatprep.subr.mxu0 0.0
        %1398 = vmatpush1.msra.mxu0 0.0
        %1399 = vmatprep.subr.mxu0 0.0
        %1400 = vmatpush1.msra.mxu0 0.0
        %1401 = vmatprep.subr.mxu0 0.0
        %1402 = vmatpush1.msra.mxu0 0.0
        %1403 = vmatprep.subr.mxu0 0.0
        %1404 = vmatpush1.msra.mxu0 0.0
        %1405 = vmatprep.subr.mxu0 0.0
        %1406 = vmatpush1.msra.mxu0 0.0
        %1407 = vmatprep.subr.mxu0 0.0
        %1408 = vmatpush1.msra.mxu0 0.0
        %1409 = vmatprep.subr.mxu0 0.0
        %1410 = vmatpush1.msra.mxu0 0.0
        %1411 = vmatprep.subr.mxu0 0.0
        %1412 = vmatpush1.msra.mxu0 0.0
        %1413 = vmatprep.subr.mxu0 0.0
        %1414 = vmatpush1.msra.mxu0 0.0
        %1415 = vmatprep.subr.mxu0 0.0
        %1416 = vmatpush1.msra.mxu0 0.0
        %1417 = vmatprep.subr.mxu0 0.0
        %1418 = vmatpush1.msra.mxu0 0.0
        %1419 = vmatprep.subr.mxu0 0.0
        %1420 = vmatpush1.msra.mxu0 0.0
        %1421 = vmatprep.subr.mxu0 0.0
        %1422 = vmatpush1.msra.mxu0 0.0
        %1423 = vmatprep.subr.mxu0 0.0
        %1424 = vmatpush1.msra.mxu0 0.0
        %1425 = vmatprep.subr.mxu0 0.0
        %1426 = vmatpush1.msra.mxu0 0.0
        %1427 = vmatprep.subr.mxu0 0.0
        %1428 = vmatpush1.msra.mxu0 0.0
        %1429 = vmatprep.subr.mxu0 0.0
        %1430 = vmatpush1.msra.mxu0 0.0
        %1431 = vmatprep.subr.mxu0 0.0
        %1432 = vmatpush1.msra.mxu0 0.0
        %1433 = vmatprep.subr.mxu0 0.0
        %1434 = vmatpush1.msra.mxu0 0.0
        %1435 = vmatprep.subr.mxu0 0.0
        %1436 = vmatpush1.msra.mxu0 0.0
        %1437 = vmatprep.subr.mxu0 0.0
        %1438 = vmatpush1.msra.mxu0 0.0
        %1439 = vmatprep.subr.mxu0 0.0
        %1440 = vmatpush1.msra.mxu0 0.0
        %1441 = vmatprep.subr.mxu0 0.0
        %1442 = vmatpush1.msra.mxu0 0.0
        %1443 = vmatprep.subr.mxu0 0.0
        %1444 = vmatpush1.msra.mxu0 0.0
        %1445 = vmatprep.subr.mxu0 0.0
        %1446 = vmatpush1.msra.mxu0 0.0
        %1447 = vmatprep.subr.mxu0 0.0
        %1448 = vmatpush1.msra.mxu0 0.0
        %1449 = vmatprep.subr.mxu0 0.0
        %1450 = vmatpush1.msra.mxu0 0.0
        %1451 = vmatprep.subr.mxu0 0.0
        %1452 = vmatpush1.msra.mxu0 0.0
        %1453 = vmatprep.subr.mxu0 0.0
        %1454 = vmatpush1.msra.mxu0 0.0
        %1455 = vmatprep.subr.mxu0 0.0
        %1456 = vmatpush1.msra.mxu0 0.0
        %1457 = vmatprep.mubr.f32.mxu0 0.0
        %v1458 = vand.u32 %v334, 4294901760
        %v1459 = vsub.f32 %v334, %v1458
        %1460 = vmatmul.mubr.f32.gmra.mrb[0].mxu0 %v1459
        %v1461 = vpop.f32.mrb[0].mxu0
        %v1462 = vadd.f32 %v1344, %v1461
        %v1463 = vpop.f32.mrb[0].mxu0
        %1464 = vmatprep.mubr.f32.mxu0 0.0
        %v1465 = vand.u32 %v337, 4294901760
        %v1466 = vsub.f32 %v337, %v1465
        %1467 = vmatmul.mubr.f32.gmra.mrb[0].mxu0 %v1466
        %v1468 = vpop.f32.mrb[0].mxu0
        %v1469 = vadd.f32 %v1350, %v1468
        %v1470 = vpop.f32.mrb[0].mxu0
        %1471 = vmatprep.mubr.f32.mxu0 0.0
        %v1472 = vand.u32 %v340, 4294901760
        %v1473 = vsub.f32 %v340, %v1472
        %1474 = vmatmul.mubr.f32.gmra.mrb[0].mxu0 %v1473
        %v1475 = vpop.f32.mrb[0].mxu0
        %v1476 = vadd.f32 %v1356, %v1475
        %v1477 = vpop.f32.mrb[0].mxu0
        %1478 = vmatprep.mubr.f32.mxu0 0.0
        %v1479 = vand.u32 %v343, 4294901760
        %v1480 = vsub.f32 %v343, %v1479
        %1481 = vmatmul.mubr.f32.gmra.mrb[0].mxu0 %v1480
        %v1482 = vpop.f32.mrb[0].mxu0
        %v1483 = vadd.f32 %v1362, %v1482
        %v1484 = vpop.f32.mrb[0].mxu0
        %1485 = vmatprep.mubr.f32.mxu0 0.0
        %v1486 = vand.u32 %v346, 4294901760
        %v1487 = vsub.f32 %v346, %v1486
        %1488 = vmatmul.mubr.f32.gmra.mrb[0].mxu0 %v1487
        %v1489 = vpop.f32.mrb[0].mxu0
        %v1490 = vadd.f32 %v1368, %v1489
        %v1491 = vpop.f32.mrb[0].mxu0
        %1492 = vmatprep.mubr.f32.mxu0 0.0
        %v1493 = vand.u32 %v349, 4294901760
        %v1494 = vsub.f32 %v349, %v1493
        %1495 = vmatmul.mubr.f32.gmra.mrb[0].mxu0 %v1494
        %v1496 = vpop.f32.mrb[0].mxu0
        %v1497 = vadd.f32 %v1374, %v1496
        %v1498 = vpop.f32.mrb[0].mxu0
        %1499 = vmatprep.mubr.f32.mxu0 0.0
        %v1500 = vand.u32 %v352, 4294901760
        %v1501 = vsub.f32 %v352, %v1500
        %1502 = vmatmul.mubr.f32.gmra.mrb[0].mxu0 %v1501
        %v1503 = vpop.f32.mrb[0].mxu0
        %v1504 = vadd.f32 %v1380, %v1503
        %v1505 = vpop.f32.mrb[0].mxu0
        %1506 = vmatprep.mubr.f32.mxu0 0.0
        %v1507 = vand.u32 %v355, 4294901760
        %v1508 = vsub.f32 %v355, %v1507
        %1509 = vmatmul.mubr.f32.gmra.mrb[0].mxu0 %v1508
        %v1510 = vpop.f32.mrb[0].mxu0
        %v1511 = vadd.f32 %v1386, %v1510
        %v1512 = vpop.f32.mrb[0].mxu0
        %1513 = vdwg.mxu0
        %1514 = vmatprep.subr.mxu0 0.0
        %v1515 = vand.u32 %v1117, 4294901760
        %1516 = vmatpush1.msra.mxu0 %v1515
        %1517 = vmatprep.subr.mxu0 0.0
        %v1518 = vand.u32 %v1118, 4294901760
        %1519 = vmatpush1.msra.mxu0 %v1518
        %1520 = vmatprep.subr.mxu0 0.0
        %1521 = vmatpush1.msra.mxu0 0.0
        %1522 = vmatprep.subr.mxu0 0.0
        %1523 = vmatpush1.msra.mxu0 0.0
        %1524 = vmatprep.subr.mxu0 0.0
        %1525 = vmatpush1.msra.mxu0 0.0
        %1526 = vmatprep.subr.mxu0 0.0
        %1527 = vmatpush1.msra.mxu0 0.0
        %1528 = vmatprep.subr.mxu0 0.0
        %1529 = vmatpush1.msra.mxu0 0.0
        %1530 = vmatprep.subr.mxu0 0.0
        %1531 = vmatpush1.msra.mxu0 0.0
        %1532 = vmatprep.subr.mxu0 0.0
        %1533 = vmatpush1.msra.mxu0 0.0
        %1534 = vmatprep.subr.mxu0 0.0
        %1535 = vmatpush1.msra.mxu0 0.0
        %1536 = vmatprep.subr.mxu0 0.0
        %1537 = vmatpush1.msra.mxu0 0.0
        %1538 = vmatprep.subr.mxu0 0.0
        %1539 = vmatpush1.msra.mxu0 0.0
        %1540 = vmatprep.subr.mxu0 0.0
        %1541 = vmatpush1.msra.mxu0 0.0
        %1542 = vmatprep.subr.mxu0 0.0
        %1543 = vmatpush1.msra.mxu0 0.0
        %1544 = vmatprep.subr.mxu0 0.0
        %1545 = vmatpush1.msra.mxu0 0.0
        %1546 = vmatprep.subr.mxu0 0.0
        %1547 = vmatpush1.msra.mxu0 0.0
        %1548 = vmatprep.subr.mxu0 0.0
        %1549 = vmatpush1.msra.mxu0 0.0
        %1550 = vmatprep.subr.mxu0 0.0
        %1551 = vmatpush1.msra.mxu0 0.0
        %1552 = vmatprep.subr.mxu0 0.0
        %1553 = vmatpush1.msra.mxu0 0.0
        %1554 = vmatprep.subr.mxu0 0.0
        %1555 = vmatpush1.msra.mxu0 0.0
        %1556 = vmatprep.subr.mxu0 0.0
        %1557 = vmatpush1.msra.mxu0 0.0
        %1558 = vmatprep.subr.mxu0 0.0
        %1559 = vmatpush1.msra.mxu0 0.0
        %1560 = vmatprep.subr.mxu0 0.0
        %1561 = vmatpush1.msra.mxu0 0.0
        %1562 = vmatprep.subr.mxu0 0.0
        %1563 = vmatpush1.msra.mxu0 0.0
        %1564 = vmatprep.subr.mxu0 0.0
        %1565 = vmatpush1.msra.mxu0 0.0
        %1566 = vmatprep.subr.mxu0 0.0
        %1567 = vmatpush1.msra.mxu0 0.0
        %1568 = vmatprep.subr.mxu0 0.0
        %1569 = vmatpush1.msra.mxu0 0.0
        %1570 = vmatprep.subr.mxu0 0.0
        %1571 = vmatpush1.msra.mxu0 0.0
        %1572 = vmatprep.subr.mxu0 0.0
        %1573 = vmatpush1.msra.mxu0 0.0
        %1574 = vmatprep.subr.mxu0 0.0
        %1575 = vmatpush1.msra.mxu0 0.0
        %1576 = vmatprep.subr.mxu0 0.0
        %1577 = vmatpush1.msra.mxu0 0.0
        %1578 = vmatprep.subr.mxu0 0.0
        %1579 = vmatpush1.msra.mxu0 0.0
        %1580 = vmatprep.mubr.f32.mxu0 0.0
        %v1581 = vand.u32 %v334, 4294901760
        %v1582 = vsub.f32 %v334, %v1581
        %v1583 = vand.u32 %v1582, 4294901760
        %1584 = vmatmul.mubr.f32.gmra.mrb[0].mxu0 %v1583
        %v1585 = vpop.f32.mrb[0].mxu0
        %v1586 = vadd.f32 %v1462, %v1585
        %v1587 = vpop.f32.mrb[0].mxu0
        %1588 = vmatprep.mubr.f32.mxu0 0.0
        %v1589 = vand.u32 %v337, 4294901760
        %v1590 = vsub.f32 %v337, %v1589
        %v1591 = vand.u32 %v1590, 4294901760
        %1592 = vmatmul.mubr.f32.gmra.mrb[0].mxu0 %v1591
        %v1593 = vpop.f32.mrb[0].mxu0
        %v1594 = vadd.f32 %v1469, %v1593
        %v1595 = vpop.f32.mrb[0].mxu0
        %1596 = vmatprep.mubr.f32.mxu0 0.0
        %v1597 = vand.u32 %v340, 4294901760
        %v1598 = vsub.f32 %v340, %v1597
        %v1599 = vand.u32 %v1598, 4294901760
        %1600 = vmatmul.mubr.f32.gmra.mrb[0].mxu0 %v1599
        %v1601 = vpop.f32.mrb[0].mxu0
        %v1602 = vadd.f32 %v1476, %v1601
        %v1603 = vpop.f32.mrb[0].mxu0
        %1604 = vmatprep.mubr.f32.mxu0 0.0
        %v1605 = vand.u32 %v343, 4294901760
        %v1606 = vsub.f32 %v343, %v1605
        %v1607 = vand.u32 %v1606, 4294901760
        %1608 = vmatmul.mubr.f32.gmra.mrb[0].mxu0 %v1607
        %v1609 = vpop.f32.mrb[0].mxu0
        %v1610 = vadd.f32 %v1483, %v1609
        %v1611 = vpop.f32.mrb[0].mxu0
        %1612 = vmatprep.mubr.f32.mxu0 0.0
        %v1613 = vand.u32 %v346, 4294901760
        %v1614 = vsub.f32 %v346, %v1613
        %v1615 = vand.u32 %v1614, 4294901760
        %1616 = vmatmul.mubr.f32.gmra.mrb[0].mxu0 %v1615
        %v1617 = vpop.f32.mrb[0].mxu0
        %v1618 = vadd.f32 %v1490, %v1617
        %v1619 = vpop.f32.mrb[0].mxu0
        %1620 = vmatprep.mubr.f32.mxu0 0.0
        %v1621 = vand.u32 %v349, 4294901760
        %v1622 = vsub.f32 %v349, %v1621
        %v1623 = vand.u32 %v1622, 4294901760
        %1624 = vmatmul.mubr.f32.gmra.mrb[0].mxu0 %v1623
        %v1625 = vpop.f32.mrb[0].mxu0
        %v1626 = vadd.f32 %v1497, %v1625
        %v1627 = vpop.f32.mrb[0].mxu0
        %1628 = vmatprep.mubr.f32.mxu0 0.0
        %v1629 = vand.u32 %v352, 4294901760
        %v1630 = vsub.f32 %v352, %v1629
        %v1631 = vand.u32 %v1630, 4294901760
        %1632 = vmatmul.mubr.f32.gmra.mrb[0].mxu0 %v1631
        %v1633 = vpop.f32.mrb[0].mxu0
        %v1634 = vadd.f32 %v1504, %v1633
        %v1635 = vpop.f32.mrb[0].mxu0
        %1636 = vmatprep.mubr.f32.mxu0 0.0
        %v1637 = vand.u32 %v355, 4294901760
        %v1638 = vsub.f32 %v355, %v1637
        %v1639 = vand.u32 %v1638, 4294901760
        %1640 = vmatmul.mubr.f32.gmra.mrb[0].mxu0 %v1639
        %v1641 = vpop.f32.mrb[0].mxu0
        %v1642 = vadd.f32 %v1511, %v1641
        %v1643 = vpop.f32.mrb[0].mxu0
        %1644 = vdwg.mxu0
        %1645 = vmatprep.subr.mxu0 0.0
        %v1646 = vand.u32 %v1117, 4294901760
        %v1647 = vsub.f32 %v1117, %v1646
        %v1648 = vand.u32 %v1647, 4294901760
        %1649 = vmatpush1.msra.mxu0 %v1648
        %1650 = vmatprep.subr.mxu0 0.0
        %v1651 = vand.u32 %v1118, 4294901760
        %v1652 = vsub.f32 %v1118, %v1651
        %v1653 = vand.u32 %v1652, 4294901760
        %1654 = vmatpush1.msra.mxu0 %v1653
        %1655 = vmatprep.subr.mxu0 0.0
        %1656 = vmatpush1.msra.mxu0 0.0
        %1657 = vmatprep.subr.mxu0 0.0
        %1658 = vmatpush1.msra.mxu0 0.0
        %1659 = vmatprep.subr.mxu0 0.0
        %1660 = vmatpush1.msra.mxu0 0.0
        %1661 = vmatprep.subr.mxu0 0.0
        %1662 = vmatpush1.msra.mxu0 0.0
        %1663 = vmatprep.subr.mxu0 0.0
        %1664 = vmatpush1.msra.mxu0 0.0
        %1665 = vmatprep.subr.mxu0 0.0
        %1666 = vmatpush1.msra.mxu0 0.0
        %1667 = vmatprep.subr.mxu0 0.0
        %1668 = vmatpush1.msra.mxu0 0.0
        %1669 = vmatprep.subr.mxu0 0.0
        %1670 = vmatpush1.msra.mxu0 0.0
        %1671 = vmatprep.subr.mxu0 0.0
        %1672 = vmatpush1.msra.mxu0 0.0
        %1673 = vmatprep.subr.mxu0 0.0
        %1674 = vmatpush1.msra.mxu0 0.0
        %1675 = vmatprep.subr.mxu0 0.0
        %1676 = vmatpush1.msra.mxu0 0.0
        %1677 = vmatprep.subr.mxu0 0.0
        %1678 = vmatpush1.msra.mxu0 0.0
        %1679 = vmatprep.subr.mxu0 0.0
        %1680 = vmatpush1.msra.mxu0 0.0
        %1681 = vmatprep.subr.mxu0 0.0
        %1682 = vmatpush1.msra.mxu0 0.0
        %1683 = vmatprep.subr.mxu0 0.0
        %1684 = vmatpush1.msra.mxu0 0.0
        %1685 = vmatprep.subr.mxu0 0.0
        %1686 = vmatpush1.msra.mxu0 0.0
        %1687 = vmatprep.subr.mxu0 0.0
        %1688 = vmatpush1.msra.mxu0 0.0
        %1689 = vmatprep.subr.mxu0 0.0
        %1690 = vmatpush1.msra.mxu0 0.0
        %1691 = vmatprep.subr.mxu0 0.0
        %1692 = vmatpush1.msra.mxu0 0.0
        %1693 = vmatprep.subr.mxu0 0.0
        %1694 = vmatpush1.msra.mxu0 0.0
        %1695 = vmatprep.subr.mxu0 0.0
        %1696 = vmatpush1.msra.mxu0 0.0
        %1697 = vmatprep.subr.mxu0 0.0
        %1698 = vmatpush1.msra.mxu0 0.0
        %1699 = vmatprep.subr.mxu0 0.0
        %1700 = vmatpush1.msra.mxu0 0.0
        %1701 = vmatprep.subr.mxu0 0.0
        %1702 = vmatpush1.msra.mxu0 0.0
        %1703 = vmatprep.subr.mxu0 0.0
        %1704 = vmatpush1.msra.mxu0 0.0
        %1705 = vmatprep.subr.mxu0 0.0
        %1706 = vmatpush1.msra.mxu0 0.0
        %1707 = vmatprep.subr.mxu0 0.0
        %1708 = vmatpush1.msra.mxu0 0.0
        %1709 = vmatprep.subr.mxu0 0.0
        %1710 = vmatpush1.msra.mxu0 0.0
        %1711 = vmatprep.subr.mxu0 0.0
        %1712 = vmatpush1.msra.mxu0 0.0
        %1713 = vmatprep.subr.mxu0 0.0
        %1714 = vmatpush1.msra.mxu0 0.0
        %1715 = vmatprep.mubr.f32.mxu0 0.0
        %v1716 = vand.u32 %v334, 4294901760
        %1717 = vmatmul.mubr.f32.gmra.mrb[0].mxu0 %v1716
        %v1718 = vpop.f32.mrb[0].mxu0
        %v1719 = vadd.f32 %v1586, %v1718
        %v1720 = vpop.f32.mrb[0].mxu0
        %1721 = vmatprep.mubr.f32.mxu0 0.0
        %v1722 = vand.u32 %v337, 4294901760
        %1723 = vmatmul.mubr.f32.gmra.mrb[0].mxu0 %v1722
        %v1724 = vpop.f32.mrb[0].mxu0
        %v1725 = vadd.f32 %v1594, %v1724
        %v1726 = vpop.f32.mrb[0].mxu0
        %1727 = vmatprep.mubr.f32.mxu0 0.0
        %v1728 = vand.u32 %v340, 4294901760
        %1729 = vmatmul.mubr.f32.gmra.mrb[0].mxu0 %v1728
        %v1730 = vpop.f32.mrb[0].mxu0
        %v1731 = vadd.f32 %v1602, %v1730
        %v1732 = vpop.f32.mrb[0].mxu0
        %1733 = vmatprep.mubr.f32.mxu0 0.0
        %v1734 = vand.u32 %v343, 4294901760
        %1735 = vmatmul.mubr.f32.gmra.mrb[0].mxu0 %v1734
        %v1736 = vpop.f32.mrb[0].mxu0
        %v1737 = vadd.f32 %v1610, %v1736
        %v1738 = vpop.f32.mrb[0].mxu0
        %1739 = vmatprep.mubr.f32.mxu0 0.0
        %v1740 = vand.u32 %v346, 4294901760
        %1741 = vmatmul.mubr.f32.gmra.mrb[0].mxu0 %v1740
        %v1742 = vpop.f32.mrb[0].mxu0
        %v1743 = vadd.f32 %v1618, %v1742
        %v1744 = vpop.f32.mrb[0].mxu0
        %1745 = vmatprep.mubr.f32.mxu0 0.0
        %v1746 = vand.u32 %v349, 4294901760
        %1747 = vmatmul.mubr.f32.gmra.mrb[0].mxu0 %v1746
        %v1748 = vpop.f32.mrb[0].mxu0
        %v1749 = vadd.f32 %v1626, %v1748
        %v1750 = vpop.f32.mrb[0].mxu0
        %1751 = vmatprep.mubr.f32.mxu0 0.0
        %v1752 = vand.u32 %v352, 4294901760
        %1753 = vmatmul.mubr.f32.gmra.mrb[0].mxu0 %v1752
        %v1754 = vpop.f32.mrb[0].mxu0
        %v1755 = vadd.f32 %v1634, %v1754
        %v1756 = vpop.f32.mrb[0].mxu0
        %1757 = vmatprep.mubr.f32.mxu0 0.0
        %v1758 = vand.u32 %v355, 4294901760
        %1759 = vmatmul.mubr.f32.gmra.mrb[0].mxu0 %v1758
        %v1760 = vpop.f32.mrb[0].mxu0
        %v1761 = vadd.f32 %v1642, %v1760
        %v1762 = vpop.f32.mrb[0].mxu0
        %1763 = vdwg.mxu0
        %1764 = vmatprep.subr.mxu0 0.0
        %v1765 = vand.u32 %v1117, 4294901760
        %1766 = vmatpush1.msra.mxu0 %v1765
        %1767 = vmatprep.subr.mxu0 0.0
        %v1768 = vand.u32 %v1118, 4294901760
        %1769 = vmatpush1.msra.mxu0 %v1768
        %1770 = vmatprep.subr.mxu0 0.0
        %1771 = vmatpush1.msra.mxu0 0.0
        %1772 = vmatprep.subr.mxu0 0.0
        %1773 = vmatpush1.msra.mxu0 0.0
        %1774 = vmatprep.subr.mxu0 0.0
        %1775 = vmatpush1.msra.mxu0 0.0
        %1776 = vmatprep.subr.mxu0 0.0
        %1777 = vmatpush1.msra.mxu0 0.0
        %1778 = vmatprep.subr.mxu0 0.0
        %1779 = vmatpush1.msra.mxu0 0.0
        %1780 = vmatprep.subr.mxu0 0.0
        %1781 = vmatpush1.msra.mxu0 0.0
        %1782 = vmatprep.subr.mxu0 0.0
        %1783 = vmatpush1.msra.mxu0 0.0
        %1784 = vmatprep.subr.mxu0 0.0
        %1785 = vmatpush1.msra.mxu0 0.0
        %1786 = vmatprep.subr.mxu0 0.0
        %1787 = vmatpush1.msra.mxu0 0.0
        %1788 = vmatprep.subr.mxu0 0.0
        %1789 = vmatpush1.msra.mxu0 0.0
        %1790 = vmatprep.subr.mxu0 0.0
        %1791 = vmatpush1.msra.mxu0 0.0
        %1792 = vmatprep.subr.mxu0 0.0
        %1793 = vmatpush1.msra.mxu0 0.0
        %1794 = vmatprep.subr.mxu0 0.0
        %1795 = vmatpush1.msra.mxu0 0.0
        %1796 = vmatprep.subr.mxu0 0.0
        %1797 = vmatpush1.msra.mxu0 0.0
        %1798 = vmatprep.subr.mxu0 0.0
        %1799 = vmatpush1.msra.mxu0 0.0
        %1800 = vmatprep.subr.mxu0 0.0
        %1801 = vmatpush1.msra.mxu0 0.0
        %1802 = vmatprep.subr.mxu0 0.0
        %1803 = vmatpush1.msra.mxu0 0.0
        %1804 = vmatprep.subr.mxu0 0.0
        %1805 = vmatpush1.msra.mxu0 0.0
        %1806 = vmatprep.subr.mxu0 0.0
        %1807 = vmatpush1.msra.mxu0 0.0
        %1808 = vmatprep.subr.mxu0 0.0
        %1809 = vmatpush1.msra.mxu0 0.0
        %1810 = vmatprep.subr.mxu0 0.0
        %1811 = vmatpush1.msra.mxu0 0.0
        %1812 = vmatprep.subr.mxu0 0.0
        %1813 = vmatpush1.msra.mxu0 0.0
        %1814 = vmatprep.subr.mxu0 0.0
        %1815 = vmatpush1.msra.mxu0 0.0
        %1816 = vmatprep.subr.mxu0 0.0
        %1817 = vmatpush1.msra.mxu0 0.0
        %1818 = vmatprep.subr.mxu0 0.0
        %1819 = vmatpush1.msra.mxu0 0.0
        %1820 = vmatprep.subr.mxu0 0.0
        %1821 = vmatpush1.msra.mxu0 0.0
        %1822 = vmatprep.subr.mxu0 0.0
        %1823 = vmatpush1.msra.mxu0 0.0
        %1824 = vmatprep.subr.mxu0 0.0
        %1825 = vmatpush1.msra.mxu0 0.0
        %1826 = vmatprep.subr.mxu0 0.0
        %1827 = vmatpush1.msra.mxu0 0.0
        %1828 = vmatprep.subr.mxu0 0.0
        %1829 = vmatpush1.msra.mxu0 0.0
        %1830 = vmatprep.mubr.f32.mxu0 0.0
        %v1831 = vand.u32 %v334, 4294901760
        %1832 = vmatmul.mubr.f32.gmra.mrb[0].mxu0 %v1831
        %v1833 = vpop.f32.mrb[0].mxu0
        %v1834 = vadd.f32 %v1719, %v1833
        %v1835 = vpop.f32.mrb[0].mxu0
        %1836 = vmatprep.mubr.f32.mxu0 0.0
        %v1837 = vand.u32 %v337, 4294901760
        %1838 = vmatmul.mubr.f32.gmra.mrb[0].mxu0 %v1837
        %v1839 = vpop.f32.mrb[0].mxu0
        %v1840 = vadd.f32 %v1725, %v1839
        %v1841 = vpop.f32.mrb[0].mxu0
        %1842 = vmatprep.mubr.f32.mxu0 0.0
        %v1843 = vand.u32 %v340, 4294901760
        %1844 = vmatmul.mubr.f32.gmra.mrb[0].mxu0 %v1843
        %v1845 = vpop.f32.mrb[0].mxu0
        %v1846 = vadd.f32 %v1731, %v1845
        %v1847 = vpop.f32.mrb[0].mxu0
        %1848 = vmatprep.mubr.f32.mxu0 0.0
        %v1849 = vand.u32 %v343, 4294901760
        %1850 = vmatmul.mubr.f32.gmra.mrb[0].mxu0 %v1849
        %v1851 = vpop.f32.mrb[0].mxu0
        %v1852 = vadd.f32 %v1737, %v1851
        %v1853 = vpop.f32.mrb[0].mxu0
        %1854 = vmatprep.mubr.f32.mxu0 0.0
        %v1855 = vand.u32 %v346, 4294901760
        %1856 = vmatmul.mubr.f32.gmra.mrb[0].mxu0 %v1855
        %v1857 = vpop.f32.mrb[0].mxu0
        %v1858 = vadd.f32 %v1743, %v1857
        %v1859 = vpop.f32.mrb[0].mxu0
        %1860 = vmatprep.mubr.f32.mxu0 0.0
        %v1861 = vand.u32 %v349, 4294901760
        %1862 = vmatmul.mubr.f32.gmra.mrb[0].mxu0 %v1861
        %v1863 = vpop.f32.mrb[0].mxu0
        %v1864 = vadd.f32 %v1749, %v1863
        %v1865 = vpop.f32.mrb[0].mxu0
        %1866 = vmatprep.mubr.f32.mxu0 0.0
        %v1867 = vand.u32 %v352, 4294901760
        %1868 = vmatmul.mubr.f32.gmra.mrb[0].mxu0 %v1867
        %v1869 = vpop.f32.mrb[0].mxu0
        %v1870 = vadd.f32 %v1755, %v1869
        %v1871 = vpop.f32.mrb[0].mxu0
        %1872 = vmatprep.mubr.f32.mxu0 0.0
        %v1873 = vand.u32 %v355, 4294901760
        %1874 = vmatmul.mubr.f32.gmra.mrb[0].mxu0 %v1873
        %v1875 = vpop.f32.mrb[0].mxu0
        %v1876 = vadd.f32 %v1761, %v1875
        %v1877 = vpop.f32.mrb[0].mxu0
        %1878 = vdwg.mxu0
        %v1879 = vld [vmem:[#allocation5] sm:$0xff]
        %v1880 = vld [vmem:[#allocation5 + $0x8] sm:$0xff]
        %v1881 = vld [vmem:[#allocation8] sm:$0xff]
        %v1882 = vld [vmem:[#allocation8 + $0x8] sm:$0xff]
        %v1884 = vsel %vm332, %v1879, 0
        %v1887 = vsel %vm332, %v1880, 0
        %1889 = vmatprep.subr.mxu0 0.0
        %v1890 = vand.u32 %v1072, 4294901760
        %1891 = vmatpush1.msra.mxu0 %v1890
        %1892 = vmatprep.subr.mxu0 0.0
        %v1893 = vand.u32 %v1078, 4294901760
        %1894 = vmatpush1.msra.mxu0 %v1893
        %1895 = vmatprep.subr.mxu0 0.0
        %1896 = vmatpush1.msra.mxu0 0.0
        %1897 = vmatprep.subr.mxu0 0.0
        %1898 = vmatpush1.msra.mxu0 0.0
        %1899 = vmatprep.subr.mxu0 0.0
        %1900 = vmatpush1.msra.mxu0 0.0
        %1901 = vmatprep.subr.mxu0 0.0
        %1902 = vmatpush1.msra.mxu0 0.0
        %1903 = vmatprep.subr.mxu0 0.0
        %1904 = vmatpush1.msra.mxu0 0.0
        %1905 = vmatprep.subr.mxu0 0.0
        %1906 = vmatpush1.msra.mxu0 0.0
        %1907 = vmatprep.subr.mxu0 0.0
        %1908 = vmatpush1.msra.mxu0 0.0
        %1909 = vmatprep.subr.mxu0 0.0
        %1910 = vmatpush1.msra.mxu0 0.0
        %1911 = vmatprep.subr.mxu0 0.0
        %1912 = vmatpush1.msra.mxu0 0.0
        %1913 = vmatprep.subr.mxu0 0.0
        %1914 = vmatpush1.msra.mxu0 0.0
        %1915 = vmatprep.subr.mxu0 0.0
        %1916 = vmatpush1.msra.mxu0 0.0
        %1917 = vmatprep.subr.mxu0 0.0
        %1918 = vmatpush1.msra.mxu0 0.0
        %1919 = vmatprep.subr.mxu0 0.0
        %1920 = vmatpush1.msra.mxu0 0.0
        %1921 = vmatprep.subr.mxu0 0.0
        %1922 = vmatpush1.msra.mxu0 0.0
        %1923 = vmatprep.subr.mxu0 0.0
        %1924 = vmatpush1.msra.mxu0 0.0
        %1925 = vmatprep.subr.mxu0 0.0
        %1926 = vmatpush1.msra.mxu0 0.0
        %1927 = vmatprep.subr.mxu0 0.0
        %1928 = vmatpush1.msra.mxu0 0.0
        %1929 = vmatprep.subr.mxu0 0.0
        %1930 = vmatpush1.msra.mxu0 0.0
        %1931 = vmatprep.subr.mxu0 0.0
        %1932 = vmatpush1.msra.mxu0 0.0
        %1933 = vmatprep.subr.mxu0 0.0
        %1934 = vmatpush1.msra.mxu0 0.0
        %1935 = vmatprep.subr.mxu0 0.0
        %1936 = vmatpush1.msra.mxu0 0.0
        %1937 = vmatprep.subr.mxu0 0.0
        %1938 = vmatpush1.msra.mxu0 0.0
        %1939 = vmatprep.subr.mxu0 0.0
        %1940 = vmatpush1.msra.mxu0 0.0
        %1941 = vmatprep.subr.mxu0 0.0
        %1942 = vmatpush1.msra.mxu0 0.0
        %1943 = vmatprep.subr.mxu0 0.0
        %1944 = vmatpush1.msra.mxu0 0.0
        %1945 = vmatprep.subr.mxu0 0.0
        %1946 = vmatpush1.msra.mxu0 0.0
        %1947 = vmatprep.subr.mxu0 0.0
        %1948 = vmatpush1.msra.mxu0 0.0
        %1949 = vmatprep.subr.mxu0 0.0
        %1950 = vmatpush1.msra.mxu0 0.0
        %1951 = vmatprep.subr.mxu0 0.0
        %1952 = vmatpush1.msra.mxu0 0.0
        %1953 = vmatprep.subr.mxu0 0.0
        %1954 = vmatpush1.msra.mxu0 0.0
        %1955 = vmatprep.mubr.f32.mxu0 0.0
        %v1956 = vand.u32 %v1884, 4294901760
        %v1957 = vsub.f32 %v1884, %v1956
        %v1958 = vand.u32 %v1957, 4294901760
        %v1959 = vsub.f32 %v1957, %v1958
        %v1960 = vand.u32 %v1959, 4294901760
        %1961 = vmatmul.mubr.f32.gmra.mrb[0].mxu0 %v1960
        %v1962 = vpop.f32.mrb[0].mxu0
        %v1963 = vadd.f32 0.0, %v1962
        %v1964 = vpop.f32.mrb[0].mxu0
        %1965 = vmatprep.mubr.f32.mxu0 0.0
        %v1966 = vand.u32 %v1887, 4294901760
        %v1967 = vsub.f32 %v1887, %v1966
        %v1968 = vand.u32 %v1967, 4294901760
        %v1969 = vsub.f32 %v1967, %v1968
        %v1970 = vand.u32 %v1969, 4294901760
        %1971 = vmatmul.mubr.f32.gmra.mrb[0].mxu0 %v1970
        %v1972 = vpop.f32.mrb[0].mxu0
        %v1973 = vadd.f32 0.0, %v1972
        %v1974 = vpop.f32.mrb[0].mxu0
        %1975 = vdwg.mxu0
        %1976 = vmatprep.subr.mxu0 0.0
        %v1977 = vand.u32 %v1072, 4294901760
        %v1978 = vsub.f32 %v1072, %v1977
        %v1979 = vand.u32 %v1978, 4294901760
        %v1980 = vsub.f32 %v1978, %v1979
        %v1981 = vand.u32 %v1980, 4294901760
        %1982 = vmatpush1.msra.mxu0 %v1981
        %1983 = vmatprep.subr.mxu0 0.0
        %v1984 = vand.u32 %v1078, 4294901760
        %v1985 = vsub.f32 %v1078, %v1984
        %v1986 = vand.u32 %v1985, 4294901760
        %v1987 = vsub.f32 %v1985, %v1986
        %v1988 = vand.u32 %v1987, 4294901760
        %1989 = vmatpush1.msra.mxu0 %v1988
        %1990 = vmatprep.subr.mxu0 0.0
        %1991 = vmatpush1.msra.mxu0 0.0
        %1992 = vmatprep.subr.mxu0 0.0
        %1993 = vmatpush1.msra.mxu0 0.0
        %1994 = vmatprep.subr.mxu0 0.0
        %1995 = vmatpush1.msra.mxu0 0.0
        %1996 = vmatprep.subr.mxu0 0.0
        %1997 = vmatpush1.msra.mxu0 0.0
        %1998 = vmatprep.subr.mxu0 0.0
        %1999 = vmatpush1.msra.mxu0 0.0
        %2000 = vmatprep.subr.mxu0 0.0
        %2001 = vmatpush1.msra.mxu0 0.0
        %2002 = vmatprep.subr.mxu0 0.0
        %2003 = vmatpush1.msra.mxu0 0.0
        %2004 = vmatprep.subr.mxu0 0.0
        %2005 = vmatpush1.msra.mxu0 0.0
        %2006 = vmatprep.subr.mxu0 0.0
        %2007 = vmatpush1.msra.mxu0 0.0
        %2008 = vmatprep.subr.mxu0 0.0
        %2009 = vmatpush1.msra.mxu0 0.0
        %2010 = vmatprep.subr.mxu0 0.0
        %2011 = vmatpush1.msra.mxu0 0.0
        %2012 = vmatprep.subr.mxu0 0.0
        %2013 = vmatpush1.msra.mxu0 0.0
        %2014 = vmatprep.subr.mxu0 0.0
        %2015 = vmatpush1.msra.mxu0 0.0
        %2016 = vmatprep.subr.mxu0 0.0
        %2017 = vmatpush1.msra.mxu0 0.0
        %2018 = vmatprep.subr.mxu0 0.0
        %2019 = vmatpush1.msra.mxu0 0.0
        %2020 = vmatprep.subr.mxu0 0.0
        %2021 = vmatpush1.msra.mxu0 0.0
        %2022 = vmatprep.subr.mxu0 0.0
        %2023 = vmatpush1.msra.mxu0 0.0
        %2024 = vmatprep.subr.mxu0 0.0
        %2025 = vmatpush1.msra.mxu0 0.0
        %2026 = vmatprep.subr.mxu0 0.0
        %2027 = vmatpush1.msra.mxu0 0.0
        %2028 = vmatprep.subr.mxu0 0.0
        %2029 = vmatpush1.msra.mxu0 0.0
        %2030 = vmatprep.subr.mxu0 0.0
        %2031 = vmatpush1.msra.mxu0 0.0
        %2032 = vmatprep.subr.mxu0 0.0
        %2033 = vmatpush1.msra.mxu0 0.0
        %2034 = vmatprep.subr.mxu0 0.0
        %2035 = vmatpush1.msra.mxu0 0.0
        %2036 = vmatprep.subr.mxu0 0.0
        %2037 = vmatpush1.msra.mxu0 0.0
        %2038 = vmatprep.subr.mxu0 0.0
        %2039 = vmatpush1.msra.mxu0 0.0
        %2040 = vmatprep.subr.mxu0 0.0
        %2041 = vmatpush1.msra.mxu0 0.0
        %2042 = vmatprep.subr.mxu0 0.0
        %2043 = vmatpush1.msra.mxu0 0.0
        %2044 = vmatprep.subr.mxu0 0.0
        %2045 = vmatpush1.msra.mxu0 0.0
        %2046 = vmatprep.subr.mxu0 0.0
        %2047 = vmatpush1.msra.mxu0 0.0
        %2048 = vmatprep.subr.mxu0 0.0
        %2049 = vmatpush1.msra.mxu0 0.0
        %2050 = vmatprep.mubr.f32.mxu0 0.0
        %v2051 = vand.u32 %v1884, 4294901760
        %2052 = vmatmul.mubr.f32.gmra.mrb[0].mxu0 %v2051
        %v2053 = vpop.f32.mrb[0].mxu0
        %v2054 = vadd.f32 %v1963, %v2053
        %v2055 = vpop.f32.mrb[0].mxu0
        %2056 = vmatprep.mubr.f32.mxu0 0.0
        %v2057 = vand.u32 %v1887, 4294901760
        %2058 = vmatmul.mubr.f32.gmra.mrb[0].mxu0 %v2057
        %v2059 = vpop.f32.mrb[0].mxu0
        %v2060 = vadd.f32 %v1973, %v2059
        %v2061 = vpop.f32.mrb[0].mxu0
        %2062 = vdwg.mxu0
        %2063 = vmatprep.subr.mxu0 0.0
        %v2064 = vand.u32 %v1072, 4294901760
        %v2065 = vsub.f32 %v1072, %v2064
        %2066 = vmatpush1.msra.mxu0 %v2065
        %2067 = vmatprep.subr.mxu0 0.0
        %v2068 = vand.u32 %v1078, 4294901760
        %v2069 = vsub.f32 %v1078, %v2068
        %2070 = vmatpush1.msra.mxu0 %v2069
        %2071 = vmatprep.subr.mxu0 0.0
        %2072 = vmatpush1.msra.mxu0 0.0
        %2073 = vmatprep.subr.mxu0 0.0
        %2074 = vmatpush1.msra.mxu0 0.0
        %2075 = vmatprep.subr.mxu0 0.0
        %2076 = vmatpush1.msra.mxu0 0.0
        %2077 = vmatprep.subr.mxu0 0.0
        %2078 = vmatpush1.msra.mxu0 0.0
        %2079 = vmatprep.subr.mxu0 0.0
        %2080 = vmatpush1.msra.mxu0 0.0
        %2081 = vmatprep.subr.mxu0 0.0
        %2082 = vmatpush1.msra.mxu0 0.0
        %2083 = vmatprep.subr.mxu0 0.0
        %2084 = vmatpush1.msra.mxu0 0.0
        %2085 = vmatprep.subr.mxu0 0.0
        %2086 = vmatpush1.msra.mxu0 0.0
        %2087 = vmatprep.subr.mxu0 0.0
        %2088 = vmatpush1.msra.mxu0 0.0
        %2089 = vmatprep.subr.mxu0 0.0
        %2090 = vmatpush1.msra.mxu0 0.0
        %2091 = vmatprep.subr.mxu0 0.0
        %2092 = vmatpush1.msra.mxu0 0.0
        %2093 = vmatprep.subr.mxu0 0.0
        %2094 = vmatpush1.msra.mxu0 0.0
        %2095 = vmatprep.subr.mxu0 0.0
        %2096 = vmatpush1.msra.mxu0 0.0
        %2097 = vmatprep.subr.mxu0 0.0
        %2098 = vmatpush1.msra.mxu0 0.0
        %2099 = vmatprep.subr.mxu0 0.0
        %2100 = vmatpush1.msra.mxu0 0.0
        %2101 = vmatprep.subr.mxu0 0.0
        %2102 = vmatpush1.msra.mxu0 0.0
        %2103 = vmatprep.subr.mxu0 0.0
        %2104 = vmatpush1.msra.mxu0 0.0
        %2105 = vmatprep.subr.mxu0 0.0
        %2106 = vmatpush1.msra.mxu0 0.0
        %2107 = vmatprep.subr.mxu0 0.0
        %2108 = vmatpush1.msra.mxu0 0.0
        %2109 = vmatprep.subr.mxu0 0.0
        %2110 = vmatpush1.msra.mxu0 0.0
        %2111 = vmatprep.subr.mxu0 0.0
        %2112 = vmatpush1.msra.mxu0 0.0
        %2113 = vmatprep.subr.mxu0 0.0
        %2114 = vmatpush1.msra.mxu0 0.0
        %2115 = vmatprep.subr.mxu0 0.0
        %2116 = vmatpush1.msra.mxu0 0.0
        %2117 = vmatprep.subr.mxu0 0.0
        %2118 = vmatpush1.msra.mxu0 0.0
        %2119 = vmatprep.subr.mxu0 0.0
        %2120 = vmatpush1.msra.mxu0 0.0
        %2121 = vmatprep.subr.mxu0 0.0
        %2122 = vmatpush1.msra.mxu0 0.0
        %2123 = vmatprep.subr.mxu0 0.0
        %2124 = vmatpush1.msra.mxu0 0.0
        %2125 = vmatprep.subr.mxu0 0.0
        %2126 = vmatpush1.msra.mxu0 0.0
        %2127 = vmatprep.subr.mxu0 0.0
        %2128 = vmatpush1.msra.mxu0 0.0
        %2129 = vmatprep.subr.mxu0 0.0
        %2130 = vmatpush1.msra.mxu0 0.0
        %2131 = vmatprep.mubr.f32.mxu0 0.0
        %v2132 = vand.u32 %v1884, 4294901760
        %v2133 = vsub.f32 %v1884, %v2132
        %2134 = vmatmul.mubr.f32.gmra.mrb[0].mxu0 %v2133
        %v2135 = vpop.f32.mrb[0].mxu0
        %v2136 = vadd.f32 %v2054, %v2135
        %v2137 = vpop.f32.mrb[0].mxu0
        %2138 = vmatprep.mubr.f32.mxu0 0.0
        %v2139 = vand.u32 %v1887, 4294901760
        %v2140 = vsub.f32 %v1887, %v2139
        %2141 = vmatmul.mubr.f32.gmra.mrb[0].mxu0 %v2140
        %v2142 = vpop.f32.mrb[0].mxu0
        %v2143 = vadd.f32 %v2060, %v2142
        %v2144 = vpop.f32.mrb[0].mxu0
        %2145 = vdwg.mxu0
        %2146 = vmatprep.subr.mxu0 0.0
        %v2147 = vand.u32 %v1072, 4294901760
        %2148 = vmatpush1.msra.mxu0 %v2147
        %2149 = vmatprep.subr.mxu0 0.0
        %v2150 = vand.u32 %v1078, 4294901760
        %2151 = vmatpush1.msra.mxu0 %v2150
        %2152 = vmatprep.subr.mxu0 0.0
        %2153 = vmatpush1.msra.mxu0 0.0
        %2154 = vmatprep.subr.mxu0 0.0
        %2155 = vmatpush1.msra.mxu0 0.0
        %2156 = vmatprep.subr.mxu0 0.0
        %2157 = vmatpush1.msra.mxu0 0.0
        %2158 = vmatprep.subr.mxu0 0.0
        %2159 = vmatpush1.msra.mxu0 0.0
        %2160 = vmatprep.subr.mxu0 0.0
        %2161 = vmatpush1.msra.mxu0 0.0
        %2162 = vmatprep.subr.mxu0 0.0
        %2163 = vmatpush1.msra.mxu0 0.0
        %2164 = vmatprep.subr.mxu0 0.0
        %2165 = vmatpush1.msra.mxu0 0.0
        %2166 = vmatprep.subr.mxu0 0.0
        %2167 = vmatpush1.msra.mxu0 0.0
        %2168 = vmatprep.subr.mxu0 0.0
        %2169 = vmatpush1.msra.mxu0 0.0
        %2170 = vmatprep.subr.mxu0 0.0
        %2171 = vmatpush1.msra.mxu0 0.0
        %2172 = vmatprep.subr.mxu0 0.0
        %2173 = vmatpush1.msra.mxu0 0.0
        %2174 = vmatprep.subr.mxu0 0.0
        %2175 = vmatpush1.msra.mxu0 0.0
        %2176 = vmatprep.subr.mxu0 0.0
        %2177 = vmatpush1.msra.mxu0 0.0
        %2178 = vmatprep.subr.mxu0 0.0
        %2179 = vmatpush1.msra.mxu0 0.0
        %2180 = vmatprep.subr.mxu0 0.0
        %2181 = vmatpush1.msra.mxu0 0.0
        %2182 = vmatprep.subr.mxu0 0.0
        %2183 = vmatpush1.msra.mxu0 0.0
        %2184 = vmatprep.subr.mxu0 0.0
        %2185 = vmatpush1.msra.mxu0 0.0
        %2186 = vmatprep.subr.mxu0 0.0
        %2187 = vmatpush1.msra.mxu0 0.0
        %2188 = vmatprep.subr.mxu0 0.0
        %2189 = vmatpush1.msra.mxu0 0.0
        %2190 = vmatprep.subr.mxu0 0.0
        %2191 = vmatpush1.msra.mxu0 0.0
        %2192 = vmatprep.subr.mxu0 0.0
        %2193 = vmatpush1.msra.mxu0 0.0
        %2194 = vmatprep.subr.mxu0 0.0
        %2195 = vmatpush1.msra.mxu0 0.0
        %2196 = vmatprep.subr.mxu0 0.0
        %2197 = vmatpush1.msra.mxu0 0.0
        %2198 = vmatprep.subr.mxu0 0.0
        %2199 = vmatpush1.msra.mxu0 0.0
        %2200 = vmatprep.subr.mxu0 0.0
        %2201 = vmatpush1.msra.mxu0 0.0
        %2202 = vmatprep.subr.mxu0 0.0
        %2203 = vmatpush1.msra.mxu0 0.0
        %2204 = vmatprep.subr.mxu0 0.0
        %2205 = vmatpush1.msra.mxu0 0.0
        %2206 = vmatprep.subr.mxu0 0.0
        %2207 = vmatpush1.msra.mxu0 0.0
        %2208 = vmatprep.subr.mxu0 0.0
        %2209 = vmatpush1.msra.mxu0 0.0
        %2210 = vmatprep.subr.mxu0 0.0
        %2211 = vmatpush1.msra.mxu0 0.0
        %2212 = vmatprep.mubr.f32.mxu0 0.0
        %v2213 = vand.u32 %v1884, 4294901760
        %v2214 = vsub.f32 %v1884, %v2213
        %v2215 = vand.u32 %v2214, 4294901760
        %2216 = vmatmul.mubr.f32.gmra.mrb[0].mxu0 %v2215
        %v2217 = vpop.f32.mrb[0].mxu0
        %v2218 = vadd.f32 %v2136, %v2217
        %v2219 = vpop.f32.mrb[0].mxu0
        %2220 = vmatprep.mubr.f32.mxu0 0.0
        %v2221 = vand.u32 %v1887, 4294901760
        %v2222 = vsub.f32 %v1887, %v2221
        %v2223 = vand.u32 %v2222, 4294901760
        %2224 = vmatmul.mubr.f32.gmra.mrb[0].mxu0 %v2223
        %v2225 = vpop.f32.mrb[0].mxu0
        %v2226 = vadd.f32 %v2143, %v2225
        %v2227 = vpop.f32.mrb[0].mxu0
        %2228 = vdwg.mxu0
        %2229 = vmatprep.subr.mxu0 0.0
        %v2230 = vand.u32 %v1072, 4294901760
        %v2231 = vsub.f32 %v1072, %v2230
        %v2232 = vand.u32 %v2231, 4294901760
        %2233 = vmatpush1.msra.mxu0 %v2232
        %2234 = vmatprep.subr.mxu0 0.0
        %v2235 = vand.u32 %v1078, 4294901760
        %v2236 = vsub.f32 %v1078, %v2235
        %v2237 = vand.u32 %v2236, 4294901760
        %2238 = vmatpush1.msra.mxu0 %v2237
        %2239 = vmatprep.subr.mxu0 0.0
        %2240 = vmatpush1.msra.mxu0 0.0
        %2241 = vmatprep.subr.mxu0 0.0
        %2242 = vmatpush1.msra.mxu0 0.0
        %2243 = vmatprep.subr.mxu0 0.0
        %2244 = vmatpush1.msra.mxu0 0.0
        %2245 = vmatprep.subr.mxu0 0.0
        %2246 = vmatpush1.msra.mxu0 0.0
        %2247 = vmatprep.subr.mxu0 0.0
        %2248 = vmatpush1.msra.mxu0 0.0
        %2249 = vmatprep.subr.mxu0 0.0
        %2250 = vmatpush1.msra.mxu0 0.0
        %2251 = vmatprep.subr.mxu0 0.0
        %2252 = vmatpush1.msra.mxu0 0.0
        %2253 = vmatprep.subr.mxu0 0.0
        %2254 = vmatpush1.msra.mxu0 0.0
        %2255 = vmatprep.subr.mxu0 0.0
        %2256 = vmatpush1.msra.mxu0 0.0
        %2257 = vmatprep.subr.mxu0 0.0
        %2258 = vmatpush1.msra.mxu0 0.0
        %2259 = vmatprep.subr.mxu0 0.0
        %2260 = vmatpush1.msra.mxu0 0.0
        %2261 = vmatprep.subr.mxu0 0.0
        %2262 = vmatpush1.msra.mxu0 0.0
        %2263 = vmatprep.subr.mxu0 0.0
        %2264 = vmatpush1.msra.mxu0 0.0
        %2265 = vmatprep.subr.mxu0 0.0
        %2266 = vmatpush1.msra.mxu0 0.0
        %2267 = vmatprep.subr.mxu0 0.0
        %2268 = vmatpush1.msra.mxu0 0.0
        %2269 = vmatprep.subr.mxu0 0.0
        %2270 = vmatpush1.msra.mxu0 0.0
        %2271 = vmatprep.subr.mxu0 0.0
        %2272 = vmatpush1.msra.mxu0 0.0
        %2273 = vmatprep.subr.mxu0 0.0
        %2274 = vmatpush1.msra.mxu0 0.0
        %2275 = vmatprep.subr.mxu0 0.0
        %2276 = vmatpush1.msra.mxu0 0.0
        %2277 = vmatprep.subr.mxu0 0.0
        %2278 = vmatpush1.msra.mxu0 0.0
        %2279 = vmatprep.subr.mxu0 0.0
        %2280 = vmatpush1.msra.mxu0 0.0
        %2281 = vmatprep.subr.mxu0 0.0
        %2282 = vmatpush1.msra.mxu0 0.0
        %2283 = vmatprep.subr.mxu0 0.0
        %2284 = vmatpush1.msra.mxu0 0.0
        %2285 = vmatprep.subr.mxu0 0.0
        %2286 = vmatpush1.msra.mxu0 0.0
        %2287 = vmatprep.subr.mxu0 0.0
        %2288 = vmatpush1.msra.mxu0 0.0
        %2289 = vmatprep.subr.mxu0 0.0
        %2290 = vmatpush1.msra.mxu0 0.0
        %2291 = vmatprep.subr.mxu0 0.0
        %2292 = vmatpush1.msra.mxu0 0.0
        %2293 = vmatprep.subr.mxu0 0.0
        %2294 = vmatpush1.msra.mxu0 0.0
        %2295 = vmatprep.subr.mxu0 0.0
        %2296 = vmatpush1.msra.mxu0 0.0
        %2297 = vmatprep.subr.mxu0 0.0
        %2298 = vmatpush1.msra.mxu0 0.0
        %2299 = vmatprep.mubr.f32.mxu0 0.0
        %v2300 = vand.u32 %v1884, 4294901760
        %2301 = vmatmul.mubr.f32.gmra.mrb[0].mxu0 %v2300
        %v2302 = vpop.f32.mrb[0].mxu0
        %v2303 = vadd.f32 %v2218, %v2302
        %v2304 = vpop.f32.mrb[0].mxu0
        %2305 = vmatprep.mubr.f32.mxu0 0.0
        %v2306 = vand.u32 %v1887, 4294901760
        %2307 = vmatmul.mubr.f32.gmra.mrb[0].mxu0 %v2306
        %v2308 = vpop.f32.mrb[0].mxu0
        %v2309 = vadd.f32 %v2226, %v2308
        %v2310 = vpop.f32.mrb[0].mxu0
        %2311 = vdwg.mxu0
        %2312 = vmatprep.subr.mxu0 0.0
        %v2313 = vand.u32 %v1072, 4294901760
        %2314 = vmatpush1.msra.mxu0 %v2313
        %2315 = vmatprep.subr.mxu0 0.0
        %v2316 = vand.u32 %v1078, 4294901760
        %2317 = vmatpush1.msra.mxu0 %v2316
        %2318 = vmatprep.subr.mxu0 0.0
        %2319 = vmatpush1.msra.mxu0 0.0
        %2320 = vmatprep.subr.mxu0 0.0
        %2321 = vmatpush1.msra.mxu0 0.0
        %2322 = vmatprep.subr.mxu0 0.0
        %2323 = vmatpush1.msra.mxu0 0.0
        %2324 = vmatprep.subr.mxu0 0.0
        %2325 = vmatpush1.msra.mxu0 0.0
        %2326 = vmatprep.subr.mxu0 0.0
        %2327 = vmatpush1.msra.mxu0 0.0
        %2328 = vmatprep.subr.mxu0 0.0
        %2329 = vmatpush1.msra.mxu0 0.0
        %2330 = vmatprep.subr.mxu0 0.0
        %2331 = vmatpush1.msra.mxu0 0.0
        %2332 = vmatprep.subr.mxu0 0.0
        %2333 = vmatpush1.msra.mxu0 0.0
        %2334 = vmatprep.subr.mxu0 0.0
        %2335 = vmatpush1.msra.mxu0 0.0
        %2336 = vmatprep.subr.mxu0 0.0
        %2337 = vmatpush1.msra.mxu0 0.0
        %2338 = vmatprep.subr.mxu0 0.0
        %2339 = vmatpush1.msra.mxu0 0.0
        %2340 = vmatprep.subr.mxu0 0.0
        %2341 = vmatpush1.msra.mxu0 0.0
        %2342 = vmatprep.subr.mxu0 0.0
        %2343 = vmatpush1.msra.mxu0 0.0
        %2344 = vmatprep.subr.mxu0 0.0
        %2345 = vmatpush1.msra.mxu0 0.0
        %2346 = vmatprep.subr.mxu0 0.0
        %2347 = vmatpush1.msra.mxu0 0.0
        %2348 = vmatprep.subr.mxu0 0.0
        %2349 = vmatpush1.msra.mxu0 0.0
        %2350 = vmatprep.subr.mxu0 0.0
        %2351 = vmatpush1.msra.mxu0 0.0
        %2352 = vmatprep.subr.mxu0 0.0
        %2353 = vmatpush1.msra.mxu0 0.0
        %2354 = vmatprep.subr.mxu0 0.0
        %2355 = vmatpush1.msra.mxu0 0.0
        %2356 = vmatprep.subr.mxu0 0.0
        %2357 = vmatpush1.msra.mxu0 0.0
        %2358 = vmatprep.subr.mxu0 0.0
        %2359 = vmatpush1.msra.mxu0 0.0
        %2360 = vmatprep.subr.mxu0 0.0
        %2361 = vmatpush1.msra.mxu0 0.0
        %2362 = vmatprep.subr.mxu0 0.0
        %2363 = vmatpush1.msra.mxu0 0.0
        %2364 = vmatprep.subr.mxu0 0.0
        %2365 = vmatpush1.msra.mxu0 0.0
        %2366 = vmatprep.subr.mxu0 0.0
        %2367 = vmatpush1.msra.mxu0 0.0
        %2368 = vmatprep.subr.mxu0 0.0
        %2369 = vmatpush1.msra.mxu0 0.0
        %2370 = vmatprep.subr.mxu0 0.0
        %2371 = vmatpush1.msra.mxu0 0.0
        %2372 = vmatprep.subr.mxu0 0.0
        %2373 = vmatpush1.msra.mxu0 0.0
        %2374 = vmatprep.subr.mxu0 0.0
        %2375 = vmatpush1.msra.mxu0 0.0
        %2376 = vmatprep.subr.mxu0 0.0
        %2377 = vmatpush1.msra.mxu0 0.0
        %2378 = vmatprep.mubr.f32.mxu0 0.0
        %v2379 = vand.u32 %v1884, 4294901760
        %2380 = vmatmul.mubr.f32.gmra.mrb[0].mxu0 %v2379
        %v2381 = vpop.f32.mrb[0].mxu0
        %v2382 = vadd.f32 %v2303, %v2381
        %v2383 = vpop.f32.mrb[0].mxu0
        %2384 = vmatprep.mubr.f32.mxu0 0.0
        %v2385 = vand.u32 %v1887, 4294901760
        %2386 = vmatmul.mubr.f32.gmra.mrb[0].mxu0 %v2385
        %v2387 = vpop.f32.mrb[0].mxu0
        %v2388 = vadd.f32 %v2309, %v2387
        %v2389 = vpop.f32.mrb[0].mxu0
        %2390 = vdwg.mxu0
        %v2392 = vsel %vm332, %v1881, 0
        %v2395 = vsel %vm332, %v1882, 0
        %2397 = vmatprep.subr.mxu0 0.0
        %v2398 = vand.u32 %v1834, 4294901760
        %2399 = vmatpush1.msra.mxu0 %v2398
        %2400 = vmatprep.subr.mxu0 0.0
        %v2401 = vand.u32 %v1840, 4294901760
        %2402 = vmatpush1.msra.mxu0 %v2401
        %2403 = vmatprep.subr.mxu0 0.0
        %2404 = vmatpush1.msra.mxu0 0.0
        %2405 = vmatprep.subr.mxu0 0.0
        %2406 = vmatpush1.msra.mxu0 0.0
        %2407 = vmatprep.subr.mxu0 0.0
        %2408 = vmatpush1.msra.mxu0 0.0
        %2409 = vmatprep.subr.mxu0 0.0
        %2410 = vmatpush1.msra.mxu0 0.0
        %2411 = vmatprep.subr.mxu0 0.0
        %2412 = vmatpush1.msra.mxu0 0.0
        %2413 = vmatprep.subr.mxu0 0.0
        %2414 = vmatpush1.msra.mxu0 0.0
        %2415 = vmatprep.subr.mxu0 0.0
        %2416 = vmatpush1.msra.mxu0 0.0
        %2417 = vmatprep.subr.mxu0 0.0
        %2418 = vmatpush1.msra.mxu0 0.0
        %2419 = vmatprep.subr.mxu0 0.0
        %2420 = vmatpush1.msra.mxu0 0.0
        %2421 = vmatprep.subr.mxu0 0.0
        %2422 = vmatpush1.msra.mxu0 0.0
        %2423 = vmatprep.subr.mxu0 0.0
        %2424 = vmatpush1.msra.mxu0 0.0
        %2425 = vmatprep.subr.mxu0 0.0
        %2426 = vmatpush1.msra.mxu0 0.0
        %2427 = vmatprep.subr.mxu0 0.0
        %2428 = vmatpush1.msra.mxu0 0.0
        %2429 = vmatprep.subr.mxu0 0.0
        %2430 = vmatpush1.msra.mxu0 0.0
        %2431 = vmatprep.subr.mxu0 0.0
        %2432 = vmatpush1.msra.mxu0 0.0
        %2433 = vmatprep.subr.mxu0 0.0
        %2434 = vmatpush1.msra.mxu0 0.0
        %2435 = vmatprep.subr.mxu0 0.0
        %2436 = vmatpush1.msra.mxu0 0.0
        %2437 = vmatprep.subr.mxu0 0.0
        %2438 = vmatpush1.msra.mxu0 0.0
        %2439 = vmatprep.subr.mxu0 0.0
        %2440 = vmatpush1.msra.mxu0 0.0
        %2441 = vmatprep.subr.mxu0 0.0
        %2442 = vmatpush1.msra.mxu0 0.0
        %2443 = vmatprep.subr.mxu0 0.0
        %2444 = vmatpush1.msra.mxu0 0.0
        %2445 = vmatprep.subr.mxu0 0.0
        %2446 = vmatpush1.msra.mxu0 0.0
        %2447 = vmatprep.subr.mxu0 0.0
        %2448 = vmatpush1.msra.mxu0 0.0
        %2449 = vmatprep.subr.mxu0 0.0
        %2450 = vmatpush1.msra.mxu0 0.0
        %2451 = vmatprep.subr.mxu0 0.0
        %2452 = vmatpush1.msra.mxu0 0.0
        %2453 = vmatprep.subr.mxu0 0.0
        %2454 = vmatpush1.msra.mxu0 0.0
        %2455 = vmatprep.subr.mxu0 0.0
        %2456 = vmatpush1.msra.mxu0 0.0
        %2457 = vmatprep.subr.mxu0 0.0
        %2458 = vmatpush1.msra.mxu0 0.0
        %2459 = vmatprep.subr.mxu0 0.0
        %2460 = vmatpush1.msra.mxu0 0.0
        %2461 = vmatprep.subr.mxu0 0.0
        %2462 = vmatpush1.msra.mxu0 0.0
        %2463 = vmatprep.mubr.f32.mxu0 0.0
        %v2464 = vand.u32 %v2392, 4294901760
        %v2465 = vsub.f32 %v2392, %v2464
        %v2466 = vand.u32 %v2465, 4294901760
        %v2467 = vsub.f32 %v2465, %v2466
        %v2468 = vand.u32 %v2467, 4294901760
        %2469 = vmatmul.mubr.f32.gmra.mrb[0].mxu0 %v2468
        %v2470 = vpop.f32.mrb[0].mxu0
        %v2471 = vadd.f32 0.0, %v2470
        %v2472 = vpop.f32.mrb[0].mxu0
        %2473 = vmatprep.mubr.f32.mxu0 0.0
        %v2474 = vand.u32 %v2395, 4294901760
        %v2475 = vsub.f32 %v2395, %v2474
        %v2476 = vand.u32 %v2475, 4294901760
        %v2477 = vsub.f32 %v2475, %v2476
        %v2478 = vand.u32 %v2477, 4294901760
        %2479 = vmatmul.mubr.f32.gmra.mrb[0].mxu0 %v2478
        %v2480 = vpop.f32.mrb[0].mxu0
        %v2481 = vadd.f32 0.0, %v2480
        %v2482 = vpop.f32.mrb[0].mxu0
        %2483 = vdwg.mxu0
        %2484 = vmatprep.subr.mxu0 0.0
        %v2485 = vand.u32 %v1834, 4294901760
        %v2486 = vsub.f32 %v1834, %v2485
        %v2487 = vand.u32 %v2486, 4294901760
        %v2488 = vsub.f32 %v2486, %v2487
        %v2489 = vand.u32 %v2488, 4294901760
        %2490 = vmatpush1.msra.mxu0 %v2489
        %2491 = vmatprep.subr.mxu0 0.0
        %v2492 = vand.u32 %v1840, 4294901760
        %v2493 = vsub.f32 %v1840, %v2492
        %v2494 = vand.u32 %v2493, 4294901760
        %v2495 = vsub.f32 %v2493, %v2494
        %v2496 = vand.u32 %v2495, 4294901760
        %2497 = vmatpush1.msra.mxu0 %v2496
        %2498 = vmatprep.subr.mxu0 0.0
        %2499 = vmatpush1.msra.mxu0 0.0
        %2500 = vmatprep.subr.mxu0 0.0
        %2501 = vmatpush1.msra.mxu0 0.0
        %2502 = vmatprep.subr.mxu0 0.0
        %2503 = vmatpush1.msra.mxu0 0.0
        %2504 = vmatprep.subr.mxu0 0.0
        %2505 = vmatpush1.msra.mxu0 0.0
        %2506 = vmatprep.subr.mxu0 0.0
        %2507 = vmatpush1.msra.mxu0 0.0
        %2508 = vmatprep.subr.mxu0 0.0
        %2509 = vmatpush1.msra.mxu0 0.0
        %2510 = vmatprep.subr.mxu0 0.0
        %2511 = vmatpush1.msra.mxu0 0.0
        %2512 = vmatprep.subr.mxu0 0.0
        %2513 = vmatpush1.msra.mxu0 0.0
        %2514 = vmatprep.subr.mxu0 0.0
        %2515 = vmatpush1.msra.mxu0 0.0
        %2516 = vmatprep.subr.mxu0 0.0
        %2517 = vmatpush1.msra.mxu0 0.0
        %2518 = vmatprep.subr.mxu0 0.0
        %2519 = vmatpush1.msra.mxu0 0.0
        %2520 = vmatprep.subr.mxu0 0.0
        %2521 = vmatpush1.msra.mxu0 0.0
        %2522 = vmatprep.subr.mxu0 0.0
        %2523 = vmatpush1.msra.mxu0 0.0
        %2524 = vmatprep.subr.mxu0 0.0
        %2525 = vmatpush1.msra.mxu0 0.0
        %2526 = vmatprep.subr.mxu0 0.0
        %2527 = vmatpush1.msra.mxu0 0.0
        %2528 = vmatprep.subr.mxu0 0.0
        %2529 = vmatpush1.msra.mxu0 0.0
        %2530 = vmatprep.subr.mxu0 0.0
        %2531 = vmatpush1.msra.mxu0 0.0
        %2532 = vmatprep.subr.mxu0 0.0
        %2533 = vmatpush1.msra.mxu0 0.0
        %2534 = vmatprep.subr.mxu0 0.0
        %2535 = vmatpush1.msra.mxu0 0.0
        %2536 = vmatprep.subr.mxu0 0.0
        %2537 = vmatpush1.msra.mxu0 0.0
        %2538 = vmatprep.subr.mxu0 0.0
        %2539 = vmatpush1.msra.mxu0 0.0
        %2540 = vmatprep.subr.mxu0 0.0
        %2541 = vmatpush1.msra.mxu0 0.0
        %2542 = vmatprep.subr.mxu0 0.0
        %2543 = vmatpush1.msra.mxu0 0.0
        %2544 = vmatprep.subr.mxu0 0.0
        %2545 = vmatpush1.msra.mxu0 0.0
        %2546 = vmatprep.subr.mxu0 0.0
        %2547 = vmatpush1.msra.mxu0 0.0
        %2548 = vmatprep.subr.mxu0 0.0
        %2549 = vmatpush1.msra.mxu0 0.0
        %2550 = vmatprep.subr.mxu0 0.0
        %2551 = vmatpush1.msra.mxu0 0.0
        %2552 = vmatprep.subr.mxu0 0.0
        %2553 = vmatpush1.msra.mxu0 0.0
        %2554 = vmatprep.subr.mxu0 0.0
        %2555 = vmatpush1.msra.mxu0 0.0
        %2556 = vmatprep.subr.mxu0 0.0
        %2557 = vmatpush1.msra.mxu0 0.0
        %2558 = vmatprep.mubr.f32.mxu0 0.0
        %v2559 = vand.u32 %v2392, 4294901760
        %2560 = vmatmul.mubr.f32.gmra.mrb[0].mxu0 %v2559
        %v2561 = vpop.f32.mrb[0].mxu0
        %v2562 = vadd.f32 %v2471, %v2561
        %v2563 = vpop.f32.mrb[0].mxu0
        %2564 = vmatprep.mubr.f32.mxu0 0.0
        %v2565 = vand.u32 %v2395, 4294901760
        %2566 = vmatmul.mubr.f32.gmra.mrb[0].mxu0 %v2565
        %v2567 = vpop.f32.mrb[0].mxu0
        %v2568 = vadd.f32 %v2481, %v2567
        %v2569 = vpop.f32.mrb[0].mxu0
        %2570 = vdwg.mxu0
        %2571 = vmatprep.subr.mxu0 0.0
        %v2572 = vand.u32 %v1834, 4294901760
        %v2573 = vsub.f32 %v1834, %v2572
        %2574 = vmatpush1.msra.mxu0 %v2573
        %2575 = vmatprep.subr.mxu0 0.0
        %v2576 = vand.u32 %v1840, 4294901760
        %v2577 = vsub.f32 %v1840, %v2576
        %2578 = vmatpush1.msra.mxu0 %v2577
        %2579 = vmatprep.subr.mxu0 0.0
        %2580 = vmatpush1.msra.mxu0 0.0
        %2581 = vmatprep.subr.mxu0 0.0
        %2582 = vmatpush1.msra.mxu0 0.0
        %2583 = vmatprep.subr.mxu0 0.0
        %2584 = vmatpush1.msra.mxu0 0.0
        %2585 = vmatprep.subr.mxu0 0.0
        %2586 = vmatpush1.msra.mxu0 0.0
        %2587 = vmatprep.subr.mxu0 0.0
        %2588 = vmatpush1.msra.mxu0 0.0
        %2589 = vmatprep.subr.mxu0 0.0
        %2590 = vmatpush1.msra.mxu0 0.0
        %2591 = vmatprep.subr.mxu0 0.0
        %2592 = vmatpush1.msra.mxu0 0.0
        %2593 = vmatprep.subr.mxu0 0.0
        %2594 = vmatpush1.msra.mxu0 0.0
        %2595 = vmatprep.subr.mxu0 0.0
        %2596 = vmatpush1.msra.mxu0 0.0
        %2597 = vmatprep.subr.mxu0 0.0
        %2598 = vmatpush1.msra.mxu0 0.0
        %2599 = vmatprep.subr.mxu0 0.0
        %2600 = vmatpush1.msra.mxu0 0.0
        %2601 = vmatprep.subr.mxu0 0.0
        %2602 = vmatpush1.msra.mxu0 0.0
        %2603 = vmatprep.subr.mxu0 0.0
        %2604 = vmatpush1.msra.mxu0 0.0
        %2605 = vmatprep.subr.mxu0 0.0
        %2606 = vmatpush1.msra.mxu0 0.0
        %2607 = vmatprep.subr.mxu0 0.0
        %2608 = vmatpush1.msra.mxu0 0.0
        %2609 = vmatprep.subr.mxu0 0.0
        %2610 = vmatpush1.msra.mxu0 0.0
        %2611 = vmatprep.subr.mxu0 0.0
        %2612 = vmatpush1.msra.mxu0 0.0
        %2613 = vmatprep.subr.mxu0 0.0
        %2614 = vmatpush1.msra.mxu0 0.0
        %2615 = vmatprep.subr.mxu0 0.0
        %2616 = vmatpush1.msra.mxu0 0.0
        %2617 = vmatprep.subr.mxu0 0.0
        %2618 = vmatpush1.msra.mxu0 0.0
        %2619 = vmatprep.subr.mxu0 0.0
        %2620 = vmatpush1.msra.mxu0 0.0
        %2621 = vmatprep.subr.mxu0 0.0
        %2622 = vmatpush1.msra.mxu0 0.0
        %2623 = vmatprep.subr.mxu0 0.0
        %2624 = vmatpush1.msra.mxu0 0.0
        %2625 = vmatprep.subr.mxu0 0.0
        %2626 = vmatpush1.msra.mxu0 0.0
        %2627 = vmatprep.subr.mxu0 0.0
        %2628 = vmatpush1.msra.mxu0 0.0
        %2629 = vmatprep.subr.mxu0 0.0
        %2630 = vmatpush1.msra.mxu0 0.0
        %2631 = vmatprep.subr.mxu0 0.0
        %2632 = vmatpush1.msra.mxu0 0.0
        %2633 = vmatprep.subr.mxu0 0.0
        %2634 = vmatpush1.msra.mxu0 0.0
        %2635 = vmatprep.subr.mxu0 0.0
        %2636 = vmatpush1.msra.mxu0 0.0
        %2637 = vmatprep.subr.mxu0 0.0
        %2638 = vmatpush1.msra.mxu0 0.0
        %2639 = vmatprep.mubr.f32.mxu0 0.0
        %v2640 = vand.u32 %v2392, 4294901760
        %v2641 = vsub.f32 %v2392, %v2640
        %2642 = vmatmul.mubr.f32.gmra.mrb[0].mxu0 %v2641
        %v2643 = vpop.f32.mrb[0].mxu0
        %v2644 = vadd.f32 %v2562, %v2643
        %v2645 = vpop.f32.mrb[0].mxu0
        %2646 = vmatprep.mubr.f32.mxu0 0.0
        %v2647 = vand.u32 %v2395, 4294901760
        %v2648 = vsub.f32 %v2395, %v2647
        %2649 = vmatmul.mubr.f32.gmra.mrb[0].mxu0 %v2648
        %v2650 = vpop.f32.mrb[0].mxu0
        %v2651 = vadd.f32 %v2568, %v2650
        %v2652 = vpop.f32.mrb[0].mxu0
        %2653 = vdwg.mxu0
        %2654 = vmatprep.subr.mxu0 0.0
        %v2655 = vand.u32 %v1834, 4294901760
        %2656 = vmatpush1.msra.mxu0 %v2655
        %2657 = vmatprep.subr.mxu0 0.0
        %v2658 = vand.u32 %v1840, 4294901760
        %2659 = vmatpush1.msra.mxu0 %v2658
        %2660 = vmatprep.subr.mxu0 0.0
        %2661 = vmatpush1.msra.mxu0 0.0
        %2662 = vmatprep.subr.mxu0 0.0
        %2663 = vmatpush1.msra.mxu0 0.0
        %2664 = vmatprep.subr.mxu0 0.0
        %2665 = vmatpush1.msra.mxu0 0.0
        %2666 = vmatprep.subr.mxu0 0.0
        %2667 = vmatpush1.msra.mxu0 0.0
        %2668 = vmatprep.subr.mxu0 0.0
        %2669 = vmatpush1.msra.mxu0 0.0
        %2670 = vmatprep.subr.mxu0 0.0
        %2671 = vmatpush1.msra.mxu0 0.0
        %2672 = vmatprep.subr.mxu0 0.0
        %2673 = vmatpush1.msra.mxu0 0.0
        %2674 = vmatprep.subr.mxu0 0.0
        %2675 = vmatpush1.msra.mxu0 0.0
        %2676 = vmatprep.subr.mxu0 0.0
        %2677 = vmatpush1.msra.mxu0 0.0
        %2678 = vmatprep.subr.mxu0 0.0
        %2679 = vmatpush1.msra.mxu0 0.0
        %2680 = vmatprep.subr.mxu0 0.0
        %2681 = vmatpush1.msra.mxu0 0.0
        %2682 = vmatprep.subr.mxu0 0.0
        %2683 = vmatpush1.msra.mxu0 0.0
        %2684 = vmatprep.subr.mxu0 0.0
        %2685 = vmatpush1.msra.mxu0 0.0
        %2686 = vmatprep.subr.mxu0 0.0
        %2687 = vmatpush1.msra.mxu0 0.0
        %2688 = vmatprep.subr.mxu0 0.0
        %2689 = vmatpush1.msra.mxu0 0.0
        %2690 = vmatprep.subr.mxu0 0.0
        %2691 = vmatpush1.msra.mxu0 0.0
        %2692 = vmatprep.subr.mxu0 0.0
        %2693 = vmatpush1.msra.mxu0 0.0
        %2694 = vmatprep.subr.mxu0 0.0
        %2695 = vmatpush1.msra.mxu0 0.0
        %2696 = vmatprep.subr.mxu0 0.0
        %2697 = vmatpush1.msra.mxu0 0.0
        %2698 = vmatprep.subr.mxu0 0.0
        %2699 = vmatpush1.msra.mxu0 0.0
        %2700 = vmatprep.subr.mxu0 0.0
        %2701 = vmatpush1.msra.mxu0 0.0
        %2702 = vmatprep.subr.mxu0 0.0
        %2703 = vmatpush1.msra.mxu0 0.0
        %2704 = vmatprep.subr.mxu0 0.0
        %2705 = vmatpush1.msra.mxu0 0.0
        %2706 = vmatprep.subr.mxu0 0.0
        %2707 = vmatpush1.msra.mxu0 0.0
        %2708 = vmatprep.subr.mxu0 0.0
        %2709 = vmatpush1.msra.mxu0 0.0
        %2710 = vmatprep.subr.mxu0 0.0
        %2711 = vmatpush1.msra.mxu0 0.0
        %2712 = vmatprep.subr.mxu0 0.0
        %2713 = vmatpush1.msra.mxu0 0.0
        %2714 = vmatprep.subr.mxu0 0.0
        %2715 = vmatpush1.msra.mxu0 0.0
        %2716 = vmatprep.subr.mxu0 0.0
        %2717 = vmatpush1.msra.mxu0 0.0
        %2718 = vmatprep.subr.mxu0 0.0
        %2719 = vmatpush1.msra.mxu0 0.0
        %2720 = vmatprep.mubr.f32.mxu0 0.0
        %v2721 = vand.u32 %v2392, 4294901760
        %v2722 = vsub.f32 %v2392, %v2721
        %v2723 = vand.u32 %v2722, 4294901760
        %2724 = vmatmul.mubr.f32.gmra.mrb[0].mxu0 %v2723
        %v2725 = vpop.f32.mrb[0].mxu0
        %v2726 = vadd.f32 %v2644, %v2725
        %v2727 = vpop.f32.mrb[0].mxu0
        %2728 = vmatprep.mubr.f32.mxu0 0.0
        %v2729 = vand.u32 %v2395, 4294901760
        %v2730 = vsub.f32 %v2395, %v2729
        %v2731 = vand.u32 %v2730, 4294901760
        %2732 = vmatmul.mubr.f32.gmra.mrb[0].mxu0 %v2731
        %v2733 = vpop.f32.mrb[0].mxu0
        %v2734 = vadd.f32 %v2651, %v2733
        %v2735 = vpop.f32.mrb[0].mxu0
        %2736 = vdwg.mxu0
        %2737 = vmatprep.subr.mxu0 0.0
        %v2738 = vand.u32 %v1834, 4294901760
        %v2739 = vsub.f32 %v1834, %v2738
        %v2740 = vand.u32 %v2739, 4294901760
        %2741 = vmatpush1.msra.mxu0 %v2740
        %2742 = vmatprep.subr.mxu0 0.0
        %v2743 = vand.u32 %v1840, 4294901760
        %v2744 = vsub.f32 %v1840, %v2743
        %v2745 = vand.u32 %v2744, 4294901760
        %2746 = vmatpush1.msra.mxu0 %v2745
        %2747 = vmatprep.subr.mxu0 0.0
        %2748 = vmatpush1.msra.mxu0 0.0
        %2749 = vmatprep.subr.mxu0 0.0
        %2750 = vmatpush1.msra.mxu0 0.0
        %2751 = vmatprep.subr.mxu0 0.0
        %2752 = vmatpush1.msra.mxu0 0.0
        %2753 = vmatprep.subr.mxu0 0.0
        %2754 = vmatpush1.msra.mxu0 0.0
        %2755 = vmatprep.subr.mxu0 0.0
        %2756 = vmatpush1.msra.mxu0 0.0
        %2757 = vmatprep.subr.mxu0 0.0
        %2758 = vmatpush1.msra.mxu0 0.0
        %2759 = vmatprep.subr.mxu0 0.0
        %2760 = vmatpush1.msra.mxu0 0.0
        %2761 = vmatprep.subr.mxu0 0.0
        %2762 = vmatpush1.msra.mxu0 0.0
        %2763 = vmatprep.subr.mxu0 0.0
        %2764 = vmatpush1.msra.mxu0 0.0
        %2765 = vmatprep.subr.mxu0 0.0
        %2766 = vmatpush1.msra.mxu0 0.0
        %2767 = vmatprep.subr.mxu0 0.0
        %2768 = vmatpush1.msra.mxu0 0.0
        %2769 = vmatprep.subr.mxu0 0.0
        %2770 = vmatpush1.msra.mxu0 0.0
        %2771 = vmatprep.subr.mxu0 0.0
        %2772 = vmatpush1.msra.mxu0 0.0
        %2773 = vmatprep.subr.mxu0 0.0
        %2774 = vmatpush1.msra.mxu0 0.0
        %2775 = vmatprep.subr.mxu0 0.0
        %2776 = vmatpush1.msra.mxu0 0.0
        %2777 = vmatprep.subr.mxu0 0.0
        %2778 = vmatpush1.msra.mxu0 0.0
        %2779 = vmatprep.subr.mxu0 0.0
        %2780 = vmatpush1.msra.mxu0 0.0
        %2781 = vmatprep.subr.mxu0 0.0
        %2782 = vmatpush1.msra.mxu0 0.0
        %2783 = vmatprep.subr.mxu0 0.0
        %2784 = vmatpush1.msra.mxu0 0.0
        %2785 = vmatprep.subr.mxu0 0.0
        %2786 = vmatpush1.msra.mxu0 0.0
        %2787 = vmatprep.subr.mxu0 0.0
        %2788 = vmatpush1.msra.mxu0 0.0
        %2789 = vmatprep.subr.mxu0 0.0
        %2790 = vmatpush1.msra.mxu0 0.0
        %2791 = vmatprep.subr.mxu0 0.0
        %2792 = vmatpush1.msra.mxu0 0.0
        %2793 = vmatprep.subr.mxu0 0.0
        %2794 = vmatpush1.msra.mxu0 0.0
        %2795 = vmatprep.subr.mxu0 0.0
        %2796 = vmatpush1.msra.mxu0 0.0
        %2797 = vmatprep.subr.mxu0 0.0
        %2798 = vmatpush1.msra.mxu0 0.0
        %2799 = vmatprep.subr.mxu0 0.0
        %2800 = vmatpush1.msra.mxu0 0.0
        %2801 = vmatprep.subr.mxu0 0.0
        %2802 = vmatpush1.msra.mxu0 0.0
        %2803 = vmatprep.subr.mxu0 0.0
        %2804 = vmatpush1.msra.mxu0 0.0
        %2805 = vmatprep.subr.mxu0 0.0
        %2806 = vmatpush1.msra.mxu0 0.0
        %2807 = vmatprep.mubr.f32.mxu0 0.0
        %v2808 = vand.u32 %v2392, 4294901760
        %2809 = vmatmul.mubr.f32.gmra.mrb[0].mxu0 %v2808
        %v2810 = vpop.f32.mrb[0].mxu0
        %v2811 = vadd.f32 %v2726, %v2810
        %v2812 = vpop.f32.mrb[0].mxu0
        %2813 = vmatprep.mubr.f32.mxu0 0.0
        %v2814 = vand.u32 %v2395, 4294901760
        %2815 = vmatmul.mubr.f32.gmra.mrb[0].mxu0 %v2814
        %v2816 = vpop.f32.mrb[0].mxu0
        %v2817 = vadd.f32 %v2734, %v2816
        %v2818 = vpop.f32.mrb[0].mxu0
        %2819 = vdwg.mxu0
        %2820 = vmatprep.subr.mxu0 0.0
        %v2821 = vand.u32 %v1834, 4294901760
        %2822 = vmatpush1.msra.mxu0 %v2821
        %2823 = vmatprep.subr.mxu0 0.0
        %v2824 = vand.u32 %v1840, 4294901760
        %2825 = vmatpush1.msra.mxu0 %v2824
        %2826 = vmatprep.subr.mxu0 0.0
        %2827 = vmatpush1.msra.mxu0 0.0
        %2828 = vmatprep.subr.mxu0 0.0
        %2829 = vmatpush1.msra.mxu0 0.0
        %2830 = vmatprep.subr.mxu0 0.0
        %2831 = vmatpush1.msra.mxu0 0.0
        %2832 = vmatprep.subr.mxu0 0.0
        %2833 = vmatpush1.msra.mxu0 0.0
        %2834 = vmatprep.subr.mxu0 0.0
        %2835 = vmatpush1.msra.mxu0 0.0
        %2836 = vmatprep.subr.mxu0 0.0
        %2837 = vmatpush1.msra.mxu0 0.0
        %2838 = vmatprep.subr.mxu0 0.0
        %2839 = vmatpush1.msra.mxu0 0.0
        %2840 = vmatprep.subr.mxu0 0.0
        %2841 = vmatpush1.msra.mxu0 0.0
        %2842 = vmatprep.subr.mxu0 0.0
        %2843 = vmatpush1.msra.mxu0 0.0
        %2844 = vmatprep.subr.mxu0 0.0
        %2845 = vmatpush1.msra.mxu0 0.0
        %2846 = vmatprep.subr.mxu0 0.0
        %2847 = vmatpush1.msra.mxu0 0.0
        %2848 = vmatprep.subr.mxu0 0.0
        %2849 = vmatpush1.msra.mxu0 0.0
        %2850 = vmatprep.subr.mxu0 0.0
        %2851 = vmatpush1.msra.mxu0 0.0
        %2852 = vmatprep.subr.mxu0 0.0
        %2853 = vmatpush1.msra.mxu0 0.0
        %2854 = vmatprep.subr.mxu0 0.0
        %2855 = vmatpush1.msra.mxu0 0.0
        %2856 = vmatprep.subr.mxu0 0.0
        %2857 = vmatpush1.msra.mxu0 0.0
        %2858 = vmatprep.subr.mxu0 0.0
        %2859 = vmatpush1.msra.mxu0 0.0
        %2860 = vmatprep.subr.mxu0 0.0
        %2861 = vmatpush1.msra.mxu0 0.0
        %2862 = vmatprep.subr.mxu0 0.0
        %2863 = vmatpush1.msra.mxu0 0.0
        %2864 = vmatprep.subr.mxu0 0.0
        %2865 = vmatpush1.msra.mxu0 0.0
        %2866 = vmatprep.subr.mxu0 0.0
        %2867 = vmatpush1.msra.mxu0 0.0
        %2868 = vmatprep.subr.mxu0 0.0
        %2869 = vmatpush1.msra.mxu0 0.0
        %2870 = vmatprep.subr.mxu0 0.0
        %2871 = vmatpush1.msra.mxu0 0.0
        %2872 = vmatprep.subr.mxu0 0.0
        %2873 = vmatpush1.msra.mxu0 0.0
        %2874 = vmatprep.subr.mxu0 0.0
        %2875 = vmatpush1.msra.mxu0 0.0
        %2876 = vmatprep.subr.mxu0 0.0
        %2877 = vmatpush1.msra.mxu0 0.0
        %2878 = vmatprep.subr.mxu0 0.0
        %2879 = vmatpush1.msra.mxu0 0.0
        %2880 = vmatprep.subr.mxu0 0.0
        %2881 = vmatpush1.msra.mxu0 0.0
        %2882 = vmatprep.subr.mxu0 0.0
        %2883 = vmatpush1.msra.mxu0 0.0
        %2884 = vmatprep.subr.mxu0 0.0
        %2885 = vmatpush1.msra.mxu0 0.0
        %2886 = vmatprep.mubr.f32.mxu0 0.0
        %v2887 = vand.u32 %v2392, 4294901760
        %2888 = vmatmul.mubr.f32.gmra.mrb[0].mxu0 %v2887
        %v2889 = vpop.f32.mrb[0].mxu0
        %v2890 = vadd.f32 %v2811, %v2889
        %v2891 = vpop.f32.mrb[0].mxu0
        %2892 = vmatprep.mubr.f32.mxu0 0.0
        %v2893 = vand.u32 %v2395, 4294901760
        %2894 = vmatmul.mubr.f32.gmra.mrb[0].mxu0 %v2893
        %v2895 = vpop.f32.mrb[0].mxu0
        %v2896 = vadd.f32 %v2817, %v2895
        %v2897 = vpop.f32.mrb[0].mxu0
        %2898 = vdwg.mxu0
        %v2899 = vsub.f32 %v2382, %v2890
        %v2900 = vsub.f32 %v2388, %v2896
        %2901 = vst.msk [vmem:[%s319] sm:$0xff] %vm332, %v2899
        %2902 = vst.msk [vmem:[%s319 + $0x8] sm:$0xff] %vm332, %v2900
        %2903 = vmatprep.subr.mxu0 0.0
        %v2904 = vand.u32 %v1084, 4294901760
        %2905 = vmatpush1.msra.mxu0 %v2904
        %2906 = vmatprep.subr.mxu0 0.0
        %v2907 = vand.u32 %v1090, 4294901760
        %2908 = vmatpush1.msra.mxu0 %v2907
        %2909 = vmatprep.subr.mxu0 0.0
        %2910 = vmatpush1.msra.mxu0 0.0
        %2911 = vmatprep.subr.mxu0 0.0
        %2912 = vmatpush1.msra.mxu0 0.0
        %2913 = vmatprep.subr.mxu0 0.0
        %2914 = vmatpush1.msra.mxu0 0.0
        %2915 = vmatprep.subr.mxu0 0.0
        %2916 = vmatpush1.msra.mxu0 0.0
        %2917 = vmatprep.subr.mxu0 0.0
        %2918 = vmatpush1.msra.mxu0 0.0
        %2919 = vmatprep.subr.mxu0 0.0
        %2920 = vmatpush1.msra.mxu0 0.0
        %2921 = vmatprep.subr.mxu0 0.0
        %2922 = vmatpush1.msra.mxu0 0.0
        %2923 = vmatprep.subr.mxu0 0.0
        %2924 = vmatpush1.msra.mxu0 0.0
        %2925 = vmatprep.subr.mxu0 0.0
        %2926 = vmatpush1.msra.mxu0 0.0
        %2927 = vmatprep.subr.mxu0 0.0
        %2928 = vmatpush1.msra.mxu0 0.0
        %2929 = vmatprep.subr.mxu0 0.0
        %2930 = vmatpush1.msra.mxu0 0.0
        %2931 = vmatprep.subr.mxu0 0.0
        %2932 = vmatpush1.msra.mxu0 0.0
        %2933 = vmatprep.subr.mxu0 0.0
        %2934 = vmatpush1.msra.mxu0 0.0
        %2935 = vmatprep.subr.mxu0 0.0
        %2936 = vmatpush1.msra.mxu0 0.0
        %2937 = vmatprep.subr.mxu0 0.0
        %2938 = vmatpush1.msra.mxu0 0.0
        %2939 = vmatprep.subr.mxu0 0.0
        %2940 = vmatpush1.msra.mxu0 0.0
        %2941 = vmatprep.subr.mxu0 0.0
        %2942 = vmatpush1.msra.mxu0 0.0
        %2943 = vmatprep.subr.mxu0 0.0
        %2944 = vmatpush1.msra.mxu0 0.0
        %2945 = vmatprep.subr.mxu0 0.0
        %2946 = vmatpush1.msra.mxu0 0.0
        %2947 = vmatprep.subr.mxu0 0.0
        %2948 = vmatpush1.msra.mxu0 0.0
        %2949 = vmatprep.subr.mxu0 0.0
        %2950 = vmatpush1.msra.mxu0 0.0
        %2951 = vmatprep.subr.mxu0 0.0
        %2952 = vmatpush1.msra.mxu0 0.0
        %2953 = vmatprep.subr.mxu0 0.0
        %2954 = vmatpush1.msra.mxu0 0.0
        %2955 = vmatprep.subr.mxu0 0.0
        %2956 = vmatpush1.msra.mxu0 0.0
        %2957 = vmatprep.subr.mxu0 0.0
        %2958 = vmatpush1.msra.mxu0 0.0
        %2959 = vmatprep.subr.mxu0 0.0
        %2960 = vmatpush1.msra.mxu0 0.0
        %2961 = vmatprep.subr.mxu0 0.0
        %2962 = vmatpush1.msra.mxu0 0.0
        %2963 = vmatprep.subr.mxu0 0.0
        %2964 = vmatpush1.msra.mxu0 0.0
        %2965 = vmatprep.subr.mxu0 0.0
        %2966 = vmatpush1.msra.mxu0 0.0
        %2967 = vmatprep.subr.mxu0 0.0
        %2968 = vmatpush1.msra.mxu0 0.0
        %2969 = vmatprep.mubr.f32.mxu0 0.0
        %v2970 = vand.u32 %v1884, 4294901760
        %v2971 = vsub.f32 %v1884, %v2970
        %v2972 = vand.u32 %v2971, 4294901760
        %v2973 = vsub.f32 %v2971, %v2972
        %v2974 = vand.u32 %v2973, 4294901760
        %2975 = vmatmul.mubr.f32.gmra.mrb[0].mxu0 %v2974
        %v2976 = vpop.f32.mrb[0].mxu0
        %v2977 = vadd.f32 0.0, %v2976
        %v2978 = vpop.f32.mrb[0].mxu0
        %2979 = vmatprep.mubr.f32.mxu0 0.0
        %v2980 = vand.u32 %v1887, 4294901760
        %v2981 = vsub.f32 %v1887, %v2980
        %v2982 = vand.u32 %v2981, 4294901760
        %v2983 = vsub.f32 %v2981, %v2982
        %v2984 = vand.u32 %v2983, 4294901760
        %2985 = vmatmul.mubr.f32.gmra.mrb[0].mxu0 %v2984
        %v2986 = vpop.f32.mrb[0].mxu0
        %v2987 = vadd.f32 0.0, %v2986
        %v2988 = vpop.f32.mrb[0].mxu0
        %2989 = vdwg.mxu0
        %2990 = vmatprep.subr.mxu0 0.0
        %v2991 = vand.u32 %v1084, 4294901760
        %v2992 = vsub.f32 %v1084, %v2991
        %v2993 = vand.u32 %v2992, 4294901760
        %v2994 = vsub.f32 %v2992, %v2993
        %v2995 = vand.u32 %v2994, 4294901760
        %2996 = vmatpush1.msra.mxu0 %v2995
        %2997 = vmatprep.subr.mxu0 0.0
        %v2998 = vand.u32 %v1090, 4294901760
        %v2999 = vsub.f32 %v1090, %v2998
        %v3000 = vand.u32 %v2999, 4294901760
        %v3001 = vsub.f32 %v2999, %v3000
        %v3002 = vand.u32 %v3001, 4294901760
        %3003 = vmatpush1.msra.mxu0 %v3002
        %3004 = vmatprep.subr.mxu0 0.0
        %3005 = vmatpush1.msra.mxu0 0.0
        %3006 = vmatprep.subr.mxu0 0.0
        %3007 = vmatpush1.msra.mxu0 0.0
        %3008 = vmatprep.subr.mxu0 0.0
        %3009 = vmatpush1.msra.mxu0 0.0
        %3010 = vmatprep.subr.mxu0 0.0
        %3011 = vmatpush1.msra.mxu0 0.0
        %3012 = vmatprep.subr.mxu0 0.0
        %3013 = vmatpush1.msra.mxu0 0.0
        %3014 = vmatprep.subr.mxu0 0.0
        %3015 = vmatpush1.msra.mxu0 0.0
        %3016 = vmatprep.subr.mxu0 0.0
        %3017 = vmatpush1.msra.mxu0 0.0
        %3018 = vmatprep.subr.mxu0 0.0
        %3019 = vmatpush1.msra.mxu0 0.0
        %3020 = vmatprep.subr.mxu0 0.0
        %3021 = vmatpush1.msra.mxu0 0.0
        %3022 = vmatprep.subr.mxu0 0.0
        %3023 = vmatpush1.msra.mxu0 0.0
        %3024 = vmatprep.subr.mxu0 0.0
        %3025 = vmatpush1.msra.mxu0 0.0
        %3026 = vmatprep.subr.mxu0 0.0
        %3027 = vmatpush1.msra.mxu0 0.0
        %3028 = vmatprep.subr.mxu0 0.0
        %3029 = vmatpush1.msra.mxu0 0.0
        %3030 = vmatprep.subr.mxu0 0.0
        %3031 = vmatpush1.msra.mxu0 0.0
        %3032 = vmatprep.subr.mxu0 0.0
        %3033 = vmatpush1.msra.mxu0 0.0
        %3034 = vmatprep.subr.mxu0 0.0
        %3035 = vmatpush1.msra.mxu0 0.0
        %3036 = vmatprep.subr.mxu0 0.0
        %3037 = vmatpush1.msra.mxu0 0.0
        %3038 = vmatprep.subr.mxu0 0.0
        %3039 = vmatpush1.msra.mxu0 0.0
        %3040 = vmatprep.subr.mxu0 0.0
        %3041 = vmatpush1.msra.mxu0 0.0
        %3042 = vmatprep.subr.mxu0 0.0
        %3043 = vmatpush1.msra.mxu0 0.0
        %3044 = vmatprep.subr.mxu0 0.0
        %3045 = vmatpush1.msra.mxu0 0.0
        %3046 = vmatprep.subr.mxu0 0.0
        %3047 = vmatpush1.msra.mxu0 0.0
        %3048 = vmatprep.subr.mxu0 0.0
        %3049 = vmatpush1.msra.mxu0 0.0
        %3050 = vmatprep.subr.mxu0 0.0
        %3051 = vmatpush1.msra.mxu0 0.0
        %3052 = vmatprep.subr.mxu0 0.0
        %3053 = vmatpush1.msra.mxu0 0.0
        %3054 = vmatprep.subr.mxu0 0.0
        %3055 = vmatpush1.msra.mxu0 0.0
        %3056 = vmatprep.subr.mxu0 0.0
        %3057 = vmatpush1.msra.mxu0 0.0
        %3058 = vmatprep.subr.mxu0 0.0
        %3059 = vmatpush1.msra.mxu0 0.0
        %3060 = vmatprep.subr.mxu0 0.0
        %3061 = vmatpush1.msra.mxu0 0.0
        %3062 = vmatprep.subr.mxu0 0.0
        %3063 = vmatpush1.msra.mxu0 0.0
        %3064 = vmatprep.mubr.f32.mxu0 0.0
        %v3065 = vand.u32 %v1884, 4294901760
        %3066 = vmatmul.mubr.f32.gmra.mrb[0].mxu0 %v3065
        %v3067 = vpop.f32.mrb[0].mxu0
        %v3068 = vadd.f32 %v2977, %v3067
        %v3069 = vpop.f32.mrb[0].mxu0
        %3070 = vmatprep.mubr.f32.mxu0 0.0
        %v3071 = vand.u32 %v1887, 4294901760
        %3072 = vmatmul.mubr.f32.gmra.mrb[0].mxu0 %v3071
        %v3073 = vpop.f32.mrb[0].mxu0
        %v3074 = vadd.f32 %v2987, %v3073
        %v3075 = vpop.f32.mrb[0].mxu0
        %3076 = vdwg.mxu0
        %3077 = vmatprep.subr.mxu0 0.0
        %v3078 = vand.u32 %v1084, 4294901760
        %v3079 = vsub.f32 %v1084, %v3078
        %3080 = vmatpush1.msra.mxu0 %v3079
        %3081 = vmatprep.subr.mxu0 0.0
        %v3082 = vand.u32 %v1090, 4294901760
        %v3083 = vsub.f32 %v1090, %v3082
        %3084 = vmatpush1.msra.mxu0 %v3083
        %3085 = vmatprep.subr.mxu0 0.0
        %3086 = vmatpush1.msra.mxu0 0.0
        %3087 = vmatprep.subr.mxu0 0.0
        %3088 = vmatpush1.msra.mxu0 0.0
        %3089 = vmatprep.subr.mxu0 0.0
        %3090 = vmatpush1.msra.mxu0 0.0
        %3091 = vmatprep.subr.mxu0 0.0
        %3092 = vmatpush1.msra.mxu0 0.0
        %3093 = vmatprep.subr.mxu0 0.0
        %3094 = vmatpush1.msra.mxu0 0.0
        %3095 = vmatprep.subr.mxu0 0.0
        %3096 = vmatpush1.msra.mxu0 0.0
        %3097 = vmatprep.subr.mxu0 0.0
        %3098 = vmatpush1.msra.mxu0 0.0
        %3099 = vmatprep.subr.mxu0 0.0
        %3100 = vmatpush1.msra.mxu0 0.0
        %3101 = vmatprep.subr.mxu0 0.0
        %3102 = vmatpush1.msra.mxu0 0.0
        %3103 = vmatprep.subr.mxu0 0.0
        %3104 = vmatpush1.msra.mxu0 0.0
        %3105 = vmatprep.subr.mxu0 0.0
        %3106 = vmatpush1.msra.mxu0 0.0
        %3107 = vmatprep.subr.mxu0 0.0
        %3108 = vmatpush1.msra.mxu0 0.0
        %3109 = vmatprep.subr.mxu0 0.0
        %3110 = vmatpush1.msra.mxu0 0.0
        %3111 = vmatprep.subr.mxu0 0.0
        %3112 = vmatpush1.msra.mxu0 0.0
        %3113 = vmatprep.subr.mxu0 0.0
        %3114 = vmatpush1.msra.mxu0 0.0
        %3115 = vmatprep.subr.mxu0 0.0
        %3116 = vmatpush1.msra.mxu0 0.0
        %3117 = vmatprep.subr.mxu0 0.0
        %3118 = vmatpush1.msra.mxu0 0.0
        %3119 = vmatprep.subr.mxu0 0.0
        %3120 = vmatpush1.msra.mxu0 0.0
        %3121 = vmatprep.subr.mxu0 0.0
        %3122 = vmatpush1.msra.mxu0 0.0
        %3123 = vmatprep.subr.mxu0 0.0
        %3124 = vmatpush1.msra.mxu0 0.0
        %3125 = vmatprep.subr.mxu0 0.0
        %3126 = vmatpush1.msra.mxu0 0.0
        %3127 = vmatprep.subr.mxu0 0.0
        %3128 = vmatpush1.msra.mxu0 0.0
        %3129 = vmatprep.subr.mxu0 0.0
        %3130 = vmatpush1.msra.mxu0 0.0
        %3131 = vmatprep.subr.mxu0 0.0
        %3132 = vmatpush1.msra.mxu0 0.0
        %3133 = vmatprep.subr.mxu0 0.0
        %3134 = vmatpush1.msra.mxu0 0.0
        %3135 = vmatprep.subr.mxu0 0.0
        %3136 = vmatpush1.msra.mxu0 0.0
        %3137 = vmatprep.subr.mxu0 0.0
        %3138 = vmatpush1.msra.mxu0 0.0
        %3139 = vmatprep.subr.mxu0 0.0
        %3140 = vmatpush1.msra.mxu0 0.0
        %3141 = vmatprep.subr.mxu0 0.0
        %3142 = vmatpush1.msra.mxu0 0.0
        %3143 = vmatprep.subr.mxu0 0.0
        %3144 = vmatpush1.msra.mxu0 0.0
        %3145 = vmatprep.mubr.f32.mxu0 0.0
        %v3146 = vand.u32 %v1884, 4294901760
        %v3147 = vsub.f32 %v1884, %v3146
        %3148 = vmatmul.mubr.f32.gmra.mrb[0].mxu0 %v3147
        %v3149 = vpop.f32.mrb[0].mxu0
        %v3150 = vadd.f32 %v3068, %v3149
        %v3151 = vpop.f32.mrb[0].mxu0
        %3152 = vmatprep.mubr.f32.mxu0 0.0
        %v3153 = vand.u32 %v1887, 4294901760
        %v3154 = vsub.f32 %v1887, %v3153
        %3155 = vmatmul.mubr.f32.gmra.mrb[0].mxu0 %v3154
        %v3156 = vpop.f32.mrb[0].mxu0
        %v3157 = vadd.f32 %v3074, %v3156
        %v3158 = vpop.f32.mrb[0].mxu0
        %3159 = vdwg.mxu0
        %3160 = vmatprep.subr.mxu0 0.0
        %v3161 = vand.u32 %v1084, 4294901760
        %3162 = vmatpush1.msra.mxu0 %v3161
        %3163 = vmatprep.subr.mxu0 0.0
        %v3164 = vand.u32 %v1090, 4294901760
        %3165 = vmatpush1.msra.mxu0 %v3164
        %3166 = vmatprep.subr.mxu0 0.0
        %3167 = vmatpush1.msra.mxu0 0.0
        %3168 = vmatprep.subr.mxu0 0.0
        %3169 = vmatpush1.msra.mxu0 0.0
        %3170 = vmatprep.subr.mxu0 0.0
        %3171 = vmatpush1.msra.mxu0 0.0
        %3172 = vmatprep.subr.mxu0 0.0
        %3173 = vmatpush1.msra.mxu0 0.0
        %3174 = vmatprep.subr.mxu0 0.0
        %3175 = vmatpush1.msra.mxu0 0.0
        %3176 = vmatprep.subr.mxu0 0.0
        %3177 = vmatpush1.msra.mxu0 0.0
        %3178 = vmatprep.subr.mxu0 0.0
        %3179 = vmatpush1.msra.mxu0 0.0
        %3180 = vmatprep.subr.mxu0 0.0
        %3181 = vmatpush1.msra.mxu0 0.0
        %3182 = vmatprep.subr.mxu0 0.0
        %3183 = vmatpush1.msra.mxu0 0.0
        %3184 = vmatprep.subr.mxu0 0.0
        %3185 = vmatpush1.msra.mxu0 0.0
        %3186 = vmatprep.subr.mxu0 0.0
        %3187 = vmatpush1.msra.mxu0 0.0
        %3188 = vmatprep.subr.mxu0 0.0
        %3189 = vmatpush1.msra.mxu0 0.0
        %3190 = vmatprep.subr.mxu0 0.0
        %3191 = vmatpush1.msra.mxu0 0.0
        %3192 = vmatprep.subr.mxu0 0.0
        %3193 = vmatpush1.msra.mxu0 0.0
        %3194 = vmatprep.subr.mxu0 0.0
        %3195 = vmatpush1.msra.mxu0 0.0
        %3196 = vmatprep.subr.mxu0 0.0
        %3197 = vmatpush1.msra.mxu0 0.0
        %3198 = vmatprep.subr.mxu0 0.0
        %3199 = vmatpush1.msra.mxu0 0.0
        %3200 = vmatprep.subr.mxu0 0.0
        %3201 = vmatpush1.msra.mxu0 0.0
        %3202 = vmatprep.subr.mxu0 0.0
        %3203 = vmatpush1.msra.mxu0 0.0
        %3204 = vmatprep.subr.mxu0 0.0
        %3205 = vmatpush1.msra.mxu0 0.0
        %3206 = vmatprep.subr.mxu0 0.0
        %3207 = vmatpush1.msra.mxu0 0.0
        %3208 = vmatprep.subr.mxu0 0.0
        %3209 = vmatpush1.msra.mxu0 0.0
        %3210 = vmatprep.subr.mxu0 0.0
        %3211 = vmatpush1.msra.mxu0 0.0
        %3212 = vmatprep.subr.mxu0 0.0
        %3213 = vmatpush1.msra.mxu0 0.0
        %3214 = vmatprep.subr.mxu0 0.0
        %3215 = vmatpush1.msra.mxu0 0.0
        %3216 = vmatprep.subr.mxu0 0.0
        %3217 = vmatpush1.msra.mxu0 0.0
        %3218 = vmatprep.subr.mxu0 0.0
        %3219 = vmatpush1.msra.mxu0 0.0
        %3220 = vmatprep.subr.mxu0 0.0
        %3221 = vmatpush1.msra.mxu0 0.0
        %3222 = vmatprep.subr.mxu0 0.0
        %3223 = vmatpush1.msra.mxu0 0.0
        %3224 = vmatprep.subr.mxu0 0.0
        %3225 = vmatpush1.msra.mxu0 0.0
        %3226 = vmatprep.mubr.f32.mxu0 0.0
        %v3227 = vand.u32 %v1884, 4294901760
        %v3228 = vsub.f32 %v1884, %v3227
        %v3229 = vand.u32 %v3228, 4294901760
        %3230 = vmatmul.mubr.f32.gmra.mrb[0].mxu0 %v3229
        %v3231 = vpop.f32.mrb[0].mxu0
        %v3232 = vadd.f32 %v3150, %v3231
        %v3233 = vpop.f32.mrb[0].mxu0
        %3234 = vmatprep.mubr.f32.mxu0 0.0
        %v3235 = vand.u32 %v1887, 4294901760
        %v3236 = vsub.f32 %v1887, %v3235
        %v3237 = vand.u32 %v3236, 4294901760
        %3238 = vmatmul.mubr.f32.gmra.mrb[0].mxu0 %v3237
        %v3239 = vpop.f32.mrb[0].mxu0
        %v3240 = vadd.f32 %v3157, %v3239
        %v3241 = vpop.f32.mrb[0].mxu0
        %3242 = vdwg.mxu0
        %3243 = vmatprep.subr.mxu0 0.0
        %v3244 = vand.u32 %v1084, 4294901760
        %v3245 = vsub.f32 %v1084, %v3244
        %v3246 = vand.u32 %v3245, 4294901760
        %3247 = vmatpush1.msra.mxu0 %v3246
        %3248 = vmatprep.subr.mxu0 0.0
        %v3249 = vand.u32 %v1090, 4294901760
        %v3250 = vsub.f32 %v1090, %v3249
        %v3251 = vand.u32 %v3250, 4294901760
        %3252 = vmatpush1.msra.mxu0 %v3251
        %3253 = vmatprep.subr.mxu0 0.0
        %3254 = vmatpush1.msra.mxu0 0.0
        %3255 = vmatprep.subr.mxu0 0.0
        %3256 = vmatpush1.msra.mxu0 0.0
        %3257 = vmatprep.subr.mxu0 0.0
        %3258 = vmatpush1.msra.mxu0 0.0
        %3259 = vmatprep.subr.mxu0 0.0
        %3260 = vmatpush1.msra.mxu0 0.0
        %3261 = vmatprep.subr.mxu0 0.0
        %3262 = vmatpush1.msra.mxu0 0.0
        %3263 = vmatprep.subr.mxu0 0.0
        %3264 = vmatpush1.msra.mxu0 0.0
        %3265 = vmatprep.subr.mxu0 0.0
        %3266 = vmatpush1.msra.mxu0 0.0
        %3267 = vmatprep.subr.mxu0 0.0
        %3268 = vmatpush1.msra.mxu0 0.0
        %3269 = vmatprep.subr.mxu0 0.0
        %3270 = vmatpush1.msra.mxu0 0.0
        %3271 = vmatprep.subr.mxu0 0.0
        %3272 = vmatpush1.msra.mxu0 0.0
        %3273 = vmatprep.subr.mxu0 0.0
        %3274 = vmatpush1.msra.mxu0 0.0
        %3275 = vmatprep.subr.mxu0 0.0
        %3276 = vmatpush1.msra.mxu0 0.0
        %3277 = vmatprep.subr.mxu0 0.0
        %3278 = vmatpush1.msra.mxu0 0.0
        %3279 = vmatprep.subr.mxu0 0.0
        %3280 = vmatpush1.msra.mxu0 0.0
        %3281 = vmatprep.subr.mxu0 0.0
        %3282 = vmatpush1.msra.mxu0 0.0
        %3283 = vmatprep.subr.mxu0 0.0
        %3284 = vmatpush1.msra.mxu0 0.0
        %3285 = vmatprep.subr.mxu0 0.0
        %3286 = vmatpush1.msra.mxu0 0.0
        %3287 = vmatprep.subr.mxu0 0.0
        %3288 = vmatpush1.msra.mxu0 0.0
        %3289 = vmatprep.subr.mxu0 0.0
        %3290 = vmatpush1.msra.mxu0 0.0
        %3291 = vmatprep.subr.mxu0 0.0
        %3292 = vmatpush1.msra.mxu0 0.0
        %3293 = vmatprep.subr.mxu0 0.0
        %3294 = vmatpush1.msra.mxu0 0.0
        %3295 = vmatprep.subr.mxu0 0.0
        %3296 = vmatpush1.msra.mxu0 0.0
        %3297 = vmatprep.subr.mxu0 0.0
        %3298 = vmatpush1.msra.mxu0 0.0
        %3299 = vmatprep.subr.mxu0 0.0
        %3300 = vmatpush1.msra.mxu0 0.0
        %3301 = vmatprep.subr.mxu0 0.0
        %3302 = vmatpush1.msra.mxu0 0.0
        %3303 = vmatprep.subr.mxu0 0.0
        %3304 = vmatpush1.msra.mxu0 0.0
        %3305 = vmatprep.subr.mxu0 0.0
        %3306 = vmatpush1.msra.mxu0 0.0
        %3307 = vmatprep.subr.mxu0 0.0
        %3308 = vmatpush1.msra.mxu0 0.0
        %3309 = vmatprep.subr.mxu0 0.0
        %3310 = vmatpush1.msra.mxu0 0.0
        %3311 = vmatprep.subr.mxu0 0.0
        %3312 = vmatpush1.msra.mxu0 0.0
        %3313 = vmatprep.mubr.f32.mxu0 0.0
        %v3314 = vand.u32 %v1884, 4294901760
        %3315 = vmatmul.mubr.f32.gmra.mrb[0].mxu0 %v3314
        %v3316 = vpop.f32.mrb[0].mxu0
        %v3317 = vadd.f32 %v3232, %v3316
        %v3318 = vpop.f32.mrb[0].mxu0
        %3319 = vmatprep.mubr.f32.mxu0 0.0
        %v3320 = vand.u32 %v1887, 4294901760
        %3321 = vmatmul.mubr.f32.gmra.mrb[0].mxu0 %v3320
        %v3322 = vpop.f32.mrb[0].mxu0
        %v3323 = vadd.f32 %v3240, %v3322
        %v3324 = vpop.f32.mrb[0].mxu0
        %3325 = vdwg.mxu0
        %3326 = vmatprep.subr.mxu0 0.0
        %v3327 = vand.u32 %v1084, 4294901760
        %3328 = vmatpush1.msra.mxu0 %v3327
        %3329 = vmatprep.subr.mxu0 0.0
        %v3330 = vand.u32 %v1090, 4294901760
        %3331 = vmatpush1.msra.mxu0 %v3330
        %3332 = vmatprep.subr.mxu0 0.0
        %3333 = vmatpush1.msra.mxu0 0.0
        %3334 = vmatprep.subr.mxu0 0.0
        %3335 = vmatpush1.msra.mxu0 0.0
        %3336 = vmatprep.subr.mxu0 0.0
        %3337 = vmatpush1.msra.mxu0 0.0
        %3338 = vmatprep.subr.mxu0 0.0
        %3339 = vmatpush1.msra.mxu0 0.0
        %3340 = vmatprep.subr.mxu0 0.0
        %3341 = vmatpush1.msra.mxu0 0.0
        %3342 = vmatprep.subr.mxu0 0.0
        %3343 = vmatpush1.msra.mxu0 0.0
        %3344 = vmatprep.subr.mxu0 0.0
        %3345 = vmatpush1.msra.mxu0 0.0
        %3346 = vmatprep.subr.mxu0 0.0
        %3347 = vmatpush1.msra.mxu0 0.0
        %3348 = vmatprep.subr.mxu0 0.0
        %3349 = vmatpush1.msra.mxu0 0.0
        %3350 = vmatprep.subr.mxu0 0.0
        %3351 = vmatpush1.msra.mxu0 0.0
        %3352 = vmatprep.subr.mxu0 0.0
        %3353 = vmatpush1.msra.mxu0 0.0
        %3354 = vmatprep.subr.mxu0 0.0
        %3355 = vmatpush1.msra.mxu0 0.0
        %3356 = vmatprep.subr.mxu0 0.0
        %3357 = vmatpush1.msra.mxu0 0.0
        %3358 = vmatprep.subr.mxu0 0.0
        %3359 = vmatpush1.msra.mxu0 0.0
        %3360 = vmatprep.subr.mxu0 0.0
        %3361 = vmatpush1.msra.mxu0 0.0
        %3362 = vmatprep.subr.mxu0 0.0
        %3363 = vmatpush1.msra.mxu0 0.0
        %3364 = vmatprep.subr.mxu0 0.0
        %3365 = vmatpush1.msra.mxu0 0.0
        %3366 = vmatprep.subr.mxu0 0.0
        %3367 = vmatpush1.msra.mxu0 0.0
        %3368 = vmatprep.subr.mxu0 0.0
        %3369 = vmatpush1.msra.mxu0 0.0
        %3370 = vmatprep.subr.mxu0 0.0
        %3371 = vmatpush1.msra.mxu0 0.0
        %3372 = vmatprep.subr.mxu0 0.0
        %3373 = vmatpush1.msra.mxu0 0.0
        %3374 = vmatprep.subr.mxu0 0.0
        %3375 = vmatpush1.msra.mxu0 0.0
        %3376 = vmatprep.subr.mxu0 0.0
        %3377 = vmatpush1.msra.mxu0 0.0
        %3378 = vmatprep.subr.mxu0 0.0
        %3379 = vmatpush1.msra.mxu0 0.0
        %3380 = vmatprep.subr.mxu0 0.0
        %3381 = vmatpush1.msra.mxu0 0.0
        %3382 = vmatprep.subr.mxu0 0.0
        %3383 = vmatpush1.msra.mxu0 0.0
        %3384 = vmatprep.subr.mxu0 0.0
        %3385 = vmatpush1.msra.mxu0 0.0
        %3386 = vmatprep.subr.mxu0 0.0
        %3387 = vmatpush1.msra.mxu0 0.0
        %3388 = vmatprep.subr.mxu0 0.0
        %3389 = vmatpush1.msra.mxu0 0.0
        %3390 = vmatprep.subr.mxu0 0.0
        %3391 = vmatpush1.msra.mxu0 0.0
        %3392 = vmatprep.mubr.f32.mxu0 0.0
        %v3393 = vand.u32 %v1884, 4294901760
        %3394 = vmatmul.mubr.f32.gmra.mrb[0].mxu0 %v3393
        %v3395 = vpop.f32.mrb[0].mxu0
        %v3396 = vadd.f32 %v3317, %v3395
        %v3397 = vpop.f32.mrb[0].mxu0
        %3398 = vmatprep.mubr.f32.mxu0 0.0
        %v3399 = vand.u32 %v1887, 4294901760
        %3400 = vmatmul.mubr.f32.gmra.mrb[0].mxu0 %v3399
        %v3401 = vpop.f32.mrb[0].mxu0
        %v3402 = vadd.f32 %v3323, %v3401
        %v3403 = vpop.f32.mrb[0].mxu0
        %3404 = vdwg.mxu0
        %3405 = vmatprep.subr.mxu0 0.0
        %v3406 = vand.u32 %v1846, 4294901760
        %3407 = vmatpush1.msra.mxu0 %v3406
        %3408 = vmatprep.subr.mxu0 0.0
        %v3409 = vand.u32 %v1852, 4294901760
        %3410 = vmatpush1.msra.mxu0 %v3409
        %3411 = vmatprep.subr.mxu0 0.0
        %3412 = vmatpush1.msra.mxu0 0.0
        %3413 = vmatprep.subr.mxu0 0.0
        %3414 = vmatpush1.msra.mxu0 0.0
        %3415 = vmatprep.subr.mxu0 0.0
        %3416 = vmatpush1.msra.mxu0 0.0
        %3417 = vmatprep.subr.mxu0 0.0
        %3418 = vmatpush1.msra.mxu0 0.0
        %3419 = vmatprep.subr.mxu0 0.0
        %3420 = vmatpush1.msra.mxu0 0.0
        %3421 = vmatprep.subr.mxu0 0.0
        %3422 = vmatpush1.msra.mxu0 0.0
        %3423 = vmatprep.subr.mxu0 0.0
        %3424 = vmatpush1.msra.mxu0 0.0
        %3425 = vmatprep.subr.mxu0 0.0
        %3426 = vmatpush1.msra.mxu0 0.0
        %3427 = vmatprep.subr.mxu0 0.0
        %3428 = vmatpush1.msra.mxu0 0.0
        %3429 = vmatprep.subr.mxu0 0.0
        %3430 = vmatpush1.msra.mxu0 0.0
        %3431 = vmatprep.subr.mxu0 0.0
        %3432 = vmatpush1.msra.mxu0 0.0
        %3433 = vmatprep.subr.mxu0 0.0
        %3434 = vmatpush1.msra.mxu0 0.0
        %3435 = vmatprep.subr.mxu0 0.0
        %3436 = vmatpush1.msra.mxu0 0.0
        %3437 = vmatprep.subr.mxu0 0.0
        %3438 = vmatpush1.msra.mxu0 0.0
        %3439 = vmatprep.subr.mxu0 0.0
        %3440 = vmatpush1.msra.mxu0 0.0
        %3441 = vmatprep.subr.mxu0 0.0
        %3442 = vmatpush1.msra.mxu0 0.0
        %3443 = vmatprep.subr.mxu0 0.0
        %3444 = vmatpush1.msra.mxu0 0.0
        %3445 = vmatprep.subr.mxu0 0.0
        %3446 = vmatpush1.msra.mxu0 0.0
        %3447 = vmatprep.subr.mxu0 0.0
        %3448 = vmatpush1.msra.mxu0 0.0
        %3449 = vmatprep.subr.mxu0 0.0
        %3450 = vmatpush1.msra.mxu0 0.0
        %3451 = vmatprep.subr.mxu0 0.0
        %3452 = vmatpush1.msra.mxu0 0.0
        %3453 = vmatprep.subr.mxu0 0.0
        %3454 = vmatpush1.msra.mxu0 0.0
        %3455 = vmatprep.subr.mxu0 0.0
        %3456 = vmatpush1.msra.mxu0 0.0
        %3457 = vmatprep.subr.mxu0 0.0
        %3458 = vmatpush1.msra.mxu0 0.0
        %3459 = vmatprep.subr.mxu0 0.0
        %3460 = vmatpush1.msra.mxu0 0.0
        %3461 = vmatprep.subr.mxu0 0.0
        %3462 = vmatpush1.msra.mxu0 0.0
        %3463 = vmatprep.subr.mxu0 0.0
        %3464 = vmatpush1.msra.mxu0 0.0
        %3465 = vmatprep.subr.mxu0 0.0
        %3466 = vmatpush1.msra.mxu0 0.0
        %3467 = vmatprep.subr.mxu0 0.0
        %3468 = vmatpush1.msra.mxu0 0.0
        %3469 = vmatprep.subr.mxu0 0.0
        %3470 = vmatpush1.msra.mxu0 0.0
        %3471 = vmatprep.mubr.f32.mxu0 0.0
        %v3472 = vand.u32 %v2392, 4294901760
        %v3473 = vsub.f32 %v2392, %v3472
        %v3474 = vand.u32 %v3473, 4294901760
        %v3475 = vsub.f32 %v3473, %v3474
        %v3476 = vand.u32 %v3475, 4294901760
        %3477 = vmatmul.mubr.f32.gmra.mrb[0].mxu0 %v3476
        %v3478 = vpop.f32.mrb[0].mxu0
        %v3479 = vadd.f32 0.0, %v3478
        %v3480 = vpop.f32.mrb[0].mxu0
        %3481 = vmatprep.mubr.f32.mxu0 0.0
        %v3482 = vand.u32 %v2395, 4294901760
        %v3483 = vsub.f32 %v2395, %v3482
        %v3484 = vand.u32 %v3483, 4294901760
        %v3485 = vsub.f32 %v3483, %v3484
        %v3486 = vand.u32 %v3485, 4294901760
        %3487 = vmatmul.mubr.f32.gmra.mrb[0].mxu0 %v3486
        %v3488 = vpop.f32.mrb[0].mxu0
        %v3489 = vadd.f32 0.0, %v3488
        %v3490 = vpop.f32.mrb[0].mxu0
        %3491 = vdwg.mxu0
        %3492 = vmatprep.subr.mxu0 0.0
        %v3493 = vand.u32 %v1846, 4294901760
        %v3494 = vsub.f32 %v1846, %v3493
        %v3495 = vand.u32 %v3494, 4294901760
        %v3496 = vsub.f32 %v3494, %v3495
        %v3497 = vand.u32 %v3496, 4294901760
        %3498 = vmatpush1.msra.mxu0 %v3497
        %3499 = vmatprep.subr.mxu0 0.0
        %v3500 = vand.u32 %v1852, 4294901760
        %v3501 = vsub.f32 %v1852, %v3500
        %v3502 = vand.u32 %v3501, 4294901760
        %v3503 = vsub.f32 %v3501, %v3502
        %v3504 = vand.u32 %v3503, 4294901760
        %3505 = vmatpush1.msra.mxu0 %v3504
        %3506 = vmatprep.subr.mxu0 0.0
        %3507 = vmatpush1.msra.mxu0 0.0
        %3508 = vmatprep.subr.mxu0 0.0
        %3509 = vmatpush1.msra.mxu0 0.0
        %3510 = vmatprep.subr.mxu0 0.0
        %3511 = vmatpush1.msra.mxu0 0.0
        %3512 = vmatprep.subr.mxu0 0.0
        %3513 = vmatpush1.msra.mxu0 0.0
        %3514 = vmatprep.subr.mxu0 0.0
        %3515 = vmatpush1.msra.mxu0 0.0
        %3516 = vmatprep.subr.mxu0 0.0
        %3517 = vmatpush1.msra.mxu0 0.0
        %3518 = vmatprep.subr.mxu0 0.0
        %3519 = vmatpush1.msra.mxu0 0.0
        %3520 = vmatprep.subr.mxu0 0.0
        %3521 = vmatpush1.msra.mxu0 0.0
        %3522 = vmatprep.subr.mxu0 0.0
        %3523 = vmatpush1.msra.mxu0 0.0
        %3524 = vmatprep.subr.mxu0 0.0
        %3525 = vmatpush1.msra.mxu0 0.0
        %3526 = vmatprep.subr.mxu0 0.0
        %3527 = vmatpush1.msra.mxu0 0.0
        %3528 = vmatprep.subr.mxu0 0.0
        %3529 = vmatpush1.msra.mxu0 0.0
        %3530 = vmatprep.subr.mxu0 0.0
        %3531 = vmatpush1.msra.mxu0 0.0
        %3532 = vmatprep.subr.mxu0 0.0
        %3533 = vmatpush1.msra.mxu0 0.0
        %3534 = vmatprep.subr.mxu0 0.0
        %3535 = vmatpush1.msra.mxu0 0.0
        %3536 = vmatprep.subr.mxu0 0.0
        %3537 = vmatpush1.msra.mxu0 0.0
        %3538 = vmatprep.subr.mxu0 0.0
        %3539 = vmatpush1.msra.mxu0 0.0
        %3540 = vmatprep.subr.mxu0 0.0
        %3541 = vmatpush1.msra.mxu0 0.0
        %3542 = vmatprep.subr.mxu0 0.0
        %3543 = vmatpush1.msra.mxu0 0.0
        %3544 = vmatprep.subr.mxu0 0.0
        %3545 = vmatpush1.msra.mxu0 0.0
        %3546 = vmatprep.subr.mxu0 0.0
        %3547 = vmatpush1.msra.mxu0 0.0
        %3548 = vmatprep.subr.mxu0 0.0
        %3549 = vmatpush1.msra.mxu0 0.0
        %3550 = vmatprep.subr.mxu0 0.0
        %3551 = vmatpush1.msra.mxu0 0.0
        %3552 = vmatprep.subr.mxu0 0.0
        %3553 = vmatpush1.msra.mxu0 0.0
        %3554 = vmatprep.subr.mxu0 0.0
        %3555 = vmatpush1.msra.mxu0 0.0
        %3556 = vmatprep.subr.mxu0 0.0
        %3557 = vmatpush1.msra.mxu0 0.0
        %3558 = vmatprep.subr.mxu0 0.0
        %3559 = vmatpush1.msra.mxu0 0.0
        %3560 = vmatprep.subr.mxu0 0.0
        %3561 = vmatpush1.msra.mxu0 0.0
        %3562 = vmatprep.subr.mxu0 0.0
        %3563 = vmatpush1.msra.mxu0 0.0
        %3564 = vmatprep.subr.mxu0 0.0
        %3565 = vmatpush1.msra.mxu0 0.0
        %3566 = vmatprep.mubr.f32.mxu0 0.0
        %v3567 = vand.u32 %v2392, 4294901760
        %3568 = vmatmul.mubr.f32.gmra.mrb[0].mxu0 %v3567
        %v3569 = vpop.f32.mrb[0].mxu0
        %v3570 = vadd.f32 %v3479, %v3569
        %v3571 = vpop.f32.mrb[0].mxu0
        %3572 = vmatprep.mubr.f32.mxu0 0.0
        %v3573 = vand.u32 %v2395, 4294901760
        %3574 = vmatmul.mubr.f32.gmra.mrb[0].mxu0 %v3573
        %v3575 = vpop.f32.mrb[0].mxu0
        %v3576 = vadd.f32 %v3489, %v3575
        %v3577 = vpop.f32.mrb[0].mxu0
        %3578 = vdwg.mxu0
        %3579 = vmatprep.subr.mxu0 0.0
        %v3580 = vand.u32 %v1846, 4294901760
        %v3581 = vsub.f32 %v1846, %v3580
        %3582 = vmatpush1.msra.mxu0 %v3581
        %3583 = vmatprep.subr.mxu0 0.0
        %v3584 = vand.u32 %v1852, 4294901760
        %v3585 = vsub.f32 %v1852, %v3584
        %3586 = vmatpush1.msra.mxu0 %v3585
        %3587 = vmatprep.subr.mxu0 0.0
        %3588 = vmatpush1.msra.mxu0 0.0
        %3589 = vmatprep.subr.mxu0 0.0
        %3590 = vmatpush1.msra.mxu0 0.0
        %3591 = vmatprep.subr.mxu0 0.0
        %3592 = vmatpush1.msra.mxu0 0.0
        %3593 = vmatprep.subr.mxu0 0.0
        %3594 = vmatpush1.msra.mxu0 0.0
        %3595 = vmatprep.subr.mxu0 0.0
        %3596 = vmatpush1.msra.mxu0 0.0
        %3597 = vmatprep.subr.mxu0 0.0
        %3598 = vmatpush1.msra.mxu0 0.0
        %3599 = vmatprep.subr.mxu0 0.0
        %3600 = vmatpush1.msra.mxu0 0.0
        %3601 = vmatprep.subr.mxu0 0.0
        %3602 = vmatpush1.msra.mxu0 0.0
        %3603 = vmatprep.subr.mxu0 0.0
        %3604 = vmatpush1.msra.mxu0 0.0
        %3605 = vmatprep.subr.mxu0 0.0
        %3606 = vmatpush1.msra.mxu0 0.0
        %3607 = vmatprep.subr.mxu0 0.0
        %3608 = vmatpush1.msra.mxu0 0.0
        %3609 = vmatprep.subr.mxu0 0.0
        %3610 = vmatpush1.msra.mxu0 0.0
        %3611 = vmatprep.subr.mxu0 0.0
        %3612 = vmatpush1.msra.mxu0 0.0
        %3613 = vmatprep.subr.mxu0 0.0
        %3614 = vmatpush1.msra.mxu0 0.0
        %3615 = vmatprep.subr.mxu0 0.0
        %3616 = vmatpush1.msra.mxu0 0.0
        %3617 = vmatprep.subr.mxu0 0.0
        %3618 = vmatpush1.msra.mxu0 0.0
        %3619 = vmatprep.subr.mxu0 0.0
        %3620 = vmatpush1.msra.mxu0 0.0
        %3621 = vmatprep.subr.mxu0 0.0
        %3622 = vmatpush1.msra.mxu0 0.0
        %3623 = vmatprep.subr.mxu0 0.0
        %3624 = vmatpush1.msra.mxu0 0.0
        %3625 = vmatprep.subr.mxu0 0.0
        %3626 = vmatpush1.msra.mxu0 0.0
        %3627 = vmatprep.subr.mxu0 0.0
        %3628 = vmatpush1.msra.mxu0 0.0
        %3629 = vmatprep.subr.mxu0 0.0
        %3630 = vmatpush1.msra.mxu0 0.0
        %3631 = vmatprep.subr.mxu0 0.0
        %3632 = vmatpush1.msra.mxu0 0.0
        %3633 = vmatprep.subr.mxu0 0.0
        %3634 = vmatpush1.msra.mxu0 0.0
        %3635 = vmatprep.subr.mxu0 0.0
        %3636 = vmatpush1.msra.mxu0 0.0
        %3637 = vmatprep.subr.mxu0 0.0
        %3638 = vmatpush1.msra.mxu0 0.0
        %3639 = vmatprep.subr.mxu0 0.0
        %3640 = vmatpush1.msra.mxu0 0.0
        %3641 = vmatprep.subr.mxu0 0.0
        %3642 = vmatpush1.msra.mxu0 0.0
        %3643 = vmatprep.subr.mxu0 0.0
        %3644 = vmatpush1.msra.mxu0 0.0
        %3645 = vmatprep.subr.mxu0 0.0
        %3646 = vmatpush1.msra.mxu0 0.0
        %3647 = vmatprep.mubr.f32.mxu0 0.0
        %v3648 = vand.u32 %v2392, 4294901760
        %v3649 = vsub.f32 %v2392, %v3648
        %3650 = vmatmul.mubr.f32.gmra.mrb[0].mxu0 %v3649
        %v3651 = vpop.f32.mrb[0].mxu0
        %v3652 = vadd.f32 %v3570, %v3651
        %v3653 = vpop.f32.mrb[0].mxu0
        %3654 = vmatprep.mubr.f32.mxu0 0.0
        %v3655 = vand.u32 %v2395, 4294901760
        %v3656 = vsub.f32 %v2395, %v3655
        %3657 = vmatmul.mubr.f32.gmra.mrb[0].mxu0 %v3656
        %v3658 = vpop.f32.mrb[0].mxu0
        %v3659 = vadd.f32 %v3576, %v3658
        %v3660 = vpop.f32.mrb[0].mxu0
        %3661 = vdwg.mxu0
        %3662 = vmatprep.subr.mxu0 0.0
        %v3663 = vand.u32 %v1846, 4294901760
        %3664 = vmatpush1.msra.mxu0 %v3663
        %3665 = vmatprep.subr.mxu0 0.0
        %v3666 = vand.u32 %v1852, 4294901760
        %3667 = vmatpush1.msra.mxu0 %v3666
        %3668 = vmatprep.subr.mxu0 0.0
        %3669 = vmatpush1.msra.mxu0 0.0
        %3670 = vmatprep.subr.mxu0 0.0
        %3671 = vmatpush1.msra.mxu0 0.0
        %3672 = vmatprep.subr.mxu0 0.0
        %3673 = vmatpush1.msra.mxu0 0.0
        %3674 = vmatprep.subr.mxu0 0.0
        %3675 = vmatpush1.msra.mxu0 0.0
        %3676 = vmatprep.subr.mxu0 0.0
        %3677 = vmatpush1.msra.mxu0 0.0
        %3678 = vmatprep.subr.mxu0 0.0
        %3679 = vmatpush1.msra.mxu0 0.0
        %3680 = vmatprep.subr.mxu0 0.0
        %3681 = vmatpush1.msra.mxu0 0.0
        %3682 = vmatprep.subr.mxu0 0.0
        %3683 = vmatpush1.msra.mxu0 0.0
        %3684 = vmatprep.subr.mxu0 0.0
        %3685 = vmatpush1.msra.mxu0 0.0
        %3686 = vmatprep.subr.mxu0 0.0
        %3687 = vmatpush1.msra.mxu0 0.0
        %3688 = vmatprep.subr.mxu0 0.0
        %3689 = vmatpush1.msra.mxu0 0.0
        %3690 = vmatprep.subr.mxu0 0.0
        %3691 = vmatpush1.msra.mxu0 0.0
        %3692 = vmatprep.subr.mxu0 0.0
        %3693 = vmatpush1.msra.mxu0 0.0
        %3694 = vmatprep.subr.mxu0 0.0
        %3695 = vmatpush1.msra.mxu0 0.0
        %3696 = vmatprep.subr.mxu0 0.0
        %3697 = vmatpush1.msra.mxu0 0.0
        %3698 = vmatprep.subr.mxu0 0.0
        %3699 = vmatpush1.msra.mxu0 0.0
        %3700 = vmatprep.subr.mxu0 0.0
        %3701 = vmatpush1.msra.mxu0 0.0
        %3702 = vmatprep.subr.mxu0 0.0
        %3703 = vmatpush1.msra.mxu0 0.0
        %3704 = vmatprep.subr.mxu0 0.0
        %3705 = vmatpush1.msra.mxu0 0.0
        %3706 = vmatprep.subr.mxu0 0.0
        %3707 = vmatpush1.msra.mxu0 0.0
        %3708 = vmatprep.subr.mxu0 0.0
        %3709 = vmatpush1.msra.mxu0 0.0
        %3710 = vmatprep.subr.mxu0 0.0
        %3711 = vmatpush1.msra.mxu0 0.0
        %3712 = vmatprep.subr.mxu0 0.0
        %3713 = vmatpush1.msra.mxu0 0.0
        %3714 = vmatprep.subr.mxu0 0.0
        %3715 = vmatpush1.msra.mxu0 0.0
        %3716 = vmatprep.subr.mxu0 0.0
        %3717 = vmatpush1.msra.mxu0 0.0
        %3718 = vmatprep.subr.mxu0 0.0
        %3719 = vmatpush1.msra.mxu0 0.0
        %3720 = vmatprep.subr.mxu0 0.0
        %3721 = vmatpush1.msra.mxu0 0.0
        %3722 = vmatprep.subr.mxu0 0.0
        %3723 = vmatpush1.msra.mxu0 0.0
        %3724 = vmatprep.subr.mxu0 0.0
        %3725 = vmatpush1.msra.mxu0 0.0
        %3726 = vmatprep.subr.mxu0 0.0
        %3727 = vmatpush1.msra.mxu0 0.0
        %3728 = vmatprep.mubr.f32.mxu0 0.0
        %v3729 = vand.u32 %v2392, 4294901760
        %v3730 = vsub.f32 %v2392, %v3729
        %v3731 = vand.u32 %v3730, 4294901760
        %3732 = vmatmul.mubr.f32.gmra.mrb[0].mxu0 %v3731
        %v3733 = vpop.f32.mrb[0].mxu0
        %v3734 = vadd.f32 %v3652, %v3733
        %v3735 = vpop.f32.mrb[0].mxu0
        %3736 = vmatprep.mubr.f32.mxu0 0.0
        %v3737 = vand.u32 %v2395, 4294901760
        %v3738 = vsub.f32 %v2395, %v3737
        %v3739 = vand.u32 %v3738, 4294901760
        %3740 = vmatmul.mubr.f32.gmra.mrb[0].mxu0 %v3739
        %v3741 = vpop.f32.mrb[0].mxu0
        %v3742 = vadd.f32 %v3659, %v3741
        %v3743 = vpop.f32.mrb[0].mxu0
        %3744 = vdwg.mxu0
        %3745 = vmatprep.subr.mxu0 0.0
        %v3746 = vand.u32 %v1846, 4294901760
        %v3747 = vsub.f32 %v1846, %v3746
        %v3748 = vand.u32 %v3747, 4294901760
        %3749 = vmatpush1.msra.mxu0 %v3748
        %3750 = vmatprep.subr.mxu0 0.0
        %v3751 = vand.u32 %v1852, 4294901760
        %v3752 = vsub.f32 %v1852, %v3751
        %v3753 = vand.u32 %v3752, 4294901760
        %3754 = vmatpush1.msra.mxu0 %v3753
        %3755 = vmatprep.subr.mxu0 0.0
        %3756 = vmatpush1.msra.mxu0 0.0
        %3757 = vmatprep.subr.mxu0 0.0
        %3758 = vmatpush1.msra.mxu0 0.0
        %3759 = vmatprep.subr.mxu0 0.0
        %3760 = vmatpush1.msra.mxu0 0.0
        %3761 = vmatprep.subr.mxu0 0.0
        %3762 = vmatpush1.msra.mxu0 0.0
        %3763 = vmatprep.subr.mxu0 0.0
        %3764 = vmatpush1.msra.mxu0 0.0
        %3765 = vmatprep.subr.mxu0 0.0
        %3766 = vmatpush1.msra.mxu0 0.0
        %3767 = vmatprep.subr.mxu0 0.0
        %3768 = vmatpush1.msra.mxu0 0.0
        %3769 = vmatprep.subr.mxu0 0.0
        %3770 = vmatpush1.msra.mxu0 0.0
        %3771 = vmatprep.subr.mxu0 0.0
        %3772 = vmatpush1.msra.mxu0 0.0
        %3773 = vmatprep.subr.mxu0 0.0
        %3774 = vmatpush1.msra.mxu0 0.0
        %3775 = vmatprep.subr.mxu0 0.0
        %3776 = vmatpush1.msra.mxu0 0.0
        %3777 = vmatprep.subr.mxu0 0.0
        %3778 = vmatpush1.msra.mxu0 0.0
        %3779 = vmatprep.subr.mxu0 0.0
        %3780 = vmatpush1.msra.mxu0 0.0
        %3781 = vmatprep.subr.mxu0 0.0
        %3782 = vmatpush1.msra.mxu0 0.0
        %3783 = vmatprep.subr.mxu0 0.0
        %3784 = vmatpush1.msra.mxu0 0.0
        %3785 = vmatprep.subr.mxu0 0.0
        %3786 = vmatpush1.msra.mxu0 0.0
        %3787 = vmatprep.subr.mxu0 0.0
        %3788 = vmatpush1.msra.mxu0 0.0
        %3789 = vmatprep.subr.mxu0 0.0
        %3790 = vmatpush1.msra.mxu0 0.0
        %3791 = vmatprep.subr.mxu0 0.0
        %3792 = vmatpush1.msra.mxu0 0.0
        %3793 = vmatprep.subr.mxu0 0.0
        %3794 = vmatpush1.msra.mxu0 0.0
        %3795 = vmatprep.subr.mxu0 0.0
        %3796 = vmatpush1.msra.mxu0 0.0
        %3797 = vmatprep.subr.mxu0 0.0
        %3798 = vmatpush1.msra.mxu0 0.0
        %3799 = vmatprep.subr.mxu0 0.0
        %3800 = vmatpush1.msra.mxu0 0.0
        %3801 = vmatprep.subr.mxu0 0.0
        %3802 = vmatpush1.msra.mxu0 0.0
        %3803 = vmatprep.subr.mxu0 0.0
        %3804 = vmatpush1.msra.mxu0 0.0
        %3805 = vmatprep.subr.mxu0 0.0
        %3806 = vmatpush1.msra.mxu0 0.0
        %3807 = vmatprep.subr.mxu0 0.0
        %3808 = vmatpush1.msra.mxu0 0.0
        %3809 = vmatprep.subr.mxu0 0.0
        %3810 = vmatpush1.msra.mxu0 0.0
        %3811 = vmatprep.subr.mxu0 0.0
        %3812 = vmatpush1.msra.mxu0 0.0
        %3813 = vmatprep.subr.mxu0 0.0
        %3814 = vmatpush1.msra.mxu0 0.0
        %3815 = vmatprep.mubr.f32.mxu0 0.0
        %v3816 = vand.u32 %v2392, 4294901760
        %3817 = vmatmul.mubr.f32.gmra.mrb[0].mxu0 %v3816
        %v3818 = vpop.f32.mrb[0].mxu0
        %v3819 = vadd.f32 %v3734, %v3818
        %v3820 = vpop.f32.mrb[0].mxu0
        %3821 = vmatprep.mubr.f32.mxu0 0.0
        %v3822 = vand.u32 %v2395, 4294901760
        %3823 = vmatmul.mubr.f32.gmra.mrb[0].mxu0 %v3822
        %v3824 = vpop.f32.mrb[0].mxu0
        %v3825 = vadd.f32 %v3742, %v3824
        %v3826 = vpop.f32.mrb[0].mxu0
        %3827 = vdwg.mxu0
        %3828 = vmatprep.subr.mxu0 0.0
        %v3829 = vand.u32 %v1846, 4294901760
        %3830 = vmatpush1.msra.mxu0 %v3829
        %3831 = vmatprep.subr.mxu0 0.0
        %v3832 = vand.u32 %v1852, 4294901760
        %3833 = vmatpush1.msra.mxu0 %v3832
        %3834 = vmatprep.subr.mxu0 0.0
        %3835 = vmatpush1.msra.mxu0 0.0
        %3836 = vmatprep.subr.mxu0 0.0
        %3837 = vmatpush1.msra.mxu0 0.0
        %3838 = vmatprep.subr.mxu0 0.0
        %3839 = vmatpush1.msra.mxu0 0.0
        %3840 = vmatprep.subr.mxu0 0.0
        %3841 = vmatpush1.msra.mxu0 0.0
        %3842 = vmatprep.subr.mxu0 0.0
        %3843 = vmatpush1.msra.mxu0 0.0
        %3844 = vmatprep.subr.mxu0 0.0
        %3845 = vmatpush1.msra.mxu0 0.0
        %3846 = vmatprep.subr.mxu0 0.0
        %3847 = vmatpush1.msra.mxu0 0.0
        %3848 = vmatprep.subr.mxu0 0.0
        %3849 = vmatpush1.msra.mxu0 0.0
        %3850 = vmatprep.subr.mxu0 0.0
        %3851 = vmatpush1.msra.mxu0 0.0
        %3852 = vmatprep.subr.mxu0 0.0
        %3853 = vmatpush1.msra.mxu0 0.0
        %3854 = vmatprep.subr.mxu0 0.0
        %3855 = vmatpush1.msra.mxu0 0.0
        %3856 = vmatprep.subr.mxu0 0.0
        %3857 = vmatpush1.msra.mxu0 0.0
        %3858 = vmatprep.subr.mxu0 0.0
        %3859 = vmatpush1.msra.mxu0 0.0
        %3860 = vmatprep.subr.mxu0 0.0
        %3861 = vmatpush1.msra.mxu0 0.0
        %3862 = vmatprep.subr.mxu0 0.0
        %3863 = vmatpush1.msra.mxu0 0.0
        %3864 = vmatprep.subr.mxu0 0.0
        %3865 = vmatpush1.msra.mxu0 0.0
        %3866 = vmatprep.subr.mxu0 0.0
        %3867 = vmatpush1.msra.mxu0 0.0
        %3868 = vmatprep.subr.mxu0 0.0
        %3869 = vmatpush1.msra.mxu0 0.0
        %3870 = vmatprep.subr.mxu0 0.0
        %3871 = vmatpush1.msra.mxu0 0.0
        %3872 = vmatprep.subr.mxu0 0.0
        %3873 = vmatpush1.msra.mxu0 0.0
        %3874 = vmatprep.subr.mxu0 0.0
        %3875 = vmatpush1.msra.mxu0 0.0
        %3876 = vmatprep.subr.mxu0 0.0
        %3877 = vmatpush1.msra.mxu0 0.0
        %3878 = vmatprep.subr.mxu0 0.0
        %3879 = vmatpush1.msra.mxu0 0.0
        %3880 = vmatprep.subr.mxu0 0.0
        %3881 = vmatpush1.msra.mxu0 0.0
        %3882 = vmatprep.subr.mxu0 0.0
        %3883 = vmatpush1.msra.mxu0 0.0
        %3884 = vmatprep.subr.mxu0 0.0
        %3885 = vmatpush1.msra.mxu0 0.0
        %3886 = vmatprep.subr.mxu0 0.0
        %3887 = vmatpush1.msra.mxu0 0.0
        %3888 = vmatprep.subr.mxu0 0.0
        %3889 = vmatpush1.msra.mxu0 0.0
        %3890 = vmatprep.subr.mxu0 0.0
        %3891 = vmatpush1.msra.mxu0 0.0
        %3892 = vmatprep.subr.mxu0 0.0
        %3893 = vmatpush1.msra.mxu0 0.0
        %3894 = vmatprep.mubr.f32.mxu0 0.0
        %v3895 = vand.u32 %v2392, 4294901760
        %3896 = vmatmul.mubr.f32.gmra.mrb[0].mxu0 %v3895
        %v3897 = vpop.f32.mrb[0].mxu0
        %v3898 = vadd.f32 %v3819, %v3897
        %v3899 = vpop.f32.mrb[0].mxu0
        %3900 = vmatprep.mubr.f32.mxu0 0.0
        %v3901 = vand.u32 %v2395, 4294901760
        %3902 = vmatmul.mubr.f32.gmra.mrb[0].mxu0 %v3901
        %v3903 = vpop.f32.mrb[0].mxu0
        %v3904 = vadd.f32 %v3825, %v3903
        %v3905 = vpop.f32.mrb[0].mxu0
        %3906 = vdwg.mxu0
        %v3907 = vsub.f32 %v3396, %v3898
        %v3908 = vsub.f32 %v3402, %v3904
        %s3909 = scalar_lea.vmem %s319, 16 [#allocation11]
        %3910 = vst.msk [vmem:[%s3909] sm:$0xff] %vm332, %v3907
        %3911 = vst.msk [vmem:[%s3909 + $0x8] sm:$0xff] %vm332, %v3908
        %3912 = vmatprep.subr.mxu0 0.0
        %v3913 = vand.u32 %v1096, 4294901760
        %3914 = vmatpush1.msra.mxu0 %v3913
        %3915 = vmatprep.subr.mxu0 0.0
        %v3916 = vand.u32 %v1102, 4294901760
        %3917 = vmatpush1.msra.mxu0 %v3916
        %3918 = vmatprep.subr.mxu0 0.0
        %3919 = vmatpush1.msra.mxu0 0.0
        %3920 = vmatprep.subr.mxu0 0.0
        %3921 = vmatpush1.msra.mxu0 0.0
        %3922 = vmatprep.subr.mxu0 0.0
        %3923 = vmatpush1.msra.mxu0 0.0
        %3924 = vmatprep.subr.mxu0 0.0
        %3925 = vmatpush1.msra.mxu0 0.0
        %3926 = vmatprep.subr.mxu0 0.0
        %3927 = vmatpush1.msra.mxu0 0.0
        %3928 = vmatprep.subr.mxu0 0.0
        %3929 = vmatpush1.msra.mxu0 0.0
        %3930 = vmatprep.subr.mxu0 0.0
        %3931 = vmatpush1.msra.mxu0 0.0
        %3932 = vmatprep.subr.mxu0 0.0
        %3933 = vmatpush1.msra.mxu0 0.0
        %3934 = vmatprep.subr.mxu0 0.0
        %3935 = vmatpush1.msra.mxu0 0.0
        %3936 = vmatprep.subr.mxu0 0.0
        %3937 = vmatpush1.msra.mxu0 0.0
        %3938 = vmatprep.subr.mxu0 0.0
        %3939 = vmatpush1.msra.mxu0 0.0
        %3940 = vmatprep.subr.mxu0 0.0
        %3941 = vmatpush1.msra.mxu0 0.0
        %3942 = vmatprep.subr.mxu0 0.0
        %3943 = vmatpush1.msra.mxu0 0.0
        %3944 = vmatprep.subr.mxu0 0.0
        %3945 = vmatpush1.msra.mxu0 0.0
        %3946 = vmatprep.subr.mxu0 0.0
        %3947 = vmatpush1.msra.mxu0 0.0
        %3948 = vmatprep.subr.mxu0 0.0
        %3949 = vmatpush1.msra.mxu0 0.0
        %3950 = vmatprep.subr.mxu0 0.0
        %3951 = vmatpush1.msra.mxu0 0.0
        %3952 = vmatprep.subr.mxu0 0.0
        %3953 = vmatpush1.msra.mxu0 0.0
        %3954 = vmatprep.subr.mxu0 0.0
        %3955 = vmatpush1.msra.mxu0 0.0
        %3956 = vmatprep.subr.mxu0 0.0
        %3957 = vmatpush1.msra.mxu0 0.0
        %3958 = vmatprep.subr.mxu0 0.0
        %3959 = vmatpush1.msra.mxu0 0.0
        %3960 = vmatprep.subr.mxu0 0.0
        %3961 = vmatpush1.msra.mxu0 0.0
        %3962 = vmatprep.subr.mxu0 0.0
        %3963 = vmatpush1.msra.mxu0 0.0
        %3964 = vmatprep.subr.mxu0 0.0
        %3965 = vmatpush1.msra.mxu0 0.0
        %3966 = vmatprep.subr.mxu0 0.0
        %3967 = vmatpush1.msra.mxu0 0.0
        %3968 = vmatprep.subr.mxu0 0.0
        %3969 = vmatpush1.msra.mxu0 0.0
        %3970 = vmatprep.subr.mxu0 0.0
        %3971 = vmatpush1.msra.mxu0 0.0
        %3972 = vmatprep.subr.mxu0 0.0
        %3973 = vmatpush1.msra.mxu0 0.0
        %3974 = vmatprep.subr.mxu0 0.0
        %3975 = vmatpush1.msra.mxu0 0.0
        %3976 = vmatprep.subr.mxu0 0.0
        %3977 = vmatpush1.msra.mxu0 0.0
        %3978 = vmatprep.mubr.f32.mxu0 0.0
        %v3979 = vand.u32 %v1884, 4294901760
        %v3980 = vsub.f32 %v1884, %v3979
        %v3981 = vand.u32 %v3980, 4294901760
        %v3982 = vsub.f32 %v3980, %v3981
        %v3983 = vand.u32 %v3982, 4294901760
        %3984 = vmatmul.mubr.f32.gmra.mrb[0].mxu0 %v3983
        %v3985 = vpop.f32.mrb[0].mxu0
        %v3986 = vadd.f32 0.0, %v3985
        %v3987 = vpop.f32.mrb[0].mxu0
        %3988 = vmatprep.mubr.f32.mxu0 0.0
        %v3989 = vand.u32 %v1887, 4294901760
        %v3990 = vsub.f32 %v1887, %v3989
        %v3991 = vand.u32 %v3990, 4294901760
        %v3992 = vsub.f32 %v3990, %v3991
        %v3993 = vand.u32 %v3992, 4294901760
        %3994 = vmatmul.mubr.f32.gmra.mrb[0].mxu0 %v3993
        %v3995 = vpop.f32.mrb[0].mxu0
        %v3996 = vadd.f32 0.0, %v3995
        %v3997 = vpop.f32.mrb[0].mxu0
        %3998 = vdwg.mxu0
        %3999 = vmatprep.subr.mxu0 0.0
        %v4000 = vand.u32 %v1096, 4294901760
        %v4001 = vsub.f32 %v1096, %v4000
        %v4002 = vand.u32 %v4001, 4294901760
        %v4003 = vsub.f32 %v4001, %v4002
        %v4004 = vand.u32 %v4003, 4294901760
        %4005 = vmatpush1.msra.mxu0 %v4004
        %4006 = vmatprep.subr.mxu0 0.0
        %v4007 = vand.u32 %v1102, 4294901760
        %v4008 = vsub.f32 %v1102, %v4007
        %v4009 = vand.u32 %v4008, 4294901760
        %v4010 = vsub.f32 %v4008, %v4009
        %v4011 = vand.u32 %v4010, 4294901760
        %4012 = vmatpush1.msra.mxu0 %v4011
        %4013 = vmatprep.subr.mxu0 0.0
        %4014 = vmatpush1.msra.mxu0 0.0
        %4015 = vmatprep.subr.mxu0 0.0
        %4016 = vmatpush1.msra.mxu0 0.0
        %4017 = vmatprep.subr.mxu0 0.0
        %4018 = vmatpush1.msra.mxu0 0.0
        %4019 = vmatprep.subr.mxu0 0.0
        %4020 = vmatpush1.msra.mxu0 0.0
        %4021 = vmatprep.subr.mxu0 0.0
        %4022 = vmatpush1.msra.mxu0 0.0
        %4023 = vmatprep.subr.mxu0 0.0
        %4024 = vmatpush1.msra.mxu0 0.0
        %4025 = vmatprep.subr.mxu0 0.0
        %4026 = vmatpush1.msra.mxu0 0.0
        %4027 = vmatprep.subr.mxu0 0.0
        %4028 = vmatpush1.msra.mxu0 0.0
        %4029 = vmatprep.subr.mxu0 0.0
        %4030 = vmatpush1.msra.mxu0 0.0
        %4031 = vmatprep.subr.mxu0 0.0
        %4032 = vmatpush1.msra.mxu0 0.0
        %4033 = vmatprep.subr.mxu0 0.0
        %4034 = vmatpush1.msra.mxu0 0.0
        %4035 = vmatprep.subr.mxu0 0.0
        %4036 = vmatpush1.msra.mxu0 0.0
        %4037 = vmatprep.subr.mxu0 0.0
        %4038 = vmatpush1.msra.mxu0 0.0
        %4039 = vmatprep.subr.mxu0 0.0
        %4040 = vmatpush1.msra.mxu0 0.0
        %4041 = vmatprep.subr.mxu0 0.0
        %4042 = vmatpush1.msra.mxu0 0.0
        %4043 = vmatprep.subr.mxu0 0.0
        %4044 = vmatpush1.msra.mxu0 0.0
        %4045 = vmatprep.subr.mxu0 0.0
        %4046 = vmatpush1.msra.mxu0 0.0
        %4047 = vmatprep.subr.mxu0 0.0
        %4048 = vmatpush1.msra.mxu0 0.0
        %4049 = vmatprep.subr.mxu0 0.0
        %4050 = vmatpush1.msra.mxu0 0.0
        %4051 = vmatprep.subr.mxu0 0.0
        %4052 = vmatpush1.msra.mxu0 0.0
        %4053 = vmatprep.subr.mxu0 0.0
        %4054 = vmatpush1.msra.mxu0 0.0
        %4055 = vmatprep.subr.mxu0 0.0
        %4056 = vmatpush1.msra.mxu0 0.0
        %4057 = vmatprep.subr.mxu0 0.0
        %4058 = vmatpush1.msra.mxu0 0.0
        %4059 = vmatprep.subr.mxu0 0.0
        %4060 = vmatpush1.msra.mxu0 0.0
        %4061 = vmatprep.subr.mxu0 0.0
        %4062 = vmatpush1.msra.mxu0 0.0
        %4063 = vmatprep.subr.mxu0 0.0
        %4064 = vmatpush1.msra.mxu0 0.0
        %4065 = vmatprep.subr.mxu0 0.0
        %4066 = vmatpush1.msra.mxu0 0.0
        %4067 = vmatprep.subr.mxu0 0.0
        %4068 = vmatpush1.msra.mxu0 0.0
        %4069 = vmatprep.subr.mxu0 0.0
        %4070 = vmatpush1.msra.mxu0 0.0
        %4071 = vmatprep.subr.mxu0 0.0
        %4072 = vmatpush1.msra.mxu0 0.0
        %4073 = vmatprep.mubr.f32.mxu0 0.0
        %v4074 = vand.u32 %v1884, 4294901760
        %4075 = vmatmul.mubr.f32.gmra.mrb[0].mxu0 %v4074
        %v4076 = vpop.f32.mrb[0].mxu0
        %v4077 = vadd.f32 %v3986, %v4076
        %v4078 = vpop.f32.mrb[0].mxu0
        %4079 = vmatprep.mubr.f32.mxu0 0.0
        %v4080 = vand.u32 %v1887, 4294901760
        %4081 = vmatmul.mubr.f32.gmra.mrb[0].mxu0 %v4080
        %v4082 = vpop.f32.mrb[0].mxu0
        %v4083 = vadd.f32 %v3996, %v4082
        %v4084 = vpop.f32.mrb[0].mxu0
        %4085 = vdwg.mxu0
        %4086 = vmatprep.subr.mxu0 0.0
        %v4087 = vand.u32 %v1096, 4294901760
        %v4088 = vsub.f32 %v1096, %v4087
        %4089 = vmatpush1.msra.mxu0 %v4088
        %4090 = vmatprep.subr.mxu0 0.0
        %v4091 = vand.u32 %v1102, 4294901760
        %v4092 = vsub.f32 %v1102, %v4091
        %4093 = vmatpush1.msra.mxu0 %v4092
        %4094 = vmatprep.subr.mxu0 0.0
        %4095 = vmatpush1.msra.mxu0 0.0
        %4096 = vmatprep.subr.mxu0 0.0
        %4097 = vmatpush1.msra.mxu0 0.0
        %4098 = vmatprep.subr.mxu0 0.0
        %4099 = vmatpush1.msra.mxu0 0.0
        %4100 = vmatprep.subr.mxu0 0.0
        %4101 = vmatpush1.msra.mxu0 0.0
        %4102 = vmatprep.subr.mxu0 0.0
        %4103 = vmatpush1.msra.mxu0 0.0
        %4104 = vmatprep.subr.mxu0 0.0
        %4105 = vmatpush1.msra.mxu0 0.0
        %4106 = vmatprep.subr.mxu0 0.0
        %4107 = vmatpush1.msra.mxu0 0.0
        %4108 = vmatprep.subr.mxu0 0.0
        %4109 = vmatpush1.msra.mxu0 0.0
        %4110 = vmatprep.subr.mxu0 0.0
        %4111 = vmatpush1.msra.mxu0 0.0
        %4112 = vmatprep.subr.mxu0 0.0
        %4113 = vmatpush1.msra.mxu0 0.0
        %4114 = vmatprep.subr.mxu0 0.0
        %4115 = vmatpush1.msra.mxu0 0.0
        %4116 = vmatprep.subr.mxu0 0.0
        %4117 = vmatpush1.msra.mxu0 0.0
        %4118 = vmatprep.subr.mxu0 0.0
        %4119 = vmatpush1.msra.mxu0 0.0
        %4120 = vmatprep.subr.mxu0 0.0
        %4121 = vmatpush1.msra.mxu0 0.0
        %4122 = vmatprep.subr.mxu0 0.0
        %4123 = vmatpush1.msra.mxu0 0.0
        %4124 = vmatprep.subr.mxu0 0.0
        %4125 = vmatpush1.msra.mxu0 0.0
        %4126 = vmatprep.subr.mxu0 0.0
        %4127 = vmatpush1.msra.mxu0 0.0
        %4128 = vmatprep.subr.mxu0 0.0
        %4129 = vmatpush1.msra.mxu0 0.0
        %4130 = vmatprep.subr.mxu0 0.0
        %4131 = vmatpush1.msra.mxu0 0.0
        %4132 = vmatprep.subr.mxu0 0.0
        %4133 = vmatpush1.msra.mxu0 0.0
        %4134 = vmatprep.subr.mxu0 0.0
        %4135 = vmatpush1.msra.mxu0 0.0
        %4136 = vmatprep.subr.mxu0 0.0
        %4137 = vmatpush1.msra.mxu0 0.0
        %4138 = vmatprep.subr.mxu0 0.0
        %4139 = vmatpush1.msra.mxu0 0.0
        %4140 = vmatprep.subr.mxu0 0.0
        %4141 = vmatpush1.msra.mxu0 0.0
        %4142 = vmatprep.subr.mxu0 0.0
        %4143 = vmatpush1.msra.mxu0 0.0
        %4144 = vmatprep.subr.mxu0 0.0
        %4145 = vmatpush1.msra.mxu0 0.0
        %4146 = vmatprep.subr.mxu0 0.0
        %4147 = vmatpush1.msra.mxu0 0.0
        %4148 = vmatprep.subr.mxu0 0.0
        %4149 = vmatpush1.msra.mxu0 0.0
        %4150 = vmatprep.subr.mxu0 0.0
        %4151 = vmatpush1.msra.mxu0 0.0
        %4152 = vmatprep.subr.mxu0 0.0
        %4153 = vmatpush1.msra.mxu0 0.0
        %4154 = vmatprep.mubr.f32.mxu0 0.0
        %v4155 = vand.u32 %v1884, 4294901760
        %v4156 = vsub.f32 %v1884, %v4155
        %4157 = vmatmul.mubr.f32.gmra.mrb[0].mxu0 %v4156
        %v4158 = vpop.f32.mrb[0].mxu0
        %v4159 = vadd.f32 %v4077, %v4158
        %v4160 = vpop.f32.mrb[0].mxu0
        %4161 = vmatprep.mubr.f32.mxu0 0.0
        %v4162 = vand.u32 %v1887, 4294901760
        %v4163 = vsub.f32 %v1887, %v4162
        %4164 = vmatmul.mubr.f32.gmra.mrb[0].mxu0 %v4163
        %v4165 = vpop.f32.mrb[0].mxu0
        %v4166 = vadd.f32 %v4083, %v4165
        %v4167 = vpop.f32.mrb[0].mxu0
        %4168 = vdwg.mxu0
        %4169 = vmatprep.subr.mxu0 0.0
        %v4170 = vand.u32 %v1096, 4294901760
        %4171 = vmatpush1.msra.mxu0 %v4170
        %4172 = vmatprep.subr.mxu0 0.0
        %v4173 = vand.u32 %v1102, 4294901760
        %4174 = vmatpush1.msra.mxu0 %v4173
        %4175 = vmatprep.subr.mxu0 0.0
        %4176 = vmatpush1.msra.mxu0 0.0
        %4177 = vmatprep.subr.mxu0 0.0
        %4178 = vmatpush1.msra.mxu0 0.0
        %4179 = vmatprep.subr.mxu0 0.0
        %4180 = vmatpush1.msra.mxu0 0.0
        %4181 = vmatprep.subr.mxu0 0.0
        %4182 = vmatpush1.msra.mxu0 0.0
        %4183 = vmatprep.subr.mxu0 0.0
        %4184 = vmatpush1.msra.mxu0 0.0
        %4185 = vmatprep.subr.mxu0 0.0
        %4186 = vmatpush1.msra.mxu0 0.0
        %4187 = vmatprep.subr.mxu0 0.0
        %4188 = vmatpush1.msra.mxu0 0.0
        %4189 = vmatprep.subr.mxu0 0.0
        %4190 = vmatpush1.msra.mxu0 0.0
        %4191 = vmatprep.subr.mxu0 0.0
        %4192 = vmatpush1.msra.mxu0 0.0
        %4193 = vmatprep.subr.mxu0 0.0
        %4194 = vmatpush1.msra.mxu0 0.0
        %4195 = vmatprep.subr.mxu0 0.0
        %4196 = vmatpush1.msra.mxu0 0.0
        %4197 = vmatprep.subr.mxu0 0.0
        %4198 = vmatpush1.msra.mxu0 0.0
        %4199 = vmatprep.subr.mxu0 0.0
        %4200 = vmatpush1.msra.mxu0 0.0
        %4201 = vmatprep.subr.mxu0 0.0
        %4202 = vmatpush1.msra.mxu0 0.0
        %4203 = vmatprep.subr.mxu0 0.0
        %4204 = vmatpush1.msra.mxu0 0.0
        %4205 = vmatprep.subr.mxu0 0.0
        %4206 = vmatpush1.msra.mxu0 0.0
        %4207 = vmatprep.subr.mxu0 0.0
        %4208 = vmatpush1.msra.mxu0 0.0
        %4209 = vmatprep.subr.mxu0 0.0
        %4210 = vmatpush1.msra.mxu0 0.0
        %4211 = vmatprep.subr.mxu0 0.0
        %4212 = vmatpush1.msra.mxu0 0.0
        %4213 = vmatprep.subr.mxu0 0.0
        %4214 = vmatpush1.msra.mxu0 0.0
        %4215 = vmatprep.subr.mxu0 0.0
        %4216 = vmatpush1.msra.mxu0 0.0
        %4217 = vmatprep.subr.mxu0 0.0
        %4218 = vmatpush1.msra.mxu0 0.0
        %4219 = vmatprep.subr.mxu0 0.0
        %4220 = vmatpush1.msra.mxu0 0.0
        %4221 = vmatprep.subr.mxu0 0.0
        %4222 = vmatpush1.msra.mxu0 0.0
        %4223 = vmatprep.subr.mxu0 0.0
        %4224 = vmatpush1.msra.mxu0 0.0
        %4225 = vmatprep.subr.mxu0 0.0
        %4226 = vmatpush1.msra.mxu0 0.0
        %4227 = vmatprep.subr.mxu0 0.0
        %4228 = vmatpush1.msra.mxu0 0.0
        %4229 = vmatprep.subr.mxu0 0.0
        %4230 = vmatpush1.msra.mxu0 0.0
        %4231 = vmatprep.subr.mxu0 0.0
        %4232 = vmatpush1.msra.mxu0 0.0
        %4233 = vmatprep.subr.mxu0 0.0
        %4234 = vmatpush1.msra.mxu0 0.0
        %4235 = vmatprep.mubr.f32.mxu0 0.0
        %v4236 = vand.u32 %v1884, 4294901760
        %v4237 = vsub.f32 %v1884, %v4236
        %v4238 = vand.u32 %v4237, 4294901760
        %4239 = vmatmul.mubr.f32.gmra.mrb[0].mxu0 %v4238
        %v4240 = vpop.f32.mrb[0].mxu0
        %v4241 = vadd.f32 %v4159, %v4240
        %v4242 = vpop.f32.mrb[0].mxu0
        %4243 = vmatprep.mubr.f32.mxu0 0.0
        %v4244 = vand.u32 %v1887, 4294901760
        %v4245 = vsub.f32 %v1887, %v4244
        %v4246 = vand.u32 %v4245, 4294901760
        %4247 = vmatmul.mubr.f32.gmra.mrb[0].mxu0 %v4246
        %v4248 = vpop.f32.mrb[0].mxu0
        %v4249 = vadd.f32 %v4166, %v4248
        %v4250 = vpop.f32.mrb[0].mxu0
        %4251 = vdwg.mxu0
        %4252 = vmatprep.subr.mxu0 0.0
        %v4253 = vand.u32 %v1096, 4294901760
        %v4254 = vsub.f32 %v1096, %v4253
        %v4255 = vand.u32 %v4254, 4294901760
        %4256 = vmatpush1.msra.mxu0 %v4255
        %4257 = vmatprep.subr.mxu0 0.0
        %v4258 = vand.u32 %v1102, 4294901760
        %v4259 = vsub.f32 %v1102, %v4258
        %v4260 = vand.u32 %v4259, 4294901760
        %4261 = vmatpush1.msra.mxu0 %v4260
        %4262 = vmatprep.subr.mxu0 0.0
        %4263 = vmatpush1.msra.mxu0 0.0
        %4264 = vmatprep.subr.mxu0 0.0
        %4265 = vmatpush1.msra.mxu0 0.0
        %4266 = vmatprep.subr.mxu0 0.0
        %4267 = vmatpush1.msra.mxu0 0.0
        %4268 = vmatprep.subr.mxu0 0.0
        %4269 = vmatpush1.msra.mxu0 0.0
        %4270 = vmatprep.subr.mxu0 0.0
        %4271 = vmatpush1.msra.mxu0 0.0
        %4272 = vmatprep.subr.mxu0 0.0
        %4273 = vmatpush1.msra.mxu0 0.0
        %4274 = vmatprep.subr.mxu0 0.0
        %4275 = vmatpush1.msra.mxu0 0.0
        %4276 = vmatprep.subr.mxu0 0.0
        %4277 = vmatpush1.msra.mxu0 0.0
        %4278 = vmatprep.subr.mxu0 0.0
        %4279 = vmatpush1.msra.mxu0 0.0
        %4280 = vmatprep.subr.mxu0 0.0
        %4281 = vmatpush1.msra.mxu0 0.0
        %4282 = vmatprep.subr.mxu0 0.0
        %4283 = vmatpush1.msra.mxu0 0.0
        %4284 = vmatprep.subr.mxu0 0.0
        %4285 = vmatpush1.msra.mxu0 0.0
        %4286 = vmatprep.subr.mxu0 0.0
        %4287 = vmatpush1.msra.mxu0 0.0
        %4288 = vmatprep.subr.mxu0 0.0
        %4289 = vmatpush1.msra.mxu0 0.0
        %4290 = vmatprep.subr.mxu0 0.0
        %4291 = vmatpush1.msra.mxu0 0.0
        %4292 = vmatprep.subr.mxu0 0.0
        %4293 = vmatpush1.msra.mxu0 0.0
        %4294 = vmatprep.subr.mxu0 0.0
        %4295 = vmatpush1.msra.mxu0 0.0
        %4296 = vmatprep.subr.mxu0 0.0
        %4297 = vmatpush1.msra.mxu0 0.0
        %4298 = vmatprep.subr.mxu0 0.0
        %4299 = vmatpush1.msra.mxu0 0.0
        %4300 = vmatprep.subr.mxu0 0.0
        %4301 = vmatpush1.msra.mxu0 0.0
        %4302 = vmatprep.subr.mxu0 0.0
        %4303 = vmatpush1.msra.mxu0 0.0
        %4304 = vmatprep.subr.mxu0 0.0
        %4305 = vmatpush1.msra.mxu0 0.0
        %4306 = vmatprep.subr.mxu0 0.0
        %4307 = vmatpush1.msra.mxu0 0.0
        %4308 = vmatprep.subr.mxu0 0.0
        %4309 = vmatpush1.msra.mxu0 0.0
        %4310 = vmatprep.subr.mxu0 0.0
        %4311 = vmatpush1.msra.mxu0 0.0
        %4312 = vmatprep.subr.mxu0 0.0
        %4313 = vmatpush1.msra.mxu0 0.0
        %4314 = vmatprep.subr.mxu0 0.0
        %4315 = vmatpush1.msra.mxu0 0.0
        %4316 = vmatprep.subr.mxu0 0.0
        %4317 = vmatpush1.msra.mxu0 0.0
        %4318 = vmatprep.subr.mxu0 0.0
        %4319 = vmatpush1.msra.mxu0 0.0
        %4320 = vmatprep.subr.mxu0 0.0
        %4321 = vmatpush1.msra.mxu0 0.0
        %4322 = vmatprep.mubr.f32.mxu0 0.0
        %v4323 = vand.u32 %v1884, 4294901760
        %4324 = vmatmul.mubr.f32.gmra.mrb[0].mxu0 %v4323
        %v4325 = vpop.f32.mrb[0].mxu0
        %v4326 = vadd.f32 %v4241, %v4325
        %v4327 = vpop.f32.mrb[0].mxu0
        %4328 = vmatprep.mubr.f32.mxu0 0.0
        %v4329 = vand.u32 %v1887, 4294901760
        %4330 = vmatmul.mubr.f32.gmra.mrb[0].mxu0 %v4329
        %v4331 = vpop.f32.mrb[0].mxu0
        %v4332 = vadd.f32 %v4249, %v4331
        %v4333 = vpop.f32.mrb[0].mxu0
        %4334 = vdwg.mxu0
        %4335 = vmatprep.subr.mxu0 0.0
        %v4336 = vand.u32 %v1096, 4294901760
        %4337 = vmatpush1.msra.mxu0 %v4336
        %4338 = vmatprep.subr.mxu0 0.0
        %v4339 = vand.u32 %v1102, 4294901760
        %4340 = vmatpush1.msra.mxu0 %v4339
        %4341 = vmatprep.subr.mxu0 0.0
        %4342 = vmatpush1.msra.mxu0 0.0
        %4343 = vmatprep.subr.mxu0 0.0
        %4344 = vmatpush1.msra.mxu0 0.0
        %4345 = vmatprep.subr.mxu0 0.0
        %4346 = vmatpush1.msra.mxu0 0.0
        %4347 = vmatprep.subr.mxu0 0.0
        %4348 = vmatpush1.msra.mxu0 0.0
        %4349 = vmatprep.subr.mxu0 0.0
        %4350 = vmatpush1.msra.mxu0 0.0
        %4351 = vmatprep.subr.mxu0 0.0
        %4352 = vmatpush1.msra.mxu0 0.0
        %4353 = vmatprep.subr.mxu0 0.0
        %4354 = vmatpush1.msra.mxu0 0.0
        %4355 = vmatprep.subr.mxu0 0.0
        %4356 = vmatpush1.msra.mxu0 0.0
        %4357 = vmatprep.subr.mxu0 0.0
        %4358 = vmatpush1.msra.mxu0 0.0
        %4359 = vmatprep.subr.mxu0 0.0
        %4360 = vmatpush1.msra.mxu0 0.0
        %4361 = vmatprep.subr.mxu0 0.0
        %4362 = vmatpush1.msra.mxu0 0.0
        %4363 = vmatprep.subr.mxu0 0.0
        %4364 = vmatpush1.msra.mxu0 0.0
        %4365 = vmatprep.subr.mxu0 0.0
        %4366 = vmatpush1.msra.mxu0 0.0
        %4367 = vmatprep.subr.mxu0 0.0
        %4368 = vmatpush1.msra.mxu0 0.0
        %4369 = vmatprep.subr.mxu0 0.0
        %4370 = vmatpush1.msra.mxu0 0.0
        %4371 = vmatprep.subr.mxu0 0.0
        %4372 = vmatpush1.msra.mxu0 0.0
        %4373 = vmatprep.subr.mxu0 0.0
        %4374 = vmatpush1.msra.mxu0 0.0
        %4375 = vmatprep.subr.mxu0 0.0
        %4376 = vmatpush1.msra.mxu0 0.0
        %4377 = vmatprep.subr.mxu0 0.0
        %4378 = vmatpush1.msra.mxu0 0.0
        %4379 = vmatprep.subr.mxu0 0.0
        %4380 = vmatpush1.msra.mxu0 0.0
        %4381 = vmatprep.subr.mxu0 0.0
        %4382 = vmatpush1.msra.mxu0 0.0
        %4383 = vmatprep.subr.mxu0 0.0
        %4384 = vmatpush1.msra.mxu0 0.0
        %4385 = vmatprep.subr.mxu0 0.0
        %4386 = vmatpush1.msra.mxu0 0.0
        %4387 = vmatprep.subr.mxu0 0.0
        %4388 = vmatpush1.msra.mxu0 0.0
        %4389 = vmatprep.subr.mxu0 0.0
        %4390 = vmatpush1.msra.mxu0 0.0
        %4391 = vmatprep.subr.mxu0 0.0
        %4392 = vmatpush1.msra.mxu0 0.0
        %4393 = vmatprep.subr.mxu0 0.0
        %4394 = vmatpush1.msra.mxu0 0.0
        %4395 = vmatprep.subr.mxu0 0.0
        %4396 = vmatpush1.msra.mxu0 0.0
        %4397 = vmatprep.subr.mxu0 0.0
        %4398 = vmatpush1.msra.mxu0 0.0
        %4399 = vmatprep.subr.mxu0 0.0
        %4400 = vmatpush1.msra.mxu0 0.0
        %4401 = vmatprep.mubr.f32.mxu0 0.0
        %v4402 = vand.u32 %v1884, 4294901760
        %4403 = vmatmul.mubr.f32.gmra.mrb[0].mxu0 %v4402
        %v4404 = vpop.f32.mrb[0].mxu0
        %v4405 = vadd.f32 %v4326, %v4404
        %v4406 = vpop.f32.mrb[0].mxu0
        %4407 = vmatprep.mubr.f32.mxu0 0.0
        %v4408 = vand.u32 %v1887, 4294901760
        %4409 = vmatmul.mubr.f32.gmra.mrb[0].mxu0 %v4408
        %v4410 = vpop.f32.mrb[0].mxu0
        %v4411 = vadd.f32 %v4332, %v4410
        %v4412 = vpop.f32.mrb[0].mxu0
        %4413 = vdwg.mxu0
        %4414 = vmatprep.subr.mxu0 0.0
        %v4415 = vand.u32 %v1858, 4294901760
        %4416 = vmatpush1.msra.mxu0 %v4415
        %4417 = vmatprep.subr.mxu0 0.0
        %v4418 = vand.u32 %v1864, 4294901760
        %4419 = vmatpush1.msra.mxu0 %v4418
        %4420 = vmatprep.subr.mxu0 0.0
        %4421 = vmatpush1.msra.mxu0 0.0
        %4422 = vmatprep.subr.mxu0 0.0
        %4423 = vmatpush1.msra.mxu0 0.0
        %4424 = vmatprep.subr.mxu0 0.0
        %4425 = vmatpush1.msra.mxu0 0.0
        %4426 = vmatprep.subr.mxu0 0.0
        %4427 = vmatpush1.msra.mxu0 0.0
        %4428 = vmatprep.subr.mxu0 0.0
        %4429 = vmatpush1.msra.mxu0 0.0
        %4430 = vmatprep.subr.mxu0 0.0
        %4431 = vmatpush1.msra.mxu0 0.0
        %4432 = vmatprep.subr.mxu0 0.0
        %4433 = vmatpush1.msra.mxu0 0.0
        %4434 = vmatprep.subr.mxu0 0.0
        %4435 = vmatpush1.msra.mxu0 0.0
        %4436 = vmatprep.subr.mxu0 0.0
        %4437 = vmatpush1.msra.mxu0 0.0
        %4438 = vmatprep.subr.mxu0 0.0
        %4439 = vmatpush1.msra.mxu0 0.0
        %4440 = vmatprep.subr.mxu0 0.0
        %4441 = vmatpush1.msra.mxu0 0.0
        %4442 = vmatprep.subr.mxu0 0.0
        %4443 = vmatpush1.msra.mxu0 0.0
        %4444 = vmatprep.subr.mxu0 0.0
        %4445 = vmatpush1.msra.mxu0 0.0
        %4446 = vmatprep.subr.mxu0 0.0
        %4447 = vmatpush1.msra.mxu0 0.0
        %4448 = vmatprep.subr.mxu0 0.0
        %4449 = vmatpush1.msra.mxu0 0.0
        %4450 = vmatprep.subr.mxu0 0.0
        %4451 = vmatpush1.msra.mxu0 0.0
        %4452 = vmatprep.subr.mxu0 0.0
        %4453 = vmatpush1.msra.mxu0 0.0
        %4454 = vmatprep.subr.mxu0 0.0
        %4455 = vmatpush1.msra.mxu0 0.0
        %4456 = vmatprep.subr.mxu0 0.0
        %4457 = vmatpush1.msra.mxu0 0.0
        %4458 = vmatprep.subr.mxu0 0.0
        %4459 = vmatpush1.msra.mxu0 0.0
        %4460 = vmatprep.subr.mxu0 0.0
        %4461 = vmatpush1.msra.mxu0 0.0
        %4462 = vmatprep.subr.mxu0 0.0
        %4463 = vmatpush1.msra.mxu0 0.0
        %4464 = vmatprep.subr.mxu0 0.0
        %4465 = vmatpush1.msra.mxu0 0.0
        %4466 = vmatprep.subr.mxu0 0.0
        %4467 = vmatpush1.msra.mxu0 0.0
        %4468 = vmatprep.subr.mxu0 0.0
        %4469 = vmatpush1.msra.mxu0 0.0
        %4470 = vmatprep.subr.mxu0 0.0
        %4471 = vmatpush1.msra.mxu0 0.0
        %4472 = vmatprep.subr.mxu0 0.0
        %4473 = vmatpush1.msra.mxu0 0.0
        %4474 = vmatprep.subr.mxu0 0.0
        %4475 = vmatpush1.msra.mxu0 0.0
        %4476 = vmatprep.subr.mxu0 0.0
        %4477 = vmatpush1.msra.mxu0 0.0
        %4478 = vmatprep.subr.mxu0 0.0
        %4479 = vmatpush1.msra.mxu0 0.0
        %4480 = vmatprep.mubr.f32.mxu0 0.0
        %v4481 = vand.u32 %v2392, 4294901760
        %v4482 = vsub.f32 %v2392, %v4481
        %v4483 = vand.u32 %v4482, 4294901760
        %v4484 = vsub.f32 %v4482, %v4483
        %v4485 = vand.u32 %v4484, 4294901760
        %4486 = vmatmul.mubr.f32.gmra.mrb[0].mxu0 %v4485
        %v4487 = vpop.f32.mrb[0].mxu0
        %v4488 = vadd.f32 0.0, %v4487
        %v4489 = vpop.f32.mrb[0].mxu0
        %4490 = vmatprep.mubr.f32.mxu0 0.0
        %v4491 = vand.u32 %v2395, 4294901760
        %v4492 = vsub.f32 %v2395, %v4491
        %v4493 = vand.u32 %v4492, 4294901760
        %v4494 = vsub.f32 %v4492, %v4493
        %v4495 = vand.u32 %v4494, 4294901760
        %4496 = vmatmul.mubr.f32.gmra.mrb[0].mxu0 %v4495
        %v4497 = vpop.f32.mrb[0].mxu0
        %v4498 = vadd.f32 0.0, %v4497
        %v4499 = vpop.f32.mrb[0].mxu0
        %4500 = vdwg.mxu0
        %4501 = vmatprep.subr.mxu0 0.0
        %v4502 = vand.u32 %v1858, 4294901760
        %v4503 = vsub.f32 %v1858, %v4502
        %v4504 = vand.u32 %v4503, 4294901760
        %v4505 = vsub.f32 %v4503, %v4504
        %v4506 = vand.u32 %v4505, 4294901760
        %4507 = vmatpush1.msra.mxu0 %v4506
        %4508 = vmatprep.subr.mxu0 0.0
        %v4509 = vand.u32 %v1864, 4294901760
        %v4510 = vsub.f32 %v1864, %v4509
        %v4511 = vand.u32 %v4510, 4294901760
        %v4512 = vsub.f32 %v4510, %v4511
        %v4513 = vand.u32 %v4512, 4294901760
        %4514 = vmatpush1.msra.mxu0 %v4513
        %4515 = vmatprep.subr.mxu0 0.0
        %4516 = vmatpush1.msra.mxu0 0.0
        %4517 = vmatprep.subr.mxu0 0.0
        %4518 = vmatpush1.msra.mxu0 0.0
        %4519 = vmatprep.subr.mxu0 0.0
        %4520 = vmatpush1.msra.mxu0 0.0
        %4521 = vmatprep.subr.mxu0 0.0
        %4522 = vmatpush1.msra.mxu0 0.0
        %4523 = vmatprep.subr.mxu0 0.0
        %4524 = vmatpush1.msra.mxu0 0.0
        %4525 = vmatprep.subr.mxu0 0.0
        %4526 = vmatpush1.msra.mxu0 0.0
        %4527 = vmatprep.subr.mxu0 0.0
        %4528 = vmatpush1.msra.mxu0 0.0
        %4529 = vmatprep.subr.mxu0 0.0
        %4530 = vmatpush1.msra.mxu0 0.0
        %4531 = vmatprep.subr.mxu0 0.0
        %4532 = vmatpush1.msra.mxu0 0.0
        %4533 = vmatprep.subr.mxu0 0.0
        %4534 = vmatpush1.msra.mxu0 0.0
        %4535 = vmatprep.subr.mxu0 0.0
        %4536 = vmatpush1.msra.mxu0 0.0
        %4537 = vmatprep.subr.mxu0 0.0
        %4538 = vmatpush1.msra.mxu0 0.0
        %4539 = vmatprep.subr.mxu0 0.0
        %4540 = vmatpush1.msra.mxu0 0.0
        %4541 = vmatprep.subr.mxu0 0.0
        %4542 = vmatpush1.msra.mxu0 0.0
        %4543 = vmatprep.subr.mxu0 0.0
        %4544 = vmatpush1.msra.mxu0 0.0
        %4545 = vmatprep.subr.mxu0 0.0
        %4546 = vmatpush1.msra.mxu0 0.0
        %4547 = vmatprep.subr.mxu0 0.0
        %4548 = vmatpush1.msra.mxu0 0.0
        %4549 = vmatprep.subr.mxu0 0.0
        %4550 = vmatpush1.msra.mxu0 0.0
        %4551 = vmatprep.subr.mxu0 0.0
        %4552 = vmatpush1.msra.mxu0 0.0
        %4553 = vmatprep.subr.mxu0 0.0
        %4554 = vmatpush1.msra.mxu0 0.0
        %4555 = vmatprep.subr.mxu0 0.0
        %4556 = vmatpush1.msra.mxu0 0.0
        %4557 = vmatprep.subr.mxu0 0.0
        %4558 = vmatpush1.msra.mxu0 0.0
        %4559 = vmatprep.subr.mxu0 0.0
        %4560 = vmatpush1.msra.mxu0 0.0
        %4561 = vmatprep.subr.mxu0 0.0
        %4562 = vmatpush1.msra.mxu0 0.0
        %4563 = vmatprep.subr.mxu0 0.0
        %4564 = vmatpush1.msra.mxu0 0.0
        %4565 = vmatprep.subr.mxu0 0.0
        %4566 = vmatpush1.msra.mxu0 0.0
        %4567 = vmatprep.subr.mxu0 0.0
        %4568 = vmatpush1.msra.mxu0 0.0
        %4569 = vmatprep.subr.mxu0 0.0
        %4570 = vmatpush1.msra.mxu0 0.0
        %4571 = vmatprep.subr.mxu0 0.0
        %4572 = vmatpush1.msra.mxu0 0.0
        %4573 = vmatprep.subr.mxu0 0.0
        %4574 = vmatpush1.msra.mxu0 0.0
        %4575 = vmatprep.mubr.f32.mxu0 0.0
        %v4576 = vand.u32 %v2392, 4294901760
        %4577 = vmatmul.mubr.f32.gmra.mrb[0].mxu0 %v4576
        %v4578 = vpop.f32.mrb[0].mxu0
        %v4579 = vadd.f32 %v4488, %v4578
        %v4580 = vpop.f32.mrb[0].mxu0
        %4581 = vmatprep.mubr.f32.mxu0 0.0
        %v4582 = vand.u32 %v2395, 4294901760
        %4583 = vmatmul.mubr.f32.gmra.mrb[0].mxu0 %v4582
        %v4584 = vpop.f32.mrb[0].mxu0
        %v4585 = vadd.f32 %v4498, %v4584
        %v4586 = vpop.f32.mrb[0].mxu0
        %4587 = vdwg.mxu0
        %4588 = vmatprep.subr.mxu0 0.0
        %v4589 = vand.u32 %v1858, 4294901760
        %v4590 = vsub.f32 %v1858, %v4589
        %4591 = vmatpush1.msra.mxu0 %v4590
        %4592 = vmatprep.subr.mxu0 0.0
        %v4593 = vand.u32 %v1864, 4294901760
        %v4594 = vsub.f32 %v1864, %v4593
        %4595 = vmatpush1.msra.mxu0 %v4594
        %4596 = vmatprep.subr.mxu0 0.0
        %4597 = vmatpush1.msra.mxu0 0.0
        %4598 = vmatprep.subr.mxu0 0.0
        %4599 = vmatpush1.msra.mxu0 0.0
        %4600 = vmatprep.subr.mxu0 0.0
        %4601 = vmatpush1.msra.mxu0 0.0
        %4602 = vmatprep.subr.mxu0 0.0
        %4603 = vmatpush1.msra.mxu0 0.0
        %4604 = vmatprep.subr.mxu0 0.0
        %4605 = vmatpush1.msra.mxu0 0.0
        %4606 = vmatprep.subr.mxu0 0.0
        %4607 = vmatpush1.msra.mxu0 0.0
        %4608 = vmatprep.subr.mxu0 0.0
        %4609 = vmatpush1.msra.mxu0 0.0
        %4610 = vmatprep.subr.mxu0 0.0
        %4611 = vmatpush1.msra.mxu0 0.0
        %4612 = vmatprep.subr.mxu0 0.0
        %4613 = vmatpush1.msra.mxu0 0.0
        %4614 = vmatprep.subr.mxu0 0.0
        %4615 = vmatpush1.msra.mxu0 0.0
        %4616 = vmatprep.subr.mxu0 0.0
        %4617 = vmatpush1.msra.mxu0 0.0
        %4618 = vmatprep.subr.mxu0 0.0
        %4619 = vmatpush1.msra.mxu0 0.0
        %4620 = vmatprep.subr.mxu0 0.0
        %4621 = vmatpush1.msra.mxu0 0.0
        %4622 = vmatprep.subr.mxu0 0.0
        %4623 = vmatpush1.msra.mxu0 0.0
        %4624 = vmatprep.subr.mxu0 0.0
        %4625 = vmatpush1.msra.mxu0 0.0
        %4626 = vmatprep.subr.mxu0 0.0
        %4627 = vmatpush1.msra.mxu0 0.0
        %4628 = vmatprep.subr.mxu0 0.0
        %4629 = vmatpush1.msra.mxu0 0.0
        %4630 = vmatprep.subr.mxu0 0.0
        %4631 = vmatpush1.msra.mxu0 0.0
        %4632 = vmatprep.subr.mxu0 0.0
        %4633 = vmatpush1.msra.mxu0 0.0
        %4634 = vmatprep.subr.mxu0 0.0
        %4635 = vmatpush1.msra.mxu0 0.0
        %4636 = vmatprep.subr.mxu0 0.0
        %4637 = vmatpush1.msra.mxu0 0.0
        %4638 = vmatprep.subr.mxu0 0.0
        %4639 = vmatpush1.msra.mxu0 0.0
        %4640 = vmatprep.subr.mxu0 0.0
        %4641 = vmatpush1.msra.mxu0 0.0
        %4642 = vmatprep.subr.mxu0 0.0
        %4643 = vmatpush1.msra.mxu0 0.0
        %4644 = vmatprep.subr.mxu0 0.0
        %4645 = vmatpush1.msra.mxu0 0.0
        %4646 = vmatprep.subr.mxu0 0.0
        %4647 = vmatpush1.msra.mxu0 0.0
        %4648 = vmatprep.subr.mxu0 0.0
        %4649 = vmatpush1.msra.mxu0 0.0
        %4650 = vmatprep.subr.mxu0 0.0
        %4651 = vmatpush1.msra.mxu0 0.0
        %4652 = vmatprep.subr.mxu0 0.0
        %4653 = vmatpush1.msra.mxu0 0.0
        %4654 = vmatprep.subr.mxu0 0.0
        %4655 = vmatpush1.msra.mxu0 0.0
        %4656 = vmatprep.mubr.f32.mxu0 0.0
        %v4657 = vand.u32 %v2392, 4294901760
        %v4658 = vsub.f32 %v2392, %v4657
        %4659 = vmatmul.mubr.f32.gmra.mrb[0].mxu0 %v4658
        %v4660 = vpop.f32.mrb[0].mxu0
        %v4661 = vadd.f32 %v4579, %v4660
        %v4662 = vpop.f32.mrb[0].mxu0
        %4663 = vmatprep.mubr.f32.mxu0 0.0
        %v4664 = vand.u32 %v2395, 4294901760
        %v4665 = vsub.f32 %v2395, %v4664
        %4666 = vmatmul.mubr.f32.gmra.mrb[0].mxu0 %v4665
        %v4667 = vpop.f32.mrb[0].mxu0
        %v4668 = vadd.f32 %v4585, %v4667
        %v4669 = vpop.f32.mrb[0].mxu0
        %4670 = vdwg.mxu0
        %4671 = vmatprep.subr.mxu0 0.0
        %v4672 = vand.u32 %v1858, 4294901760
        %4673 = vmatpush1.msra.mxu0 %v4672
        %4674 = vmatprep.subr.mxu0 0.0
        %v4675 = vand.u32 %v1864, 4294901760
        %4676 = vmatpush1.msra.mxu0 %v4675
        %4677 = vmatprep.subr.mxu0 0.0
        %4678 = vmatpush1.msra.mxu0 0.0
        %4679 = vmatprep.subr.mxu0 0.0
        %4680 = vmatpush1.msra.mxu0 0.0
        %4681 = vmatprep.subr.mxu0 0.0
        %4682 = vmatpush1.msra.mxu0 0.0
        %4683 = vmatprep.subr.mxu0 0.0
        %4684 = vmatpush1.msra.mxu0 0.0
        %4685 = vmatprep.subr.mxu0 0.0
        %4686 = vmatpush1.msra.mxu0 0.0
        %4687 = vmatprep.subr.mxu0 0.0
        %4688 = vmatpush1.msra.mxu0 0.0
        %4689 = vmatprep.subr.mxu0 0.0
        %4690 = vmatpush1.msra.mxu0 0.0
        %4691 = vmatprep.subr.mxu0 0.0
        %4692 = vmatpush1.msra.mxu0 0.0
        %4693 = vmatprep.subr.mxu0 0.0
        %4694 = vmatpush1.msra.mxu0 0.0
        %4695 = vmatprep.subr.mxu0 0.0
        %4696 = vmatpush1.msra.mxu0 0.0
        %4697 = vmatprep.subr.mxu0 0.0
        %4698 = vmatpush1.msra.mxu0 0.0
        %4699 = vmatprep.subr.mxu0 0.0
        %4700 = vmatpush1.msra.mxu0 0.0
        %4701 = vmatprep.subr.mxu0 0.0
        %4702 = vmatpush1.msra.mxu0 0.0
        %4703 = vmatprep.subr.mxu0 0.0
        %4704 = vmatpush1.msra.mxu0 0.0
        %4705 = vmatprep.subr.mxu0 0.0
        %4706 = vmatpush1.msra.mxu0 0.0
        %4707 = vmatprep.subr.mxu0 0.0
        %4708 = vmatpush1.msra.mxu0 0.0
        %4709 = vmatprep.subr.mxu0 0.0
        %4710 = vmatpush1.msra.mxu0 0.0
        %4711 = vmatprep.subr.mxu0 0.0
        %4712 = vmatpush1.msra.mxu0 0.0
        %4713 = vmatprep.subr.mxu0 0.0
        %4714 = vmatpush1.msra.mxu0 0.0
        %4715 = vmatprep.subr.mxu0 0.0
        %4716 = vmatpush1.msra.mxu0 0.0
        %4717 = vmatprep.subr.mxu0 0.0
        %4718 = vmatpush1.msra.mxu0 0.0
        %4719 = vmatprep.subr.mxu0 0.0
        %4720 = vmatpush1.msra.mxu0 0.0
        %4721 = vmatprep.subr.mxu0 0.0
        %4722 = vmatpush1.msra.mxu0 0.0
        %4723 = vmatprep.subr.mxu0 0.0
        %4724 = vmatpush1.msra.mxu0 0.0
        %4725 = vmatprep.subr.mxu0 0.0
        %4726 = vmatpush1.msra.mxu0 0.0
        %4727 = vmatprep.subr.mxu0 0.0
        %4728 = vmatpush1.msra.mxu0 0.0
        %4729 = vmatprep.subr.mxu0 0.0
        %4730 = vmatpush1.msra.mxu0 0.0
        %4731 = vmatprep.subr.mxu0 0.0
        %4732 = vmatpush1.msra.mxu0 0.0
        %4733 = vmatprep.subr.mxu0 0.0
        %4734 = vmatpush1.msra.mxu0 0.0
        %4735 = vmatprep.subr.mxu0 0.0
        %4736 = vmatpush1.msra.mxu0 0.0
        %4737 = vmatprep.mubr.f32.mxu0 0.0
        %v4738 = vand.u32 %v2392, 4294901760
        %v4739 = vsub.f32 %v2392, %v4738
        %v4740 = vand.u32 %v4739, 4294901760
        %4741 = vmatmul.mubr.f32.gmra.mrb[0].mxu0 %v4740
        %v4742 = vpop.f32.mrb[0].mxu0
        %v4743 = vadd.f32 %v4661, %v4742
        %v4744 = vpop.f32.mrb[0].mxu0
        %4745 = vmatprep.mubr.f32.mxu0 0.0
        %v4746 = vand.u32 %v2395, 4294901760
        %v4747 = vsub.f32 %v2395, %v4746
        %v4748 = vand.u32 %v4747, 4294901760
        %4749 = vmatmul.mubr.f32.gmra.mrb[0].mxu0 %v4748
        %v4750 = vpop.f32.mrb[0].mxu0
        %v4751 = vadd.f32 %v4668, %v4750
        %v4752 = vpop.f32.mrb[0].mxu0
        %4753 = vdwg.mxu0
        %4754 = vmatprep.subr.mxu0 0.0
        %v4755 = vand.u32 %v1858, 4294901760
        %v4756 = vsub.f32 %v1858, %v4755
        %v4757 = vand.u32 %v4756, 4294901760
        %4758 = vmatpush1.msra.mxu0 %v4757
        %4759 = vmatprep.subr.mxu0 0.0
        %v4760 = vand.u32 %v1864, 4294901760
        %v4761 = vsub.f32 %v1864, %v4760
        %v4762 = vand.u32 %v4761, 4294901760
        %4763 = vmatpush1.msra.mxu0 %v4762
        %4764 = vmatprep.subr.mxu0 0.0
        %4765 = vmatpush1.msra.mxu0 0.0
        %4766 = vmatprep.subr.mxu0 0.0
        %4767 = vmatpush1.msra.mxu0 0.0
        %4768 = vmatprep.subr.mxu0 0.0
        %4769 = vmatpush1.msra.mxu0 0.0
        %4770 = vmatprep.subr.mxu0 0.0
        %4771 = vmatpush1.msra.mxu0 0.0
        %4772 = vmatprep.subr.mxu0 0.0
        %4773 = vmatpush1.msra.mxu0 0.0
        %4774 = vmatprep.subr.mxu0 0.0
        %4775 = vmatpush1.msra.mxu0 0.0
        %4776 = vmatprep.subr.mxu0 0.0
        %4777 = vmatpush1.msra.mxu0 0.0
        %4778 = vmatprep.subr.mxu0 0.0
        %4779 = vmatpush1.msra.mxu0 0.0
        %4780 = vmatprep.subr.mxu0 0.0
        %4781 = vmatpush1.msra.mxu0 0.0
        %4782 = vmatprep.subr.mxu0 0.0
        %4783 = vmatpush1.msra.mxu0 0.0
        %4784 = vmatprep.subr.mxu0 0.0
        %4785 = vmatpush1.msra.mxu0 0.0
        %4786 = vmatprep.subr.mxu0 0.0
        %4787 = vmatpush1.msra.mxu0 0.0
        %4788 = vmatprep.subr.mxu0 0.0
        %4789 = vmatpush1.msra.mxu0 0.0
        %4790 = vmatprep.subr.mxu0 0.0
        %4791 = vmatpush1.msra.mxu0 0.0
        %4792 = vmatprep.subr.mxu0 0.0
        %4793 = vmatpush1.msra.mxu0 0.0
        %4794 = vmatprep.subr.mxu0 0.0
        %4795 = vmatpush1.msra.mxu0 0.0
        %4796 = vmatprep.subr.mxu0 0.0
        %4797 = vmatpush1.msra.mxu0 0.0
        %4798 = vmatprep.subr.mxu0 0.0
        %4799 = vmatpush1.msra.mxu0 0.0
        %4800 = vmatprep.subr.mxu0 0.0
        %4801 = vmatpush1.msra.mxu0 0.0
        %4802 = vmatprep.subr.mxu0 0.0
        %4803 = vmatpush1.msra.mxu0 0.0
        %4804 = vmatprep.subr.mxu0 0.0
        %4805 = vmatpush1.msra.mxu0 0.0
        %4806 = vmatprep.subr.mxu0 0.0
        %4807 = vmatpush1.msra.mxu0 0.0
        %4808 = vmatprep.subr.mxu0 0.0
        %4809 = vmatpush1.msra.mxu0 0.0
        %4810 = vmatprep.subr.mxu0 0.0
        %4811 = vmatpush1.msra.mxu0 0.0
        %4812 = vmatprep.subr.mxu0 0.0
        %4813 = vmatpush1.msra.mxu0 0.0
        %4814 = vmatprep.subr.mxu0 0.0
        %4815 = vmatpush1.msra.mxu0 0.0
        %4816 = vmatprep.subr.mxu0 0.0
        %4817 = vmatpush1.msra.mxu0 0.0
        %4818 = vmatprep.subr.mxu0 0.0
        %4819 = vmatpush1.msra.mxu0 0.0
        %4820 = vmatprep.subr.mxu0 0.0
        %4821 = vmatpush1.msra.mxu0 0.0
        %4822 = vmatprep.subr.mxu0 0.0
        %4823 = vmatpush1.msra.mxu0 0.0
        %4824 = vmatprep.mubr.f32.mxu0 0.0
        %v4825 = vand.u32 %v2392, 4294901760
        %4826 = vmatmul.mubr.f32.gmra.mrb[0].mxu0 %v4825
        %v4827 = vpop.f32.mrb[0].mxu0
        %v4828 = vadd.f32 %v4743, %v4827
        %v4829 = vpop.f32.mrb[0].mxu0
        %4830 = vmatprep.mubr.f32.mxu0 0.0
        %v4831 = vand.u32 %v2395, 4294901760
        %4832 = vmatmul.mubr.f32.gmra.mrb[0].mxu0 %v4831
        %v4833 = vpop.f32.mrb[0].mxu0
        %v4834 = vadd.f32 %v4751, %v4833
        %v4835 = vpop.f32.mrb[0].mxu0
        %4836 = vdwg.mxu0
        %4837 = vmatprep.subr.mxu0 0.0
        %v4838 = vand.u32 %v1858, 4294901760
        %4839 = vmatpush1.msra.mxu0 %v4838
        %4840 = vmatprep.subr.mxu0 0.0
        %v4841 = vand.u32 %v1864, 4294901760
        %4842 = vmatpush1.msra.mxu0 %v4841
        %4843 = vmatprep.subr.mxu0 0.0
        %4844 = vmatpush1.msra.mxu0 0.0
        %4845 = vmatprep.subr.mxu0 0.0
        %4846 = vmatpush1.msra.mxu0 0.0
        %4847 = vmatprep.subr.mxu0 0.0
        %4848 = vmatpush1.msra.mxu0 0.0
        %4849 = vmatprep.subr.mxu0 0.0
        %4850 = vmatpush1.msra.mxu0 0.0
        %4851 = vmatprep.subr.mxu0 0.0
        %4852 = vmatpush1.msra.mxu0 0.0
        %4853 = vmatprep.subr.mxu0 0.0
        %4854 = vmatpush1.msra.mxu0 0.0
        %4855 = vmatprep.subr.mxu0 0.0
        %4856 = vmatpush1.msra.mxu0 0.0
        %4857 = vmatprep.subr.mxu0 0.0
        %4858 = vmatpush1.msra.mxu0 0.0
        %4859 = vmatprep.subr.mxu0 0.0
        %4860 = vmatpush1.msra.mxu0 0.0
        %4861 = vmatprep.subr.mxu0 0.0
        %4862 = vmatpush1.msra.mxu0 0.0
        %4863 = vmatprep.subr.mxu0 0.0
        %4864 = vmatpush1.msra.mxu0 0.0
        %4865 = vmatprep.subr.mxu0 0.0
        %4866 = vmatpush1.msra.mxu0 0.0
        %4867 = vmatprep.subr.mxu0 0.0
        %4868 = vmatpush1.msra.mxu0 0.0
        %4869 = vmatprep.subr.mxu0 0.0
        %4870 = vmatpush1.msra.mxu0 0.0
        %4871 = vmatprep.subr.mxu0 0.0
        %4872 = vmatpush1.msra.mxu0 0.0
        %4873 = vmatprep.subr.mxu0 0.0
        %4874 = vmatpush1.msra.mxu0 0.0
        %4875 = vmatprep.subr.mxu0 0.0
        %4876 = vmatpush1.msra.mxu0 0.0
        %4877 = vmatprep.subr.mxu0 0.0
        %4878 = vmatpush1.msra.mxu0 0.0
        %4879 = vmatprep.subr.mxu0 0.0
        %4880 = vmatpush1.msra.mxu0 0.0
        %4881 = vmatprep.subr.mxu0 0.0
        %4882 = vmatpush1.msra.mxu0 0.0
        %4883 = vmatprep.subr.mxu0 0.0
        %4884 = vmatpush1.msra.mxu0 0.0
        %4885 = vmatprep.subr.mxu0 0.0
        %4886 = vmatpush1.msra.mxu0 0.0
        %4887 = vmatprep.subr.mxu0 0.0
        %4888 = vmatpush1.msra.mxu0 0.0
        %4889 = vmatprep.subr.mxu0 0.0
        %4890 = vmatpush1.msra.mxu0 0.0
        %4891 = vmatprep.subr.mxu0 0.0
        %4892 = vmatpush1.msra.mxu0 0.0
        %4893 = vmatprep.subr.mxu0 0.0
        %4894 = vmatpush1.msra.mxu0 0.0
        %4895 = vmatprep.subr.mxu0 0.0
        %4896 = vmatpush1.msra.mxu0 0.0
        %4897 = vmatprep.subr.mxu0 0.0
        %4898 = vmatpush1.msra.mxu0 0.0
        %4899 = vmatprep.subr.mxu0 0.0
        %4900 = vmatpush1.msra.mxu0 0.0
        %4901 = vmatprep.subr.mxu0 0.0
        %4902 = vmatpush1.msra.mxu0 0.0
        %4903 = vmatprep.mubr.f32.mxu0 0.0
        %v4904 = vand.u32 %v2392, 4294901760
        %4905 = vmatmul.mubr.f32.gmra.mrb[0].mxu0 %v4904
        %v4906 = vpop.f32.mrb[0].mxu0
        %v4907 = vadd.f32 %v4828, %v4906
        %v4908 = vpop.f32.mrb[0].mxu0
        %4909 = vmatprep.mubr.f32.mxu0 0.0
        %v4910 = vand.u32 %v2395, 4294901760
        %4911 = vmatmul.mubr.f32.gmra.mrb[0].mxu0 %v4910
        %v4912 = vpop.f32.mrb[0].mxu0
        %v4913 = vadd.f32 %v4834, %v4912
        %v4914 = vpop.f32.mrb[0].mxu0
        %4915 = vdwg.mxu0
        %v4916 = vsub.f32 %v4405, %v4907
        %v4917 = vsub.f32 %v4411, %v4913
        %s4918 = scalar_lea.vmem %s319, 32 [#allocation11]
        %4919 = vst.msk [vmem:[%s4918] sm:$0xff] %vm332, %v4916
        %4920 = vst.msk [vmem:[%s4918 + $0x8] sm:$0xff] %vm332, %v4917
        %4921 = vmatprep.subr.mxu0 0.0
        %v4922 = vand.u32 %v1108, 4294901760
        %4923 = vmatpush1.msra.mxu0 %v4922
        %4924 = vmatprep.subr.mxu0 0.0
        %v4925 = vand.u32 %v1114, 4294901760
        %4926 = vmatpush1.msra.mxu0 %v4925
        %4927 = vmatprep.subr.mxu0 0.0
        %4928 = vmatpush1.msra.mxu0 0.0
        %4929 = vmatprep.subr.mxu0 0.0
        %4930 = vmatpush1.msra.mxu0 0.0
        %4931 = vmatprep.subr.mxu0 0.0
        %4932 = vmatpush1.msra.mxu0 0.0
        %4933 = vmatprep.subr.mxu0 0.0
        %4934 = vmatpush1.msra.mxu0 0.0
        %4935 = vmatprep.subr.mxu0 0.0
        %4936 = vmatpush1.msra.mxu0 0.0
        %4937 = vmatprep.subr.mxu0 0.0
        %4938 = vmatpush1.msra.mxu0 0.0
        %4939 = vmatprep.subr.mxu0 0.0
        %4940 = vmatpush1.msra.mxu0 0.0
        %4941 = vmatprep.subr.mxu0 0.0
        %4942 = vmatpush1.msra.mxu0 0.0
        %4943 = vmatprep.subr.mxu0 0.0
        %4944 = vmatpush1.msra.mxu0 0.0
        %4945 = vmatprep.subr.mxu0 0.0
        %4946 = vmatpush1.msra.mxu0 0.0
        %4947 = vmatprep.subr.mxu0 0.0
        %4948 = vmatpush1.msra.mxu0 0.0
        %4949 = vmatprep.subr.mxu0 0.0
        %4950 = vmatpush1.msra.mxu0 0.0
        %4951 = vmatprep.subr.mxu0 0.0
        %4952 = vmatpush1.msra.mxu0 0.0
        %4953 = vmatprep.subr.mxu0 0.0
        %4954 = vmatpush1.msra.mxu0 0.0
        %4955 = vmatprep.subr.mxu0 0.0
        %4956 = vmatpush1.msra.mxu0 0.0
        %4957 = vmatprep.subr.mxu0 0.0
        %4958 = vmatpush1.msra.mxu0 0.0
        %4959 = vmatprep.subr.mxu0 0.0
        %4960 = vmatpush1.msra.mxu0 0.0
        %4961 = vmatprep.subr.mxu0 0.0
        %4962 = vmatpush1.msra.mxu0 0.0
        %4963 = vmatprep.subr.mxu0 0.0
        %4964 = vmatpush1.msra.mxu0 0.0
        %4965 = vmatprep.subr.mxu0 0.0
        %4966 = vmatpush1.msra.mxu0 0.0
        %4967 = vmatprep.subr.mxu0 0.0
        %4968 = vmatpush1.msra.mxu0 0.0
        %4969 = vmatprep.subr.mxu0 0.0
        %4970 = vmatpush1.msra.mxu0 0.0
        %4971 = vmatprep.subr.mxu0 0.0
        %4972 = vmatpush1.msra.mxu0 0.0
        %4973 = vmatprep.subr.mxu0 0.0
        %4974 = vmatpush1.msra.mxu0 0.0
        %4975 = vmatprep.subr.mxu0 0.0
        %4976 = vmatpush1.msra.mxu0 0.0
        %4977 = vmatprep.subr.mxu0 0.0
        %4978 = vmatpush1.msra.mxu0 0.0
        %4979 = vmatprep.subr.mxu0 0.0
        %4980 = vmatpush1.msra.mxu0 0.0
        %4981 = vmatprep.subr.mxu0 0.0
        %4982 = vmatpush1.msra.mxu0 0.0
        %4983 = vmatprep.subr.mxu0 0.0
        %4984 = vmatpush1.msra.mxu0 0.0
        %4985 = vmatprep.subr.mxu0 0.0
        %4986 = vmatpush1.msra.mxu0 0.0
        %4987 = vmatprep.mubr.f32.mxu0 0.0
        %v4988 = vand.u32 %v1884, 4294901760
        %v4989 = vsub.f32 %v1884, %v4988
        %v4990 = vand.u32 %v4989, 4294901760
        %v4991 = vsub.f32 %v4989, %v4990
        %v4992 = vand.u32 %v4991, 4294901760
        %4993 = vmatmul.mubr.f32.gmra.mrb[0].mxu0 %v4992
        %v4994 = vpop.f32.mrb[0].mxu0
        %v4995 = vadd.f32 0.0, %v4994
        %v4996 = vpop.f32.mrb[0].mxu0
        %4997 = vmatprep.mubr.f32.mxu0 0.0
        %v4998 = vand.u32 %v1887, 4294901760
        %v4999 = vsub.f32 %v1887, %v4998
        %v5000 = vand.u32 %v4999, 4294901760
        %v5001 = vsub.f32 %v4999, %v5000
        %v5002 = vand.u32 %v5001, 4294901760
        %5003 = vmatmul.mubr.f32.gmra.mrb[0].mxu0 %v5002
        %v5004 = vpop.f32.mrb[0].mxu0
        %v5005 = vadd.f32 0.0, %v5004
        %v5006 = vpop.f32.mrb[0].mxu0
        %5007 = vdwg.mxu0
        %5008 = vmatprep.subr.mxu0 0.0
        %v5009 = vand.u32 %v1108, 4294901760
        %v5010 = vsub.f32 %v1108, %v5009
        %v5011 = vand.u32 %v5010, 4294901760
        %v5012 = vsub.f32 %v5010, %v5011
        %v5013 = vand.u32 %v5012, 4294901760
        %5014 = vmatpush1.msra.mxu0 %v5013
        %5015 = vmatprep.subr.mxu0 0.0
        %v5016 = vand.u32 %v1114, 4294901760
        %v5017 = vsub.f32 %v1114, %v5016
        %v5018 = vand.u32 %v5017, 4294901760
        %v5019 = vsub.f32 %v5017, %v5018
        %v5020 = vand.u32 %v5019, 4294901760
        %5021 = vmatpush1.msra.mxu0 %v5020
        %5022 = vmatprep.subr.mxu0 0.0
        %5023 = vmatpush1.msra.mxu0 0.0
        %5024 = vmatprep.subr.mxu0 0.0
        %5025 = vmatpush1.msra.mxu0 0.0
        %5026 = vmatprep.subr.mxu0 0.0
        %5027 = vmatpush1.msra.mxu0 0.0
        %5028 = vmatprep.subr.mxu0 0.0
        %5029 = vmatpush1.msra.mxu0 0.0
        %5030 = vmatprep.subr.mxu0 0.0
        %5031 = vmatpush1.msra.mxu0 0.0
        %5032 = vmatprep.subr.mxu0 0.0
        %5033 = vmatpush1.msra.mxu0 0.0
        %5034 = vmatprep.subr.mxu0 0.0
        %5035 = vmatpush1.msra.mxu0 0.0
        %5036 = vmatprep.subr.mxu0 0.0
        %5037 = vmatpush1.msra.mxu0 0.0
        %5038 = vmatprep.subr.mxu0 0.0
        %5039 = vmatpush1.msra.mxu0 0.0
        %5040 = vmatprep.subr.mxu0 0.0
        %5041 = vmatpush1.msra.mxu0 0.0
        %5042 = vmatprep.subr.mxu0 0.0
        %5043 = vmatpush1.msra.mxu0 0.0
        %5044 = vmatprep.subr.mxu0 0.0
        %5045 = vmatpush1.msra.mxu0 0.0
        %5046 = vmatprep.subr.mxu0 0.0
        %5047 = vmatpush1.msra.mxu0 0.0
        %5048 = vmatprep.subr.mxu0 0.0
        %5049 = vmatpush1.msra.mxu0 0.0
        %5050 = vmatprep.subr.mxu0 0.0
        %5051 = vmatpush1.msra.mxu0 0.0
        %5052 = vmatprep.subr.mxu0 0.0
        %5053 = vmatpush1.msra.mxu0 0.0
        %5054 = vmatprep.subr.mxu0 0.0
        %5055 = vmatpush1.msra.mxu0 0.0
        %5056 = vmatprep.subr.mxu0 0.0
        %5057 = vmatpush1.msra.mxu0 0.0
        %5058 = vmatprep.subr.mxu0 0.0
        %5059 = vmatpush1.msra.mxu0 0.0
        %5060 = vmatprep.subr.mxu0 0.0
        %5061 = vmatpush1.msra.mxu0 0.0
        %5062 = vmatprep.subr.mxu0 0.0
        %5063 = vmatpush1.msra.mxu0 0.0
        %5064 = vmatprep.subr.mxu0 0.0
        %5065 = vmatpush1.msra.mxu0 0.0
        %5066 = vmatprep.subr.mxu0 0.0
        %5067 = vmatpush1.msra.mxu0 0.0
        %5068 = vmatprep.subr.mxu0 0.0
        %5069 = vmatpush1.msra.mxu0 0.0
        %5070 = vmatprep.subr.mxu0 0.0
        %5071 = vmatpush1.msra.mxu0 0.0
        %5072 = vmatprep.subr.mxu0 0.0
        %5073 = vmatpush1.msra.mxu0 0.0
        %5074 = vmatprep.subr.mxu0 0.0
        %5075 = vmatpush1.msra.mxu0 0.0
        %5076 = vmatprep.subr.mxu0 0.0
        %5077 = vmatpush1.msra.mxu0 0.0
        %5078 = vmatprep.subr.mxu0 0.0
        %5079 = vmatpush1.msra.mxu0 0.0
        %5080 = vmatprep.subr.mxu0 0.0
        %5081 = vmatpush1.msra.mxu0 0.0
        %5082 = vmatprep.mubr.f32.mxu0 0.0
        %v5083 = vand.u32 %v1884, 4294901760
        %5084 = vmatmul.mubr.f32.gmra.mrb[0].mxu0 %v5083
        %v5085 = vpop.f32.mrb[0].mxu0
        %v5086 = vadd.f32 %v4995, %v5085
        %v5087 = vpop.f32.mrb[0].mxu0
        %5088 = vmatprep.mubr.f32.mxu0 0.0
        %v5089 = vand.u32 %v1887, 4294901760
        %5090 = vmatmul.mubr.f32.gmra.mrb[0].mxu0 %v5089
        %v5091 = vpop.f32.mrb[0].mxu0
        %v5092 = vadd.f32 %v5005, %v5091
        %v5093 = vpop.f32.mrb[0].mxu0
        %5094 = vdwg.mxu0
        %5095 = vmatprep.subr.mxu0 0.0
        %v5096 = vand.u32 %v1108, 4294901760
        %v5097 = vsub.f32 %v1108, %v5096
        %5098 = vmatpush1.msra.mxu0 %v5097
        %5099 = vmatprep.subr.mxu0 0.0
        %v5100 = vand.u32 %v1114, 4294901760
        %v5101 = vsub.f32 %v1114, %v5100
        %5102 = vmatpush1.msra.mxu0 %v5101
        %5103 = vmatprep.subr.mxu0 0.0
        %5104 = vmatpush1.msra.mxu0 0.0
        %5105 = vmatprep.subr.mxu0 0.0
        %5106 = vmatpush1.msra.mxu0 0.0
        %5107 = vmatprep.subr.mxu0 0.0
        %5108 = vmatpush1.msra.mxu0 0.0
        %5109 = vmatprep.subr.mxu0 0.0
        %5110 = vmatpush1.msra.mxu0 0.0
        %5111 = vmatprep.subr.mxu0 0.0
        %5112 = vmatpush1.msra.mxu0 0.0
        %5113 = vmatprep.subr.mxu0 0.0
        %5114 = vmatpush1.msra.mxu0 0.0
        %5115 = vmatprep.subr.mxu0 0.0
        %5116 = vmatpush1.msra.mxu0 0.0
        %5117 = vmatprep.subr.mxu0 0.0
        %5118 = vmatpush1.msra.mxu0 0.0
        %5119 = vmatprep.subr.mxu0 0.0
        %5120 = vmatpush1.msra.mxu0 0.0
        %5121 = vmatprep.subr.mxu0 0.0
        %5122 = vmatpush1.msra.mxu0 0.0
        %5123 = vmatprep.subr.mxu0 0.0
        %5124 = vmatpush1.msra.mxu0 0.0
        %5125 = vmatprep.subr.mxu0 0.0
        %5126 = vmatpush1.msra.mxu0 0.0
        %5127 = vmatprep.subr.mxu0 0.0
        %5128 = vmatpush1.msra.mxu0 0.0
        %5129 = vmatprep.subr.mxu0 0.0
        %5130 = vmatpush1.msra.mxu0 0.0
        %5131 = vmatprep.subr.mxu0 0.0
        %5132 = vmatpush1.msra.mxu0 0.0
        %5133 = vmatprep.subr.mxu0 0.0
        %5134 = vmatpush1.msra.mxu0 0.0
        %5135 = vmatprep.subr.mxu0 0.0
        %5136 = vmatpush1.msra.mxu0 0.0
        %5137 = vmatprep.subr.mxu0 0.0
        %5138 = vmatpush1.msra.mxu0 0.0
        %5139 = vmatprep.subr.mxu0 0.0
        %5140 = vmatpush1.msra.mxu0 0.0
        %5141 = vmatprep.subr.mxu0 0.0
        %5142 = vmatpush1.msra.mxu0 0.0
        %5143 = vmatprep.subr.mxu0 0.0
        %5144 = vmatpush1.msra.mxu0 0.0
        %5145 = vmatprep.subr.mxu0 0.0
        %5146 = vmatpush1.msra.mxu0 0.0
        %5147 = vmatprep.subr.mxu0 0.0
        %5148 = vmatpush1.msra.mxu0 0.0
        %5149 = vmatprep.subr.mxu0 0.0
        %5150 = vmatpush1.msra.mxu0 0.0
        %5151 = vmatprep.subr.mxu0 0.0
        %5152 = vmatpush1.msra.mxu0 0.0
        %5153 = vmatprep.subr.mxu0 0.0
        %5154 = vmatpush1.msra.mxu0 0.0
        %5155 = vmatprep.subr.mxu0 0.0
        %5156 = vmatpush1.msra.mxu0 0.0
        %5157 = vmatprep.subr.mxu0 0.0
        %5158 = vmatpush1.msra.mxu0 0.0
        %5159 = vmatprep.subr.mxu0 0.0
        %5160 = vmatpush1.msra.mxu0 0.0
        %5161 = vmatprep.subr.mxu0 0.0
        %5162 = vmatpush1.msra.mxu0 0.0
        %5163 = vmatprep.mubr.f32.mxu0 0.0
        %v5164 = vand.u32 %v1884, 4294901760
        %v5165 = vsub.f32 %v1884, %v5164
        %5166 = vmatmul.mubr.f32.gmra.mrb[0].mxu0 %v5165
        %v5167 = vpop.f32.mrb[0].mxu0
        %v5168 = vadd.f32 %v5086, %v5167
        %v5169 = vpop.f32.mrb[0].mxu0
        %5170 = vmatprep.mubr.f32.mxu0 0.0
        %v5171 = vand.u32 %v1887, 4294901760
        %v5172 = vsub.f32 %v1887, %v5171
        %5173 = vmatmul.mubr.f32.gmra.mrb[0].mxu0 %v5172
        %v5174 = vpop.f32.mrb[0].mxu0
        %v5175 = vadd.f32 %v5092, %v5174
        %v5176 = vpop.f32.mrb[0].mxu0
        %5177 = vdwg.mxu0
        %5178 = vmatprep.subr.mxu0 0.0
        %v5179 = vand.u32 %v1108, 4294901760
        %5180 = vmatpush1.msra.mxu0 %v5179
        %5181 = vmatprep.subr.mxu0 0.0
        %v5182 = vand.u32 %v1114, 4294901760
        %5183 = vmatpush1.msra.mxu0 %v5182
        %5184 = vmatprep.subr.mxu0 0.0
        %5185 = vmatpush1.msra.mxu0 0.0
        %5186 = vmatprep.subr.mxu0 0.0
        %5187 = vmatpush1.msra.mxu0 0.0
        %5188 = vmatprep.subr.mxu0 0.0
        %5189 = vmatpush1.msra.mxu0 0.0
        %5190 = vmatprep.subr.mxu0 0.0
        %5191 = vmatpush1.msra.mxu0 0.0
        %5192 = vmatprep.subr.mxu0 0.0
        %5193 = vmatpush1.msra.mxu0 0.0
        %5194 = vmatprep.subr.mxu0 0.0
        %5195 = vmatpush1.msra.mxu0 0.0
        %5196 = vmatprep.subr.mxu0 0.0
        %5197 = vmatpush1.msra.mxu0 0.0
        %5198 = vmatprep.subr.mxu0 0.0
        %5199 = vmatpush1.msra.mxu0 0.0
        %5200 = vmatprep.subr.mxu0 0.0
        %5201 = vmatpush1.msra.mxu0 0.0
        %5202 = vmatprep.subr.mxu0 0.0
        %5203 = vmatpush1.msra.mxu0 0.0
        %5204 = vmatprep.subr.mxu0 0.0
        %5205 = vmatpush1.msra.mxu0 0.0
        %5206 = vmatprep.subr.mxu0 0.0
        %5207 = vmatpush1.msra.mxu0 0.0
        %5208 = vmatprep.subr.mxu0 0.0
        %5209 = vmatpush1.msra.mxu0 0.0
        %5210 = vmatprep.subr.mxu0 0.0
        %5211 = vmatpush1.msra.mxu0 0.0
        %5212 = vmatprep.subr.mxu0 0.0
        %5213 = vmatpush1.msra.mxu0 0.0
        %5214 = vmatprep.subr.mxu0 0.0
        %5215 = vmatpush1.msra.mxu0 0.0
        %5216 = vmatprep.subr.mxu0 0.0
        %5217 = vmatpush1.msra.mxu0 0.0
        %5218 = vmatprep.subr.mxu0 0.0
        %5219 = vmatpush1.msra.mxu0 0.0
        %5220 = vmatprep.subr.mxu0 0.0
        %5221 = vmatpush1.msra.mxu0 0.0
        %5222 = vmatprep.subr.mxu0 0.0
        %5223 = vmatpush1.msra.mxu0 0.0
        %5224 = vmatprep.subr.mxu0 0.0
        %5225 = vmatpush1.msra.mxu0 0.0
        %5226 = vmatprep.subr.mxu0 0.0
        %5227 = vmatpush1.msra.mxu0 0.0
        %5228 = vmatprep.subr.mxu0 0.0
        %5229 = vmatpush1.msra.mxu0 0.0
        %5230 = vmatprep.subr.mxu0 0.0
        %5231 = vmatpush1.msra.mxu0 0.0
        %5232 = vmatprep.subr.mxu0 0.0
        %5233 = vmatpush1.msra.mxu0 0.0
        %5234 = vmatprep.subr.mxu0 0.0
        %5235 = vmatpush1.msra.mxu0 0.0
        %5236 = vmatprep.subr.mxu0 0.0
        %5237 = vmatpush1.msra.mxu0 0.0
        %5238 = vmatprep.subr.mxu0 0.0
        %5239 = vmatpush1.msra.mxu0 0.0
        %5240 = vmatprep.subr.mxu0 0.0
        %5241 = vmatpush1.msra.mxu0 0.0
        %5242 = vmatprep.subr.mxu0 0.0
        %5243 = vmatpush1.msra.mxu0 0.0
        %5244 = vmatprep.mubr.f32.mxu0 0.0
        %v5245 = vand.u32 %v1884, 4294901760
        %v5246 = vsub.f32 %v1884, %v5245
        %v5247 = vand.u32 %v5246, 4294901760
        %5248 = vmatmul.mubr.f32.gmra.mrb[0].mxu0 %v5247
        %v5249 = vpop.f32.mrb[0].mxu0
        %v5250 = vadd.f32 %v5168, %v5249
        %v5251 = vpop.f32.mrb[0].mxu0
        %5252 = vmatprep.mubr.f32.mxu0 0.0
        %v5253 = vand.u32 %v1887, 4294901760
        %v5254 = vsub.f32 %v1887, %v5253
        %v5255 = vand.u32 %v5254, 4294901760
        %5256 = vmatmul.mubr.f32.gmra.mrb[0].mxu0 %v5255
        %v5257 = vpop.f32.mrb[0].mxu0
        %v5258 = vadd.f32 %v5175, %v5257
        %v5259 = vpop.f32.mrb[0].mxu0
        %5260 = vdwg.mxu0
        %5261 = vmatprep.subr.mxu0 0.0
        %v5262 = vand.u32 %v1108, 4294901760
        %v5263 = vsub.f32 %v1108, %v5262
        %v5264 = vand.u32 %v5263, 4294901760
        %5265 = vmatpush1.msra.mxu0 %v5264
        %5266 = vmatprep.subr.mxu0 0.0
        %v5267 = vand.u32 %v1114, 4294901760
        %v5268 = vsub.f32 %v1114, %v5267
        %v5269 = vand.u32 %v5268, 4294901760
        %5270 = vmatpush1.msra.mxu0 %v5269
        %5271 = vmatprep.subr.mxu0 0.0
        %5272 = vmatpush1.msra.mxu0 0.0
        %5273 = vmatprep.subr.mxu0 0.0
        %5274 = vmatpush1.msra.mxu0 0.0
        %5275 = vmatprep.subr.mxu0 0.0
        %5276 = vmatpush1.msra.mxu0 0.0
        %5277 = vmatprep.subr.mxu0 0.0
        %5278 = vmatpush1.msra.mxu0 0.0
        %5279 = vmatprep.subr.mxu0 0.0
        %5280 = vmatpush1.msra.mxu0 0.0
        %5281 = vmatprep.subr.mxu0 0.0
        %5282 = vmatpush1.msra.mxu0 0.0
        %5283 = vmatprep.subr.mxu0 0.0
        %5284 = vmatpush1.msra.mxu0 0.0
        %5285 = vmatprep.subr.mxu0 0.0
        %5286 = vmatpush1.msra.mxu0 0.0
        %5287 = vmatprep.subr.mxu0 0.0
        %5288 = vmatpush1.msra.mxu0 0.0
        %5289 = vmatprep.subr.mxu0 0.0
        %5290 = vmatpush1.msra.mxu0 0.0
        %5291 = vmatprep.subr.mxu0 0.0
        %5292 = vmatpush1.msra.mxu0 0.0
        %5293 = vmatprep.subr.mxu0 0.0
        %5294 = vmatpush1.msra.mxu0 0.0
        %5295 = vmatprep.subr.mxu0 0.0
        %5296 = vmatpush1.msra.mxu0 0.0
        %5297 = vmatprep.subr.mxu0 0.0
        %5298 = vmatpush1.msra.mxu0 0.0
        %5299 = vmatprep.subr.mxu0 0.0
        %5300 = vmatpush1.msra.mxu0 0.0
        %5301 = vmatprep.subr.mxu0 0.0
        %5302 = vmatpush1.msra.mxu0 0.0
        %5303 = vmatprep.subr.mxu0 0.0
        %5304 = vmatpush1.msra.mxu0 0.0
        %5305 = vmatprep.subr.mxu0 0.0
        %5306 = vmatpush1.msra.mxu0 0.0
        %5307 = vmatprep.subr.mxu0 0.0
        %5308 = vmatpush1.msra.mxu0 0.0
        %5309 = vmatprep.subr.mxu0 0.0
        %5310 = vmatpush1.msra.mxu0 0.0
        %5311 = vmatprep.subr.mxu0 0.0
        %5312 = vmatpush1.msra.mxu0 0.0
        %5313 = vmatprep.subr.mxu0 0.0
        %5314 = vmatpush1.msra.mxu0 0.0
        %5315 = vmatprep.subr.mxu0 0.0
        %5316 = vmatpush1.msra.mxu0 0.0
        %5317 = vmatprep.subr.mxu0 0.0
        %5318 = vmatpush1.msra.mxu0 0.0
        %5319 = vmatprep.subr.mxu0 0.0
        %5320 = vmatpush1.msra.mxu0 0.0
        %5321 = vmatprep.subr.mxu0 0.0
        %5322 = vmatpush1.msra.mxu0 0.0
        %5323 = vmatprep.subr.mxu0 0.0
        %5324 = vmatpush1.msra.mxu0 0.0
        %5325 = vmatprep.subr.mxu0 0.0
        %5326 = vmatpush1.msra.mxu0 0.0
        %5327 = vmatprep.subr.mxu0 0.0
        %5328 = vmatpush1.msra.mxu0 0.0
        %5329 = vmatprep.subr.mxu0 0.0
        %5330 = vmatpush1.msra.mxu0 0.0
        %5331 = vmatprep.mubr.f32.mxu0 0.0
        %v5332 = vand.u32 %v1884, 4294901760
        %5333 = vmatmul.mubr.f32.gmra.mrb[0].mxu0 %v5332
        %v5334 = vpop.f32.mrb[0].mxu0
        %v5335 = vadd.f32 %v5250, %v5334
        %v5336 = vpop.f32.mrb[0].mxu0
        %5337 = vmatprep.mubr.f32.mxu0 0.0
        %v5338 = vand.u32 %v1887, 4294901760
        %5339 = vmatmul.mubr.f32.gmra.mrb[0].mxu0 %v5338
        %v5340 = vpop.f32.mrb[0].mxu0
        %v5341 = vadd.f32 %v5258, %v5340
        %v5342 = vpop.f32.mrb[0].mxu0
        %5343 = vdwg.mxu0
        %5344 = vmatprep.subr.mxu0 0.0
        %v5345 = vand.u32 %v1108, 4294901760
        %5346 = vmatpush1.msra.mxu0 %v5345
        %5347 = vmatprep.subr.mxu0 0.0
        %v5348 = vand.u32 %v1114, 4294901760
        %5349 = vmatpush1.msra.mxu0 %v5348
        %5350 = vmatprep.subr.mxu0 0.0
        %5351 = vmatpush1.msra.mxu0 0.0
        %5352 = vmatprep.subr.mxu0 0.0
        %5353 = vmatpush1.msra.mxu0 0.0
        %5354 = vmatprep.subr.mxu0 0.0
        %5355 = vmatpush1.msra.mxu0 0.0
        %5356 = vmatprep.subr.mxu0 0.0
        %5357 = vmatpush1.msra.mxu0 0.0
        %5358 = vmatprep.subr.mxu0 0.0
        %5359 = vmatpush1.msra.mxu0 0.0
        %5360 = vmatprep.subr.mxu0 0.0
        %5361 = vmatpush1.msra.mxu0 0.0
        %5362 = vmatprep.subr.mxu0 0.0
        %5363 = vmatpush1.msra.mxu0 0.0
        %5364 = vmatprep.subr.mxu0 0.0
        %5365 = vmatpush1.msra.mxu0 0.0
        %5366 = vmatprep.subr.mxu0 0.0
        %5367 = vmatpush1.msra.mxu0 0.0
        %5368 = vmatprep.subr.mxu0 0.0
        %5369 = vmatpush1.msra.mxu0 0.0
        %5370 = vmatprep.subr.mxu0 0.0
        %5371 = vmatpush1.msra.mxu0 0.0
        %5372 = vmatprep.subr.mxu0 0.0
        %5373 = vmatpush1.msra.mxu0 0.0
        %5374 = vmatprep.subr.mxu0 0.0
        %5375 = vmatpush1.msra.mxu0 0.0
        %5376 = vmatprep.subr.mxu0 0.0
        %5377 = vmatpush1.msra.mxu0 0.0
        %5378 = vmatprep.subr.mxu0 0.0
        %5379 = vmatpush1.msra.mxu0 0.0
        %5380 = vmatprep.subr.mxu0 0.0
        %5381 = vmatpush1.msra.mxu0 0.0
        %5382 = vmatprep.subr.mxu0 0.0
        %5383 = vmatpush1.msra.mxu0 0.0
        %5384 = vmatprep.subr.mxu0 0.0
        %5385 = vmatpush1.msra.mxu0 0.0
        %5386 = vmatprep.subr.mxu0 0.0
        %5387 = vmatpush1.msra.mxu0 0.0
        %5388 = vmatprep.subr.mxu0 0.0
        %5389 = vmatpush1.msra.mxu0 0.0
        %5390 = vmatprep.subr.mxu0 0.0
        %5391 = vmatpush1.msra.mxu0 0.0
        %5392 = vmatprep.subr.mxu0 0.0
        %5393 = vmatpush1.msra.mxu0 0.0
        %5394 = vmatprep.subr.mxu0 0.0
        %5395 = vmatpush1.msra.mxu0 0.0
        %5396 = vmatprep.subr.mxu0 0.0
        %5397 = vmatpush1.msra.mxu0 0.0
        %5398 = vmatprep.subr.mxu0 0.0
        %5399 = vmatpush1.msra.mxu0 0.0
        %5400 = vmatprep.subr.mxu0 0.0
        %5401 = vmatpush1.msra.mxu0 0.0
        %5402 = vmatprep.subr.mxu0 0.0
        %5403 = vmatpush1.msra.mxu0 0.0
        %5404 = vmatprep.subr.mxu0 0.0
        %5405 = vmatpush1.msra.mxu0 0.0
        %5406 = vmatprep.subr.mxu0 0.0
        %5407 = vmatpush1.msra.mxu0 0.0
        %5408 = vmatprep.subr.mxu0 0.0
        %5409 = vmatpush1.msra.mxu0 0.0
        %5410 = vmatprep.mubr.f32.mxu0 0.0
        %v5411 = vand.u32 %v1884, 4294901760
        %5412 = vmatmul.mubr.f32.gmra.mrb[0].mxu0 %v5411
        %v5413 = vpop.f32.mrb[0].mxu0
        %v5414 = vadd.f32 %v5335, %v5413
        %v5415 = vpop.f32.mrb[0].mxu0
        %5416 = vmatprep.mubr.f32.mxu0 0.0
        %v5417 = vand.u32 %v1887, 4294901760
        %5418 = vmatmul.mubr.f32.gmra.mrb[0].mxu0 %v5417
        %v5419 = vpop.f32.mrb[0].mxu0
        %v5420 = vadd.f32 %v5341, %v5419
        %v5421 = vpop.f32.mrb[0].mxu0
        %5422 = vdwg.mxu0
        %5423 = vmatprep.subr.mxu0 0.0
        %v5424 = vand.u32 %v1870, 4294901760
        %5425 = vmatpush1.msra.mxu0 %v5424
        %5426 = vmatprep.subr.mxu0 0.0
        %v5427 = vand.u32 %v1876, 4294901760
        %5428 = vmatpush1.msra.mxu0 %v5427
        %5429 = vmatprep.subr.mxu0 0.0
        %5430 = vmatpush1.msra.mxu0 0.0
        %5431 = vmatprep.subr.mxu0 0.0
        %5432 = vmatpush1.msra.mxu0 0.0
        %5433 = vmatprep.subr.mxu0 0.0
        %5434 = vmatpush1.msra.mxu0 0.0
        %5435 = vmatprep.subr.mxu0 0.0
        %5436 = vmatpush1.msra.mxu0 0.0
        %5437 = vmatprep.subr.mxu0 0.0
        %5438 = vmatpush1.msra.mxu0 0.0
        %5439 = vmatprep.subr.mxu0 0.0
        %5440 = vmatpush1.msra.mxu0 0.0
        %5441 = vmatprep.subr.mxu0 0.0
        %5442 = vmatpush1.msra.mxu0 0.0
        %5443 = vmatprep.subr.mxu0 0.0
        %5444 = vmatpush1.msra.mxu0 0.0
        %5445 = vmatprep.subr.mxu0 0.0
        %5446 = vmatpush1.msra.mxu0 0.0
        %5447 = vmatprep.subr.mxu0 0.0
        %5448 = vmatpush1.msra.mxu0 0.0
        %5449 = vmatprep.subr.mxu0 0.0
        %5450 = vmatpush1.msra.mxu0 0.0
        %5451 = vmatprep.subr.mxu0 0.0
        %5452 = vmatpush1.msra.mxu0 0.0
        %5453 = vmatprep.subr.mxu0 0.0
        %5454 = vmatpush1.msra.mxu0 0.0
        %5455 = vmatprep.subr.mxu0 0.0
        %5456 = vmatpush1.msra.mxu0 0.0
        %5457 = vmatprep.subr.mxu0 0.0
        %5458 = vmatpush1.msra.mxu0 0.0
        %5459 = vmatprep.subr.mxu0 0.0
        %5460 = vmatpush1.msra.mxu0 0.0
        %5461 = vmatprep.subr.mxu0 0.0
        %5462 = vmatpush1.msra.mxu0 0.0
        %5463 = vmatprep.subr.mxu0 0.0
        %5464 = vmatpush1.msra.mxu0 0.0
        %5465 = vmatprep.subr.mxu0 0.0
        %5466 = vmatpush1.msra.mxu0 0.0
        %5467 = vmatprep.subr.mxu0 0.0
        %5468 = vmatpush1.msra.mxu0 0.0
        %5469 = vmatprep.subr.mxu0 0.0
        %5470 = vmatpush1.msra.mxu0 0.0
        %5471 = vmatprep.subr.mxu0 0.0
        %5472 = vmatpush1.msra.mxu0 0.0
        %5473 = vmatprep.subr.mxu0 0.0
        %5474 = vmatpush1.msra.mxu0 0.0
        %5475 = vmatprep.subr.mxu0 0.0
        %5476 = vmatpush1.msra.mxu0 0.0
        %5477 = vmatprep.subr.mxu0 0.0
        %5478 = vmatpush1.msra.mxu0 0.0
        %5479 = vmatprep.subr.mxu0 0.0
        %5480 = vmatpush1.msra.mxu0 0.0
        %5481 = vmatprep.subr.mxu0 0.0
        %5482 = vmatpush1.msra.mxu0 0.0
        %5483 = vmatprep.subr.mxu0 0.0
        %5484 = vmatpush1.msra.mxu0 0.0
        %5485 = vmatprep.subr.mxu0 0.0
        %5486 = vmatpush1.msra.mxu0 0.0
        %5487 = vmatprep.subr.mxu0 0.0
        %5488 = vmatpush1.msra.mxu0 0.0
        %5489 = vmatprep.mubr.f32.mxu0 0.0
        %v5490 = vand.u32 %v2392, 4294901760
        %v5491 = vsub.f32 %v2392, %v5490
        %v5492 = vand.u32 %v5491, 4294901760
        %v5493 = vsub.f32 %v5491, %v5492
        %v5494 = vand.u32 %v5493, 4294901760
        %5495 = vmatmul.mubr.f32.gmra.mrb[0].mxu0 %v5494
        %v5496 = vpop.f32.mrb[0].mxu0
        %v5497 = vadd.f32 0.0, %v5496
        %v5498 = vpop.f32.mrb[0].mxu0
        %5499 = vmatprep.mubr.f32.mxu0 0.0
        %v5500 = vand.u32 %v2395, 4294901760
        %v5501 = vsub.f32 %v2395, %v5500
        %v5502 = vand.u32 %v5501, 4294901760
        %v5503 = vsub.f32 %v5501, %v5502
        %v5504 = vand.u32 %v5503, 4294901760
        %5505 = vmatmul.mubr.f32.gmra.mrb[0].mxu0 %v5504
        %v5506 = vpop.f32.mrb[0].mxu0
        %v5507 = vadd.f32 0.0, %v5506
        %v5508 = vpop.f32.mrb[0].mxu0
        %5509 = vdwg.mxu0
        %5510 = vmatprep.subr.mxu0 0.0
        %v5511 = vand.u32 %v1870, 4294901760
        %v5512 = vsub.f32 %v1870, %v5511
        %v5513 = vand.u32 %v5512, 4294901760
        %v5514 = vsub.f32 %v5512, %v5513
        %v5515 = vand.u32 %v5514, 4294901760
        %5516 = vmatpush1.msra.mxu0 %v5515
        %5517 = vmatprep.subr.mxu0 0.0
        %v5518 = vand.u32 %v1876, 4294901760
        %v5519 = vsub.f32 %v1876, %v5518
        %v5520 = vand.u32 %v5519, 4294901760
        %v5521 = vsub.f32 %v5519, %v5520
        %v5522 = vand.u32 %v5521, 4294901760
        %5523 = vmatpush1.msra.mxu0 %v5522
        %5524 = vmatprep.subr.mxu0 0.0
        %5525 = vmatpush1.msra.mxu0 0.0
        %5526 = vmatprep.subr.mxu0 0.0
        %5527 = vmatpush1.msra.mxu0 0.0
        %5528 = vmatprep.subr.mxu0 0.0
        %5529 = vmatpush1.msra.mxu0 0.0
        %5530 = vmatprep.subr.mxu0 0.0
        %5531 = vmatpush1.msra.mxu0 0.0
        %5532 = vmatprep.subr.mxu0 0.0
        %5533 = vmatpush1.msra.mxu0 0.0
        %5534 = vmatprep.subr.mxu0 0.0
        %5535 = vmatpush1.msra.mxu0 0.0
        %5536 = vmatprep.subr.mxu0 0.0
        %5537 = vmatpush1.msra.mxu0 0.0
        %5538 = vmatprep.subr.mxu0 0.0
        %5539 = vmatpush1.msra.mxu0 0.0
        %5540 = vmatprep.subr.mxu0 0.0
        %5541 = vmatpush1.msra.mxu0 0.0
        %5542 = vmatprep.subr.mxu0 0.0
        %5543 = vmatpush1.msra.mxu0 0.0
        %5544 = vmatprep.subr.mxu0 0.0
        %5545 = vmatpush1.msra.mxu0 0.0
        %5546 = vmatprep.subr.mxu0 0.0
        %5547 = vmatpush1.msra.mxu0 0.0
        %5548 = vmatprep.subr.mxu0 0.0
        %5549 = vmatpush1.msra.mxu0 0.0
        %5550 = vmatprep.subr.mxu0 0.0
        %5551 = vmatpush1.msra.mxu0 0.0
        %5552 = vmatprep.subr.mxu0 0.0
        %5553 = vmatpush1.msra.mxu0 0.0
        %5554 = vmatprep.subr.mxu0 0.0
        %5555 = vmatpush1.msra.mxu0 0.0
        %5556 = vmatprep.subr.mxu0 0.0
        %5557 = vmatpush1.msra.mxu0 0.0
        %5558 = vmatprep.subr.mxu0 0.0
        %5559 = vmatpush1.msra.mxu0 0.0
        %5560 = vmatprep.subr.mxu0 0.0
        %5561 = vmatpush1.msra.mxu0 0.0
        %5562 = vmatprep.subr.mxu0 0.0
        %5563 = vmatpush1.msra.mxu0 0.0
        %5564 = vmatprep.subr.mxu0 0.0
        %5565 = vmatpush1.msra.mxu0 0.0
        %5566 = vmatprep.subr.mxu0 0.0
        %5567 = vmatpush1.msra.mxu0 0.0
        %5568 = vmatprep.subr.mxu0 0.0
        %5569 = vmatpush1.msra.mxu0 0.0
        %5570 = vmatprep.subr.mxu0 0.0
        %5571 = vmatpush1.msra.mxu0 0.0
        %5572 = vmatprep.subr.mxu0 0.0
        %5573 = vmatpush1.msra.mxu0 0.0
        %5574 = vmatprep.subr.mxu0 0.0
        %5575 = vmatpush1.msra.mxu0 0.0
        %5576 = vmatprep.subr.mxu0 0.0
        %5577 = vmatpush1.msra.mxu0 0.0
        %5578 = vmatprep.subr.mxu0 0.0
        %5579 = vmatpush1.msra.mxu0 0.0
        %5580 = vmatprep.subr.mxu0 0.0
        %5581 = vmatpush1.msra.mxu0 0.0
        %5582 = vmatprep.subr.mxu0 0.0
        %5583 = vmatpush1.msra.mxu0 0.0
        %5584 = vmatprep.mubr.f32.mxu0 0.0
        %v5585 = vand.u32 %v2392, 4294901760
        %5586 = vmatmul.mubr.f32.gmra.mrb[0].mxu0 %v5585
        %v5587 = vpop.f32.mrb[0].mxu0
        %v5588 = vadd.f32 %v5497, %v5587
        %v5589 = vpop.f32.mrb[0].mxu0
        %5590 = vmatprep.mubr.f32.mxu0 0.0
        %v5591 = vand.u32 %v2395, 4294901760
        %5592 = vmatmul.mubr.f32.gmra.mrb[0].mxu0 %v5591
        %v5593 = vpop.f32.mrb[0].mxu0
        %v5594 = vadd.f32 %v5507, %v5593
        %v5595 = vpop.f32.mrb[0].mxu0
        %5596 = vdwg.mxu0
        %5597 = vmatprep.subr.mxu0 0.0
        %v5598 = vand.u32 %v1870, 4294901760
        %v5599 = vsub.f32 %v1870, %v5598
        %5600 = vmatpush1.msra.mxu0 %v5599
        %5601 = vmatprep.subr.mxu0 0.0
        %v5602 = vand.u32 %v1876, 4294901760
        %v5603 = vsub.f32 %v1876, %v5602
        %5604 = vmatpush1.msra.mxu0 %v5603
        %5605 = vmatprep.subr.mxu0 0.0
        %5606 = vmatpush1.msra.mxu0 0.0
        %5607 = vmatprep.subr.mxu0 0.0
        %5608 = vmatpush1.msra.mxu0 0.0
        %5609 = vmatprep.subr.mxu0 0.0
        %5610 = vmatpush1.msra.mxu0 0.0
        %5611 = vmatprep.subr.mxu0 0.0
        %5612 = vmatpush1.msra.mxu0 0.0
        %5613 = vmatprep.subr.mxu0 0.0
        %5614 = vmatpush1.msra.mxu0 0.0
        %5615 = vmatprep.subr.mxu0 0.0
        %5616 = vmatpush1.msra.mxu0 0.0
        %5617 = vmatprep.subr.mxu0 0.0
        %5618 = vmatpush1.msra.mxu0 0.0
        %5619 = vmatprep.subr.mxu0 0.0
        %5620 = vmatpush1.msra.mxu0 0.0
        %5621 = vmatprep.subr.mxu0 0.0
        %5622 = vmatpush1.msra.mxu0 0.0
        %5623 = vmatprep.subr.mxu0 0.0
        %5624 = vmatpush1.msra.mxu0 0.0
        %5625 = vmatprep.subr.mxu0 0.0
        %5626 = vmatpush1.msra.mxu0 0.0
        %5627 = vmatprep.subr.mxu0 0.0
        %5628 = vmatpush1.msra.mxu0 0.0
        %5629 = vmatprep.subr.mxu0 0.0
        %5630 = vmatpush1.msra.mxu0 0.0
        %5631 = vmatprep.subr.mxu0 0.0
        %5632 = vmatpush1.msra.mxu0 0.0
        %5633 = vmatprep.subr.mxu0 0.0
        %5634 = vmatpush1.msra.mxu0 0.0
        %5635 = vmatprep.subr.mxu0 0.0
        %5636 = vmatpush1.msra.mxu0 0.0
        %5637 = vmatprep.subr.mxu0 0.0
        %5638 = vmatpush1.msra.mxu0 0.0
        %5639 = vmatprep.subr.mxu0 0.0
        %5640 = vmatpush1.msra.mxu0 0.0
        %5641 = vmatprep.subr.mxu0 0.0
        %5642 = vmatpush1.msra.mxu0 0.0
        %5643 = vmatprep.subr.mxu0 0.0
        %5644 = vmatpush1.msra.mxu0 0.0
        %5645 = vmatprep.subr.mxu0 0.0
        %5646 = vmatpush1.msra.mxu0 0.0
        %5647 = vmatprep.subr.mxu0 0.0
        %5648 = vmatpush1.msra.mxu0 0.0
        %5649 = vmatprep.subr.mxu0 0.0
        %5650 = vmatpush1.msra.mxu0 0.0
        %5651 = vmatprep.subr.mxu0 0.0
        %5652 = vmatpush1.msra.mxu0 0.0
        %5653 = vmatprep.subr.mxu0 0.0
        %5654 = vmatpush1.msra.mxu0 0.0
        %5655 = vmatprep.subr.mxu0 0.0
        %5656 = vmatpush1.msra.mxu0 0.0
        %5657 = vmatprep.subr.mxu0 0.0
        %5658 = vmatpush1.msra.mxu0 0.0
        %5659 = vmatprep.subr.mxu0 0.0
        %5660 = vmatpush1.msra.mxu0 0.0
        %5661 = vmatprep.subr.mxu0 0.0
        %5662 = vmatpush1.msra.mxu0 0.0
        %5663 = vmatprep.subr.mxu0 0.0
        %5664 = vmatpush1.msra.mxu0 0.0
        %5665 = vmatprep.mubr.f32.mxu0 0.0
        %v5666 = vand.u32 %v2392, 4294901760
        %v5667 = vsub.f32 %v2392, %v5666
        %5668 = vmatmul.mubr.f32.gmra.mrb[0].mxu0 %v5667
        %v5669 = vpop.f32.mrb[0].mxu0
        %v5670 = vadd.f32 %v5588, %v5669
        %v5671 = vpop.f32.mrb[0].mxu0
        %5672 = vmatprep.mubr.f32.mxu0 0.0
        %v5673 = vand.u32 %v2395, 4294901760
        %v5674 = vsub.f32 %v2395, %v5673
        %5675 = vmatmul.mubr.f32.gmra.mrb[0].mxu0 %v5674
        %v5676 = vpop.f32.mrb[0].mxu0
        %v5677 = vadd.f32 %v5594, %v5676
        %v5678 = vpop.f32.mrb[0].mxu0
        %5679 = vdwg.mxu0
        %5680 = vmatprep.subr.mxu0 0.0
        %v5681 = vand.u32 %v1870, 4294901760
        %5682 = vmatpush1.msra.mxu0 %v5681
        %5683 = vmatprep.subr.mxu0 0.0
        %v5684 = vand.u32 %v1876, 4294901760
        %5685 = vmatpush1.msra.mxu0 %v5684
        %5686 = vmatprep.subr.mxu0 0.0
        %5687 = vmatpush1.msra.mxu0 0.0
        %5688 = vmatprep.subr.mxu0 0.0
        %5689 = vmatpush1.msra.mxu0 0.0
        %5690 = vmatprep.subr.mxu0 0.0
        %5691 = vmatpush1.msra.mxu0 0.0
        %5692 = vmatprep.subr.mxu0 0.0
        %5693 = vmatpush1.msra.mxu0 0.0
        %5694 = vmatprep.subr.mxu0 0.0
        %5695 = vmatpush1.msra.mxu0 0.0
        %5696 = vmatprep.subr.mxu0 0.0
        %5697 = vmatpush1.msra.mxu0 0.0
        %5698 = vmatprep.subr.mxu0 0.0
        %5699 = vmatpush1.msra.mxu0 0.0
        %5700 = vmatprep.subr.mxu0 0.0
        %5701 = vmatpush1.msra.mxu0 0.0
        %5702 = vmatprep.subr.mxu0 0.0
        %5703 = vmatpush1.msra.mxu0 0.0
        %5704 = vmatprep.subr.mxu0 0.0
        %5705 = vmatpush1.msra.mxu0 0.0
        %5706 = vmatprep.subr.mxu0 0.0
        %5707 = vmatpush1.msra.mxu0 0.0
        %5708 = vmatprep.subr.mxu0 0.0
        %5709 = vmatpush1.msra.mxu0 0.0
        %5710 = vmatprep.subr.mxu0 0.0
        %5711 = vmatpush1.msra.mxu0 0.0
        %5712 = vmatprep.subr.mxu0 0.0
        %5713 = vmatpush1.msra.mxu0 0.0
        %5714 = vmatprep.subr.mxu0 0.0
        %5715 = vmatpush1.msra.mxu0 0.0
        %5716 = vmatprep.subr.mxu0 0.0
        %5717 = vmatpush1.msra.mxu0 0.0
        %5718 = vmatprep.subr.mxu0 0.0
        %5719 = vmatpush1.msra.mxu0 0.0
        %5720 = vmatprep.subr.mxu0 0.0
        %5721 = vmatpush1.msra.mxu0 0.0
        %5722 = vmatprep.subr.mxu0 0.0
        %5723 = vmatpush1.msra.mxu0 0.0
        %5724 = vmatprep.subr.mxu0 0.0
        %5725 = vmatpush1.msra.mxu0 0.0
        %5726 = vmatprep.subr.mxu0 0.0
        %5727 = vmatpush1.msra.mxu0 0.0
        %5728 = vmatprep.subr.mxu0 0.0
        %5729 = vmatpush1.msra.mxu0 0.0
        %5730 = vmatprep.subr.mxu0 0.0
        %5731 = vmatpush1.msra.mxu0 0.0
        %5732 = vmatprep.subr.mxu0 0.0
        %5733 = vmatpush1.msra.mxu0 0.0
        %5734 = vmatprep.subr.mxu0 0.0
        %5735 = vmatpush1.msra.mxu0 0.0
        %5736 = vmatprep.subr.mxu0 0.0
        %5737 = vmatpush1.msra.mxu0 0.0
        %5738 = vmatprep.subr.mxu0 0.0
        %5739 = vmatpush1.msra.mxu0 0.0
        %5740 = vmatprep.subr.mxu0 0.0
        %5741 = vmatpush1.msra.mxu0 0.0
        %5742 = vmatprep.subr.mxu0 0.0
        %5743 = vmatpush1.msra.mxu0 0.0
        %5744 = vmatprep.subr.mxu0 0.0
        %5745 = vmatpush1.msra.mxu0 0.0
        %5746 = vmatprep.mubr.f32.mxu0 0.0
        %v5747 = vand.u32 %v2392, 4294901760
        %v5748 = vsub.f32 %v2392, %v5747
        %v5749 = vand.u32 %v5748, 4294901760
        %5750 = vmatmul.mubr.f32.gmra.mrb[0].mxu0 %v5749
        %v5751 = vpop.f32.mrb[0].mxu0
        %v5752 = vadd.f32 %v5670, %v5751
        %v5753 = vpop.f32.mrb[0].mxu0
        %5754 = vmatprep.mubr.f32.mxu0 0.0
        %v5755 = vand.u32 %v2395, 4294901760
        %v5756 = vsub.f32 %v2395, %v5755
        %v5757 = vand.u32 %v5756, 4294901760
        %5758 = vmatmul.mubr.f32.gmra.mrb[0].mxu0 %v5757
        %v5759 = vpop.f32.mrb[0].mxu0
        %v5760 = vadd.f32 %v5677, %v5759
        %v5761 = vpop.f32.mrb[0].mxu0
        %5762 = vdwg.mxu0
        %5763 = vmatprep.subr.mxu0 0.0
        %v5764 = vand.u32 %v1870, 4294901760
        %v5765 = vsub.f32 %v1870, %v5764
        %v5766 = vand.u32 %v5765, 4294901760
        %5767 = vmatpush1.msra.mxu0 %v5766
        %5768 = vmatprep.subr.mxu0 0.0
        %v5769 = vand.u32 %v1876, 4294901760
        %v5770 = vsub.f32 %v1876, %v5769
        %v5771 = vand.u32 %v5770, 4294901760
        %5772 = vmatpush1.msra.mxu0 %v5771
        %5773 = vmatprep.subr.mxu0 0.0
        %5774 = vmatpush1.msra.mxu0 0.0
        %5775 = vmatprep.subr.mxu0 0.0
        %5776 = vmatpush1.msra.mxu0 0.0
        %5777 = vmatprep.subr.mxu0 0.0
        %5778 = vmatpush1.msra.mxu0 0.0
        %5779 = vmatprep.subr.mxu0 0.0
        %5780 = vmatpush1.msra.mxu0 0.0
        %5781 = vmatprep.subr.mxu0 0.0
        %5782 = vmatpush1.msra.mxu0 0.0
        %5783 = vmatprep.subr.mxu0 0.0
        %5784 = vmatpush1.msra.mxu0 0.0
        %5785 = vmatprep.subr.mxu0 0.0
        %5786 = vmatpush1.msra.mxu0 0.0
        %5787 = vmatprep.subr.mxu0 0.0
        %5788 = vmatpush1.msra.mxu0 0.0
        %5789 = vmatprep.subr.mxu0 0.0
        %5790 = vmatpush1.msra.mxu0 0.0
        %5791 = vmatprep.subr.mxu0 0.0
        %5792 = vmatpush1.msra.mxu0 0.0
        %5793 = vmatprep.subr.mxu0 0.0
        %5794 = vmatpush1.msra.mxu0 0.0
        %5795 = vmatprep.subr.mxu0 0.0
        %5796 = vmatpush1.msra.mxu0 0.0
        %5797 = vmatprep.subr.mxu0 0.0
        %5798 = vmatpush1.msra.mxu0 0.0
        %5799 = vmatprep.subr.mxu0 0.0
        %5800 = vmatpush1.msra.mxu0 0.0
        %5801 = vmatprep.subr.mxu0 0.0
        %5802 = vmatpush1.msra.mxu0 0.0
        %5803 = vmatprep.subr.mxu0 0.0
        %5804 = vmatpush1.msra.mxu0 0.0
        %5805 = vmatprep.subr.mxu0 0.0
        %5806 = vmatpush1.msra.mxu0 0.0
        %5807 = vmatprep.subr.mxu0 0.0
        %5808 = vmatpush1.msra.mxu0 0.0
        %5809 = vmatprep.subr.mxu0 0.0
        %5810 = vmatpush1.msra.mxu0 0.0
        %5811 = vmatprep.subr.mxu0 0.0
        %5812 = vmatpush1.msra.mxu0 0.0
        %5813 = vmatprep.subr.mxu0 0.0
        %5814 = vmatpush1.msra.mxu0 0.0
        %5815 = vmatprep.subr.mxu0 0.0
        %5816 = vmatpush1.msra.mxu0 0.0
        %5817 = vmatprep.subr.mxu0 0.0
        %5818 = vmatpush1.msra.mxu0 0.0
        %5819 = vmatprep.subr.mxu0 0.0
        %5820 = vmatpush1.msra.mxu0 0.0
        %5821 = vmatprep.subr.mxu0 0.0
        %5822 = vmatpush1.msra.mxu0 0.0
        %5823 = vmatprep.subr.mxu0 0.0
        %5824 = vmatpush1.msra.mxu0 0.0
        %5825 = vmatprep.subr.mxu0 0.0
        %5826 = vmatpush1.msra.mxu0 0.0
        %5827 = vmatprep.subr.mxu0 0.0
        %5828 = vmatpush1.msra.mxu0 0.0
        %5829 = vmatprep.subr.mxu0 0.0
        %5830 = vmatpush1.msra.mxu0 0.0
        %5831 = vmatprep.subr.mxu0 0.0
        %5832 = vmatpush1.msra.mxu0 0.0
        %5833 = vmatprep.mubr.f32.mxu0 0.0
        %v5834 = vand.u32 %v2392, 4294901760
        %5835 = vmatmul.mubr.f32.gmra.mrb[0].mxu0 %v5834
        %v5836 = vpop.f32.mrb[0].mxu0
        %v5837 = vadd.f32 %v5752, %v5836
        %v5838 = vpop.f32.mrb[0].mxu0
        %5839 = vmatprep.mubr.f32.mxu0 0.0
        %v5840 = vand.u32 %v2395, 4294901760
        %5841 = vmatmul.mubr.f32.gmra.mrb[0].mxu0 %v5840
        %v5842 = vpop.f32.mrb[0].mxu0
        %v5843 = vadd.f32 %v5760, %v5842
        %v5844 = vpop.f32.mrb[0].mxu0
        %5845 = vdwg.mxu0
        %5846 = vmatprep.subr.mxu0 0.0
        %v5847 = vand.u32 %v1870, 4294901760
        %5848 = vmatpush1.msra.mxu0 %v5847
        %5849 = vmatprep.subr.mxu0 0.0
        %v5850 = vand.u32 %v1876, 4294901760
        %5851 = vmatpush1.msra.mxu0 %v5850
        %5852 = vmatprep.subr.mxu0 0.0
        %5853 = vmatpush1.msra.mxu0 0.0
        %5854 = vmatprep.subr.mxu0 0.0
        %5855 = vmatpush1.msra.mxu0 0.0
        %5856 = vmatprep.subr.mxu0 0.0
        %5857 = vmatpush1.msra.mxu0 0.0
        %5858 = vmatprep.subr.mxu0 0.0
        %5859 = vmatpush1.msra.mxu0 0.0
        %5860 = vmatprep.subr.mxu0 0.0
        %5861 = vmatpush1.msra.mxu0 0.0
        %5862 = vmatprep.subr.mxu0 0.0
        %5863 = vmatpush1.msra.mxu0 0.0
        %5864 = vmatprep.subr.mxu0 0.0
        %5865 = vmatpush1.msra.mxu0 0.0
        %5866 = vmatprep.subr.mxu0 0.0
        %5867 = vmatpush1.msra.mxu0 0.0
        %5868 = vmatprep.subr.mxu0 0.0
        %5869 = vmatpush1.msra.mxu0 0.0
        %5870 = vmatprep.subr.mxu0 0.0
        %5871 = vmatpush1.msra.mxu0 0.0
        %5872 = vmatprep.subr.mxu0 0.0
        %5873 = vmatpush1.msra.mxu0 0.0
        %5874 = vmatprep.subr.mxu0 0.0
        %5875 = vmatpush1.msra.mxu0 0.0
        %5876 = vmatprep.subr.mxu0 0.0
        %5877 = vmatpush1.msra.mxu0 0.0
        %5878 = vmatprep.subr.mxu0 0.0
        %5879 = vmatpush1.msra.mxu0 0.0
        %5880 = vmatprep.subr.mxu0 0.0
        %5881 = vmatpush1.msra.mxu0 0.0
        %5882 = vmatprep.subr.mxu0 0.0
        %5883 = vmatpush1.msra.mxu0 0.0
        %5884 = vmatprep.subr.mxu0 0.0
        %5885 = vmatpush1.msra.mxu0 0.0
        %5886 = vmatprep.subr.mxu0 0.0
        %5887 = vmatpush1.msra.mxu0 0.0
        %5888 = vmatprep.subr.mxu0 0.0
        %5889 = vmatpush1.msra.mxu0 0.0
        %5890 = vmatprep.subr.mxu0 0.0
        %5891 = vmatpush1.msra.mxu0 0.0
        %5892 = vmatprep.subr.mxu0 0.0
        %5893 = vmatpush1.msra.mxu0 0.0
        %5894 = vmatprep.subr.mxu0 0.0
        %5895 = vmatpush1.msra.mxu0 0.0
        %5896 = vmatprep.subr.mxu0 0.0
        %5897 = vmatpush1.msra.mxu0 0.0
        %5898 = vmatprep.subr.mxu0 0.0
        %5899 = vmatpush1.msra.mxu0 0.0
        %5900 = vmatprep.subr.mxu0 0.0
        %5901 = vmatpush1.msra.mxu0 0.0
        %5902 = vmatprep.subr.mxu0 0.0
        %5903 = vmatpush1.msra.mxu0 0.0
        %5904 = vmatprep.subr.mxu0 0.0
        %5905 = vmatpush1.msra.mxu0 0.0
        %5906 = vmatprep.subr.mxu0 0.0
        %5907 = vmatpush1.msra.mxu0 0.0
        %5908 = vmatprep.subr.mxu0 0.0
        %5909 = vmatpush1.msra.mxu0 0.0
        %5910 = vmatprep.subr.mxu0 0.0
        %5911 = vmatpush1.msra.mxu0 0.0
        %5912 = vmatprep.mubr.f32.mxu0 0.0
        %v5913 = vand.u32 %v2392, 4294901760
        %5914 = vmatmul.mubr.f32.gmra.mrb[0].mxu0 %v5913
        %v5915 = vpop.f32.mrb[0].mxu0
        %v5916 = vadd.f32 %v5837, %v5915
        %v5917 = vpop.f32.mrb[0].mxu0
        %5918 = vmatprep.mubr.f32.mxu0 0.0
        %v5919 = vand.u32 %v2395, 4294901760
        %5920 = vmatmul.mubr.f32.gmra.mrb[0].mxu0 %v5919
        %v5921 = vpop.f32.mrb[0].mxu0
        %v5922 = vadd.f32 %v5843, %v5921
        %v5923 = vpop.f32.mrb[0].mxu0
        %5924 = vdwg.mxu0
        %v5925 = vsub.f32 %v5414, %v5916
        %v5926 = vsub.f32 %v5420, %v5922
        %s5927 = scalar_lea.vmem %s319, 48 [#allocation11]
        %5928 = vst.msk [vmem:[%s5927] sm:$0xff] %vm332, %v5925
        %5929 = vst.msk [vmem:[%s5927 + $0x8] sm:$0xff] %vm332, %v5926
        %s5930 = sand.u32 %s158, 1
        %s5931 = scalar_lea.sflag [#allocation4], %s5930
        %s5932 = sand.u32 %s158, 1
        %s5933 = smul.addr %s5932, 64
        %s5934 = scalar_lea.vmem [#allocation11], %s5933
        // Predicated region
        $region61: #{tpu_custom_call.1} parent=39 // pred_check
          %p5935 = pneg %p168
        $region62: #{tpu_custom_call.1} parent=39 // pred_check_branch
          %5937 = sbr.rel (%p5935) target = $region64
        $region63: #{tpu_custom_call.1} parent=39 // pred_region
          %s5938 = smul.u32 4, %s29
          %s5940 = ssub.s32 1024, 1024
          %5941 = vsyncadd %s5931, %s5940
          %s5942 = smul.addr %s5938, 2
          %s5943 = smul.addr %s28, 8
          %s5944 = sadd.s32 %s5942, %s5943
          %s5945 = smul.addr %s5944, 128
          %s5946 = scalar_lea.hbm %s5, %s5945
          %s5947 = sshll.u32 %s5934, 4
          %s5948 = int_to_ptr.vmem [resolvable:$true] %s5947
          %5953 = dma.vmem_to_hbm [thread:$0]  %s5948, 1024, %s5946, %s5931, 128, 128, 8
        $region64: #{tpu_custom_call.1} parent=39 // pred_fallthru
          _
      $region40: #{tpu_custom_call.1} parent=5 // pred_fallthru
        _
      %p5954 = scmp.le.s32.totalorder 2, %s19
      // Predicated region
      $region65: #{tpu_custom_call.1} parent=5 // pred_check
        %p5955 = pneg %p5954
      $region66: #{tpu_custom_call.1} parent=5 // pred_check_branch
        %5957 = sbr.rel (%p5955) target = $region68
      $region67: #{tpu_custom_call.1} parent=5 // pred_region
        %s5958 = ssub.s32 %s19, 2
        // Predicated region
        $region69: #{tpu_custom_call.1} parent=67 // pred_check
          %p5959 = pneg %p174
        $region70: #{tpu_custom_call.1} parent=67 // pred_check_branch
          %5961 = sbr.rel (%p5959) target = $region72
        $region71: #{tpu_custom_call.1} parent=67 // pred_region
          %s5962 = sand.u32 %s159, 1
          %s5963 = scalar_lea.sflag [#allocation4], %s5962
          %s5964 = sand.u32 %s159, 1
          %s5965 = smul.addr %s5964, 64
          %s5966 = scalar_lea.vmem [#allocation11], %s5965
          %5967 = dma.done %s5963, 1024
        $region72: #{tpu_custom_call.1} parent=67 // pred_fallthru
          _
      $region68: #{tpu_custom_call.1} parent=5 // pred_fallthru
        _
    $region6: #{tpu_custom_call.1} parent=1 // loop_footer
      %s23 = sadd.s32 1, %s19
    $region7: #{tpu_custom_call.1} parent=1 // loop_footer_branch
      %18 = sbr.rel target = $region3
    $region8: #{tpu_custom_call.1} parent=1 // loop_exit
      _
    %5968 = vsyncpa [#allocation3], 1
    %s5969 = scalar_lea.sflag [#allocation3], 1
    %5970 = vsyncpa %s5969, 1
    %5971 = vsyncpa [#allocation6], 1
    %5972 = vsyncpa [#allocation9], 1
    %5973 = vsyncpa [#allocation4], 1
    %s5974 = scalar_lea.sflag [#allocation4], 1
    %5975 = vsyncpa %s5974, 1

</llo_original>
